<compile_context>
chip_gen: v7x
topology: tpu7x:2x2x1
jax: 0.10.0
libtpu: 0.0.40
codegen_flags: <defaults>
</compile_context>

<pallas_src>
import math

import jax
import jax.numpy as jnp
from jax.experimental import pallas as pl
from jax.experimental.pallas import tpu as pltpu


# ---------------------------------------------------------------------------
# Shared math
# ---------------------------------------------------------------------------
def _round_up(n, m):
    return ((n + m - 1) // m) * m


def _lcm(a, b):
    return a * b // math.gcd(a, b)


def _l2norm(x):
    # F.normalize(p=2, dim=-1): x / max(||x||, 1e-12)  ==  x * rsqrt(max(||x||^2, 1e-24))
    # rsqrt goes to the EUP (free slot) instead of TILE x embed VPU divides.
    s = jnp.sum(x * x, axis=-1, keepdims=True)
    return x * jax.lax.rsqrt(jnp.maximum(s, 1e-24))


def _mlp_chain(x, param_refs):
    """Bottleneck MLP: bf16 matmul operands, f32 MXU accumulation, f32 bias/ReLU."""
    h = x
    n_layers = len(param_refs) // 2
    for li in range(n_layers):
        w = param_refs[2 * li][...]        # bf16 weight (in_pad, out_pad)
        b = param_refs[2 * li + 1][...]    # f32 bias    (1, out_pad)
        y = jnp.dot(h.astype(w.dtype), w, preferred_element_type=jnp.float32) + b
        h = y if li == n_layers - 1 else jnp.maximum(y, 0.0)
    return h


# ---------------------------------------------------------------------------
# Fused kernel: pred MLP + explain MLP + cosine similarity per row tile.
# ---------------------------------------------------------------------------
def make_fused_kernel(n_pred_params, L, embed):
    def kernel(ls_ref, pred_ref, expl_ref, *rest):
        pred_params = rest[:n_pred_params]
        expl_params = rest[n_pred_params:-1]
        out_ref = rest[-1]

        # (g, embed) f32 — each pred group's MLP runs exactly once overall.
        pred_emb = _l2norm(_mlp_chain(pred_ref[...], pred_params))
        # (tile_rows, embed) f32
        expl_emb = _l2norm(_mlp_chain(expl_ref[...], expl_params))

        g = pred_emb.shape[0]
        # In-kernel L-fold broadcast of pred_emb (no replicated HBM stream).
        sim = jnp.sum(expl_emb.reshape(g, L, embed) * pred_emb[:, None, :],
                      axis=-1)                                   # (g, L) f32
        # Lane-dense (1, tile_rows) store.
        out_ref[...] = (sim.reshape(1, g * L) * ls_ref[0, 0]).astype(out_ref.dtype)

    return kernel


# ---------------------------------------------------------------------------
# Wrapper
# ---------------------------------------------------------------------------
def pad_mlp_params(params, weight_dtype=jnp.bfloat16, lane=128):
    """Zero-pad inner dims to multiples of `lane` (exact under Linear+ReLU) and
    cast weights to bf16 for the MXU; biases stay f32.  Call ONCE at init."""
    ws, bs = params[0::2], params[1::2]
    out = []
    n = len(ws)
    for li, (w, b) in enumerate(zip(ws, bs)):
        a, c = w.shape
        a_p = _round_up(a, lane)
        c_p = c if li == n - 1 else _round_up(c, lane)
        w_p = jnp.pad(w, ((0, a_p - a), (0, c_p - c))).astype(weight_dtype)
        b_p = jnp.pad(b, ((0, 0), (0, c_p - b.shape[-1]))).astype(jnp.float32)
        out += [w_p, b_p]
    return out


def _const_spec(a):
    # Constant index map: weight blocks are fetched once and kept resident.
    # (On v5e with very large row tiles, add pipeline_mode=pl.Buffered(1).)
    return pl.BlockSpec(a.shape, lambda i, _nd=a.ndim: (0,) * _nd)


def similarity_measure(pred, expl, pred_params_padded, expl_params_padded,
                       logit_scale, tile_rows=512):
    """pred: [N, P] f32, expl: [N, L, E] f32 -> similarity [N, L] f32.

    pred_params_padded / expl_params_padded must come from pad_mlp_params
    (padded + bf16-cast once at init).  tile_rows=512 is a good default on
    v6e/v7x; it is clamped to the padded problem size (e.g. 128 for the demo)
    and rounded to a multiple of lcm(128, 8*L).
    """
    N, P = pred.shape
    _, L, E = expl.shape
    embed = pred_params_padded[-2].shape[-1]
    p_pad = pred_params_padded[0].shape[0]
    e_pad = expl_params_padded[0].shape[0]

    rows = N * L
    # Multiple of 128 (lane-dense output) and of 8*L (whole, 8-row-aligned
    # pred groups per tile); clamp so tiny problems don't over-pad.
    unit = _lcm(128, 8 * L)
    tile_rows = max(unit, min((tile_rows // unit) * unit, _round_up(rows, unit)))
    rows_pad = _round_up(rows, tile_rows)
    n_tiles = rows_pad // tile_rows
    g = tile_rows // L                 # pred groups per tile (multiple of 8)
    n_groups_pad = rows_pad // L

    # bf16 input streams (matmul operands are bf16 either way; halves DMA bytes).
    expl_rows = jnp.pad(expl.reshape(rows, E).astype(jnp.bfloat16),
                        ((0, rows_pad - rows), (0, e_pad - E)))
    pred_rows = jnp.pad(pred.astype(jnp.bfloat16),
                        ((0, n_groups_pad - N), (0, p_pad - P)))
    # exp(logit_scale) precomputed once; delivered via SMEM (scalar path).
    scale = jnp.exp(logit_scale).astype(jnp.float32).reshape(1, 1)

    kernel = make_fused_kernel(len(pred_params_padded), L, embed)

    out = pl.pallas_call(
        kernel,
        out_shape=jax.ShapeDtypeStruct((1, rows_pad), jnp.float32),
        grid=(n_tiles,),
        in_specs=(
            [pl.BlockSpec(memory_space=pltpu.MemorySpace.SMEM),          # scale
             pl.BlockSpec((g, p_pad), lambda i: (i, 0)),                 # pred rows
             pl.BlockSpec((tile_rows, e_pad), lambda i: (i, 0))]         # expl rows
            + [_const_spec(a) for a in pred_params_padded]
            + [_const_spec(a) for a in expl_params_padded]),
        out_specs=pl.BlockSpec((1, tile_rows), lambda i: (0, i)),
        compiler_params=pltpu.CompilerParams(dimension_semantics=("parallel",)),
    )(scale, pred_rows, expl_rows, *pred_params_padded, *expl_params_padded)

    return out.reshape(rows_pad)[:rows].reshape(N, L)


# ---------------------------------------------------------------------------
# Deterministic parameter init + pure-JAX references
# ---------------------------------------------------------------------------
def init_mlp_params(key, in_dim, hidden=128, embed=512, bottleneck=64):
    dims = [(in_dim, hidden), (hidden, bottleneck), (bottleneck, hidden),
            (hidden, bottleneck), (bottleneck, hidden), (hidden, embed)]
    params = []
    keys = jax.random.split(key, 2 * len(dims))
    for idx, (a, b) in enumerate(dims):
        w = (jax.random.normal(keys[2 * idx], (a, b), jnp.float32)
             / jnp.sqrt(jnp.float32(a)))
        bias = 0.01 * jax.random.normal(keys[2 * idx + 1], (1, b), jnp.float32)
        params += [w, bias]
    return params  # [wi, bi, w1a, b1a, w2a, b2a, w1b, b1b, w2b, b2b, wo, bo]


def mlp_reference(x, params, compute_dtype=jnp.float32):
    ws, bs = params[0::2], params[1::2]
    h = x
    for li, (w, b) in enumerate(zip(ws, bs)):
        y = jnp.dot(h.astype(compute_dtype), w.astype(compute_dtype),
                    preferred_element_type=jnp.float32) + b.astype(jnp.float32)
        h = y if li == len(ws) - 1 else jnp.maximum(y, 0.0)
    return h


def _l2norm_ref(x):
    n = jnp.sqrt(jnp.sum(x * x, axis=-1, keepdims=True))
    return x / jnp.maximum(n, 1e-12)


def reference_forward(pred, expl, pred_params, expl_params, logit_scale,
                      compute_dtype=jnp.float32):
    pe = _l2norm_ref(mlp_reference(pred, pred_params, compute_dtype))   # (N, embed)
    ee = _l2norm_ref(mlp_reference(expl, expl_params, compute_dtype))   # (N, L, embed)
    return jnp.sum(ee * pe[:, None, :], axis=-1) * jnp.exp(logit_scale)


if __name__ == "__main__":
    N, L = 2, 8
    pred_hidden_size = 32
    explain_hidden_size = 48
    embed_size = 512

    root = jax.random.PRNGKey(0)
    k_pred_in, k_expl_in, k_pred_mlp, k_expl_mlp = jax.random.split(root, 4)

    pred_feature = jax.random.normal(k_pred_in, (N, pred_hidden_size), jnp.float32)
    explain_features = jax.random.normal(
        k_expl_in, (N, L, explain_hidden_size), jnp.float32)

    pred_params = init_mlp_params(k_pred_mlp, pred_hidden_size,
                                  hidden=128, embed=embed_size, bottleneck=64)
    expl_params = init_mlp_params(k_expl_mlp, explain_hidden_size,
                                  hidden=128, embed=embed_size, bottleneck=64)
    logit_scale = jnp.float32(1.0)   # nn.Parameter(torch.tensor(1.0))

    # Pad / bf16-cast the weights ONCE at init (hoisted out of the call path).
    pp = pad_mlp_params(pred_params)
    ep = pad_mlp_params(expl_params)

    sim_fn = jax.jit(lambda p, e, s: similarity_measure(p, e, pp, ep, s))
    sim = jax.block_until_ready(sim_fn(pred_feature, explain_features, logit_scale))
    assert sim.shape == (N, L), sim.shape

    # Tight check against a reference doing the same bf16-input / f32-accum math.
    ref_bf16 = jax.block_until_ready(
        reference_forward(pred_feature, explain_features, pred_params,
                          expl_params, logit_scale, compute_dtype=jnp.bfloat16))
    assert jnp.allclose(sim, ref_bf16, rtol=1e-2, atol=1e-2), (sim, ref_bf16)

    # Sanity check against the full-f32 (PyTorch-equivalent) forward:
    # only bf16 matmul quantization noise separates the two.
    ref_f32 = jax.block_until_ready(
        reference_forward(pred_feature, explain_features, pred_params,
                          expl_params, logit_scale, compute_dtype=jnp.float32))
    assert jnp.allclose(sim, ref_f32, rtol=1e-1, atol=1e-1), (sim, ref_f32)

    print("KERNEL_OK")
</pallas_src>

<mosaic_0001>
module attributes {stable_mosaic.version = 11 : i64} {
  func.func @kernel(%arg0: i32, %arg1: memref<1x1xf32, #tpu.memory_space<smem>>, %arg2: memref<16x128xbf16, #tpu.memory_space<vmem>>, %arg3: memref<128x128xbf16, #tpu.memory_space<vmem>>, %arg4: memref<128x128xbf16, #tpu.memory_space<vmem>>, %arg5: memref<1x128xf32, #tpu.memory_space<vmem>>, %arg6: memref<128x128xbf16, #tpu.memory_space<vmem>>, %arg7: memref<1x128xf32, #tpu.memory_space<vmem>>, %arg8: memref<128x128xbf16, #tpu.memory_space<vmem>>, %arg9: memref<1x128xf32, #tpu.memory_space<vmem>>, %arg10: memref<128x128xbf16, #tpu.memory_space<vmem>>, %arg11: memref<1x128xf32, #tpu.memory_space<vmem>>, %arg12: memref<128x128xbf16, #tpu.memory_space<vmem>>, %arg13: memref<1x128xf32, #tpu.memory_space<vmem>>, %arg14: memref<128x512xbf16, #tpu.memory_space<vmem>>, %arg15: memref<1x512xf32, #tpu.memory_space<vmem>>, %arg16: memref<128x128xbf16, #tpu.memory_space<vmem>>, %arg17: memref<1x128xf32, #tpu.memory_space<vmem>>, %arg18: memref<128x128xbf16, #tpu.memory_space<vmem>>, %arg19: memref<1x128xf32, #tpu.memory_space<vmem>>, %arg20: memref<128x128xbf16, #tpu.memory_space<vmem>>, %arg21: memref<1x128xf32, #tpu.memory_space<vmem>>, %arg22: memref<128x128xbf16, #tpu.memory_space<vmem>>, %arg23: memref<1x128xf32, #tpu.memory_space<vmem>>, %arg24: memref<128x128xbf16, #tpu.memory_space<vmem>>, %arg25: memref<1x128xf32, #tpu.memory_space<vmem>>, %arg26: memref<128x512xbf16, #tpu.memory_space<vmem>>, %arg27: memref<1x512xf32, #tpu.memory_space<vmem>>, %arg28: memref<1x128xf32, #tpu.memory_space<vmem>>) attributes {dimension_semantics = [#tpu.dimension_semantics<parallel>], iteration_bounds = array<i64: 1>, scalar_prefetch = 0 : i64, scratch_operands = 0 : i64, tpu.core_type = #tpu.core_type<tc>, window_params = [{transform_indices = @transform_0, window_bounds = array<i64: 1, 1>}, {transform_indices = @transform_1, window_bounds = array<i64: 16, 128>}, {transform_indices = @transform_2, window_bounds = array<i64: 128, 128>}, {pipeline_mode = #tpu.pipeline_mode<synchronous>, transform_indices = @transform_3, window_bounds = array<i64: 128, 128>}, {pipeline_mode = #tpu.pipeline_mode<synchronous>, transform_indices = @transform_4, window_bounds = array<i64: 1, 128>}, {pipeline_mode = #tpu.pipeline_mode<synchronous>, transform_indices = @transform_5, window_bounds = array<i64: 128, 128>}, {pipeline_mode = #tpu.pipeline_mode<synchronous>, transform_indices = @transform_6, window_bounds = array<i64: 1, 128>}, {pipeline_mode = #tpu.pipeline_mode<synchronous>, transform_indices = @transform_7, window_bounds = array<i64: 128, 128>}, {pipeline_mode = #tpu.pipeline_mode<synchronous>, transform_indices = @transform_8, window_bounds = array<i64: 1, 128>}, {pipeline_mode = #tpu.pipeline_mode<synchronous>, transform_indices = @transform_9, window_bounds = array<i64: 128, 128>}, {pipeline_mode = #tpu.pipeline_mode<synchronous>, transform_indices = @transform_10, window_bounds = array<i64: 1, 128>}, {pipeline_mode = #tpu.pipeline_mode<synchronous>, transform_indices = @transform_11, window_bounds = array<i64: 128, 128>}, {pipeline_mode = #tpu.pipeline_mode<synchronous>, transform_indices = @transform_12, window_bounds = array<i64: 1, 128>}, {pipeline_mode = #tpu.pipeline_mode<synchronous>, transform_indices = @transform_13, window_bounds = array<i64: 128, 512>}, {pipeline_mode = #tpu.pipeline_mode<synchronous>, transform_indices = @transform_14, window_bounds = array<i64: 1, 512>}, {pipeline_mode = #tpu.pipeline_mode<synchronous>, transform_indices = @transform_15, window_bounds = array<i64: 128, 128>}, {pipeline_mode = #tpu.pipeline_mode<synchronous>, transform_indices = @transform_16, window_bounds = array<i64: 1, 128>}, {pipeline_mode = #tpu.pipeline_mode<synchronous>, transform_indices = @transform_17, window_bounds = array<i64: 128, 128>}, {pipeline_mode = #tpu.pipeline_mode<synchronous>, transform_indices = @transform_18, window_bounds = array<i64: 1, 128>}, {pipeline_mode = #tpu.pipeline_mode<synchronous>, transform_indices = @transform_19, window_bounds = array<i64: 128, 128>}, {pipeline_mode = #tpu.pipeline_mode<synchronous>, transform_indices = @transform_20, window_bounds = array<i64: 1, 128>}, {pipeline_mode = #tpu.pipeline_mode<synchronous>, transform_indices = @transform_21, window_bounds = array<i64: 128, 128>}, {pipeline_mode = #tpu.pipeline_mode<synchronous>, transform_indices = @transform_22, window_bounds = array<i64: 1, 128>}, {pipeline_mode = #tpu.pipeline_mode<synchronous>, transform_indices = @transform_23, window_bounds = array<i64: 128, 128>}, {pipeline_mode = #tpu.pipeline_mode<synchronous>, transform_indices = @transform_24, window_bounds = array<i64: 1, 128>}, {pipeline_mode = #tpu.pipeline_mode<synchronous>, transform_indices = @transform_25, window_bounds = array<i64: 128, 512>}, {pipeline_mode = #tpu.pipeline_mode<synchronous>, transform_indices = @transform_26, window_bounds = array<i64: 1, 512>}, {transform_indices = @transform_27, window_bounds = array<i64: 1, 128>}]} {
    %c0 = arith.constant 0 : index
    %c0_0 = arith.constant 0 : index
    %0 = vector.load %arg2[%c0, %c0_0] : memref<16x128xbf16, #tpu.memory_space<vmem>>, vector<16x128xbf16>
    %c0_1 = arith.constant 0 : index
    %c0_2 = arith.constant 0 : index
    %1 = vector.load %arg4[%c0_1, %c0_2] : memref<128x128xbf16, #tpu.memory_space<vmem>>, vector<128x128xbf16>
    %c0_3 = arith.constant 0 : index
    %c0_4 = arith.constant 0 : index
    %2 = vector.load %arg5[%c0_3, %c0_4] : memref<1x128xf32, #tpu.memory_space<vmem>>, vector<1x128xf32>
    %cst = arith.constant dense<0.000000e+00> : vector<16x128xf32>
    %3 = tpu.matmul %0, %1, %cst {dimension_numbers = #tpu.dot_dimension_numbers<[1], [0], [0], [1], [0, 0, 1, 1], [], []>} : vector<16x128xbf16>, vector<128x128xbf16>, vector<16x128xf32> -> vector<16x128xf32>
    %4 = vector.broadcast %2 : vector<1x128xf32> to vector<16x128xf32>
    %5 = arith.addf %3, %4 : vector<16x128xf32>
    %cst_5 = arith.constant 0.000000e+00 : f32
    %6 = vector.broadcast %cst_5 : f32 to vector<16x128xf32>
    %7 = arith.maximumf %5, %6 : vector<16x128xf32>
    %c0_6 = arith.constant 0 : index
    %c0_7 = arith.constant 0 : index
    %8 = vector.load %arg6[%c0_6, %c0_7] : memref<128x128xbf16, #tpu.memory_space<vmem>>, vector<128x128xbf16>
    %c0_8 = arith.constant 0 : index
    %c0_9 = arith.constant 0 : index
    %9 = vector.load %arg7[%c0_8, %c0_9] : memref<1x128xf32, #tpu.memory_space<vmem>>, vector<1x128xf32>
    %10 = arith.truncf %7 : vector<16x128xf32> to vector<16x128xbf16>
    %cst_10 = arith.constant dense<0.000000e+00> : vector<16x128xf32>
    %11 = tpu.matmul %10, %8, %cst_10 {dimension_numbers = #tpu.dot_dimension_numbers<[1], [0], [0], [1], [0, 0, 1, 1], [], []>} : vector<16x128xbf16>, vector<128x128xbf16>, vector<16x128xf32> -> vector<16x128xf32>
    %12 = vector.broadcast %9 : vector<1x128xf32> to vector<16x128xf32>
    %13 = arith.addf %11, %12 : vector<16x128xf32>
    %cst_11 = arith.constant 0.000000e+00 : f32
    %14 = vector.broadcast %cst_11 : f32 to vector<16x128xf32>
    %15 = arith.maximumf %13, %14 : vector<16x128xf32>
    %c0_12 = arith.constant 0 : index
    %c0_13 = arith.constant 0 : index
    %16 = vector.load %arg8[%c0_12, %c0_13] : memref<128x128xbf16, #tpu.memory_space<vmem>>, vector<128x128xbf16>
    %c0_14 = arith.constant 0 : index
    %c0_15 = arith.constant 0 : index
    %17 = vector.load %arg9[%c0_14, %c0_15] : memref<1x128xf32, #tpu.memory_space<vmem>>, vector<1x128xf32>
    %18 = arith.truncf %15 : vector<16x128xf32> to vector<16x128xbf16>
    %cst_16 = arith.constant dense<0.000000e+00> : vector<16x128xf32>
    %19 = tpu.matmul %18, %16, %cst_16 {dimension_numbers = #tpu.dot_dimension_numbers<[1], [0], [0], [1], [0, 0, 1, 1], [], []>} : vector<16x128xbf16>, vector<128x128xbf16>, vector<16x128xf32> -> vector<16x128xf32>
    %20 = vector.broadcast %17 : vector<1x128xf32> to vector<16x128xf32>
    %21 = arith.addf %19, %20 : vector<16x128xf32>
    %cst_17 = arith.constant 0.000000e+00 : f32
    %22 = vector.broadcast %cst_17 : f32 to vector<16x128xf32>
    %23 = arith.maximumf %21, %22 : vector<16x128xf32>
    %c0_18 = arith.constant 0 : index
    %c0_19 = arith.constant 0 : index
    %24 = vector.load %arg10[%c0_18, %c0_19] : memref<128x128xbf16, #tpu.memory_space<vmem>>, vector<128x128xbf16>
    %c0_20 = arith.constant 0 : index
    %c0_21 = arith.constant 0 : index
    %25 = vector.load %arg11[%c0_20, %c0_21] : memref<1x128xf32, #tpu.memory_space<vmem>>, vector<1x128xf32>
    %26 = arith.truncf %23 : vector<16x128xf32> to vector<16x128xbf16>
    %cst_22 = arith.constant dense<0.000000e+00> : vector<16x128xf32>
    %27 = tpu.matmul %26, %24, %cst_22 {dimension_numbers = #tpu.dot_dimension_numbers<[1], [0], [0], [1], [0, 0, 1, 1], [], []>} : vector<16x128xbf16>, vector<128x128xbf16>, vector<16x128xf32> -> vector<16x128xf32>
    %28 = vector.broadcast %25 : vector<1x128xf32> to vector<16x128xf32>
    %29 = arith.addf %27, %28 : vector<16x128xf32>
    %cst_23 = arith.constant 0.000000e+00 : f32
    %30 = vector.broadcast %cst_23 : f32 to vector<16x128xf32>
    %31 = arith.maximumf %29, %30 : vector<16x128xf32>
    %c0_24 = arith.constant 0 : index
    %c0_25 = arith.constant 0 : index
    %32 = vector.load %arg12[%c0_24, %c0_25] : memref<128x128xbf16, #tpu.memory_space<vmem>>, vector<128x128xbf16>
    %c0_26 = arith.constant 0 : index
    %c0_27 = arith.constant 0 : index
    %33 = vector.load %arg13[%c0_26, %c0_27] : memref<1x128xf32, #tpu.memory_space<vmem>>, vector<1x128xf32>
    %34 = arith.truncf %31 : vector<16x128xf32> to vector<16x128xbf16>
    %cst_28 = arith.constant dense<0.000000e+00> : vector<16x128xf32>
    %35 = tpu.matmul %34, %32, %cst_28 {dimension_numbers = #tpu.dot_dimension_numbers<[1], [0], [0], [1], [0, 0, 1, 1], [], []>} : vector<16x128xbf16>, vector<128x128xbf16>, vector<16x128xf32> -> vector<16x128xf32>
    %36 = vector.broadcast %33 : vector<1x128xf32> to vector<16x128xf32>
    %37 = arith.addf %35, %36 : vector<16x128xf32>
    %cst_29 = arith.constant 0.000000e+00 : f32
    %38 = vector.broadcast %cst_29 : f32 to vector<16x128xf32>
    %39 = arith.maximumf %37, %38 : vector<16x128xf32>
    %c0_30 = arith.constant 0 : index
    %c0_31 = arith.constant 0 : index
    %40 = vector.load %arg14[%c0_30, %c0_31] : memref<128x512xbf16, #tpu.memory_space<vmem>>, vector<128x512xbf16>
    %c0_32 = arith.constant 0 : index
    %c0_33 = arith.constant 0 : index
    %41 = vector.load %arg15[%c0_32, %c0_33] : memref<1x512xf32, #tpu.memory_space<vmem>>, vector<1x512xf32>
    %42 = arith.truncf %39 : vector<16x128xf32> to vector<16x128xbf16>
    %cst_34 = arith.constant dense<0.000000e+00> : vector<16x512xf32>
    %43 = tpu.matmul %42, %40, %cst_34 {dimension_numbers = #tpu.dot_dimension_numbers<[1], [0], [0], [1], [0, 0, 1, 1], [], []>} : vector<16x128xbf16>, vector<128x512xbf16>, vector<16x512xf32> -> vector<16x512xf32>
    %44 = vector.broadcast %41 : vector<1x512xf32> to vector<16x512xf32>
    %45 = arith.addf %43, %44 : vector<16x512xf32>
    %46 = arith.mulf %45, %45 : vector<16x512xf32>
    %cst_35 = arith.constant dense<0.000000e+00> : vector<16xf32>
    %47 = vector.multi_reduction <add>, %46, %cst_35 [1] : vector<16x512xf32> to vector<16xf32>
    %48 = vector.shape_cast %47 : vector<16xf32> to vector<16x1xf32>
    %cst_36 = arith.constant 1.000000e-24 : f32
    %49 = vector.broadcast %cst_36 : f32 to vector<16x1xf32>
    %50 = arith.maximumf %48, %49 : vector<16x1xf32>
    %51 = math.rsqrt %50 : vector<16x1xf32>
    %52 = vector.broadcast %51 : vector<16x1xf32> to vector<16x512xf32>
    %53 = arith.mulf %45, %52 : vector<16x512xf32>
    %c0_37 = arith.constant 0 : index
    %c0_38 = arith.constant 0 : index
    %54 = vector.load %arg3[%c0_37, %c0_38] : memref<128x128xbf16, #tpu.memory_space<vmem>>, vector<128x128xbf16>
    %c0_39 = arith.constant 0 : index
    %c0_40 = arith.constant 0 : index
    %55 = vector.load %arg16[%c0_39, %c0_40] : memref<128x128xbf16, #tpu.memory_space<vmem>>, vector<128x128xbf16>
    %c0_41 = arith.constant 0 : index
    %c0_42 = arith.constant 0 : index
    %56 = vector.load %arg17[%c0_41, %c0_42] : memref<1x128xf32, #tpu.memory_space<vmem>>, vector<1x128xf32>
    %cst_43 = arith.constant dense<0.000000e+00> : vector<128x128xf32>
    %57 = tpu.matmul %54, %55, %cst_43 {dimension_numbers = #tpu.dot_dimension_numbers<[1], [0], [0], [1], [0, 0, 1, 1], [], []>} : vector<128x128xbf16>, vector<128x128xbf16>, vector<128x128xf32> -> vector<128x128xf32>
    %58 = vector.broadcast %56 : vector<1x128xf32> to vector<128x128xf32>
    %59 = arith.addf %57, %58 : vector<128x128xf32>
    %cst_44 = arith.constant 0.000000e+00 : f32
    %60 = vector.broadcast %cst_44 : f32 to vector<128x128xf32>
    %61 = arith.maximumf %59, %60 : vector<128x128xf32>
    %c0_45 = arith.constant 0 : index
    %c0_46 = arith.constant 0 : index
    %62 = vector.load %arg18[%c0_45, %c0_46] : memref<128x128xbf16, #tpu.memory_space<vmem>>, vector<128x128xbf16>
    %c0_47 = arith.constant 0 : index
    %c0_48 = arith.constant 0 : index
    %63 = vector.load %arg19[%c0_47, %c0_48] : memref<1x128xf32, #tpu.memory_space<vmem>>, vector<1x128xf32>
    %64 = arith.truncf %61 : vector<128x128xf32> to vector<128x128xbf16>
    %cst_49 = arith.constant dense<0.000000e+00> : vector<128x128xf32>
    %65 = tpu.matmul %64, %62, %cst_49 {dimension_numbers = #tpu.dot_dimension_numbers<[1], [0], [0], [1], [0, 0, 1, 1], [], []>} : vector<128x128xbf16>, vector<128x128xbf16>, vector<128x128xf32> -> vector<128x128xf32>
    %66 = vector.broadcast %63 : vector<1x128xf32> to vector<128x128xf32>
    %67 = arith.addf %65, %66 : vector<128x128xf32>
    %cst_50 = arith.constant 0.000000e+00 : f32
    %68 = vector.broadcast %cst_50 : f32 to vector<128x128xf32>
    %69 = arith.maximumf %67, %68 : vector<128x128xf32>
    %c0_51 = arith.constant 0 : index
    %c0_52 = arith.constant 0 : index
    %70 = vector.load %arg20[%c0_51, %c0_52] : memref<128x128xbf16, #tpu.memory_space<vmem>>, vector<128x128xbf16>
    %c0_53 = arith.constant 0 : index
    %c0_54 = arith.constant 0 : index
    %71 = vector.load %arg21[%c0_53, %c0_54] : memref<1x128xf32, #tpu.memory_space<vmem>>, vector<1x128xf32>
    %72 = arith.truncf %69 : vector<128x128xf32> to vector<128x128xbf16>
    %cst_55 = arith.constant dense<0.000000e+00> : vector<128x128xf32>
    %73 = tpu.matmul %72, %70, %cst_55 {dimension_numbers = #tpu.dot_dimension_numbers<[1], [0], [0], [1], [0, 0, 1, 1], [], []>} : vector<128x128xbf16>, vector<128x128xbf16>, vector<128x128xf32> -> vector<128x128xf32>
    %74 = vector.broadcast %71 : vector<1x128xf32> to vector<128x128xf32>
    %75 = arith.addf %73, %74 : vector<128x128xf32>
    %cst_56 = arith.constant 0.000000e+00 : f32
    %76 = vector.broadcast %cst_56 : f32 to vector<128x128xf32>
    %77 = arith.maximumf %75, %76 : vector<128x128xf32>
    %c0_57 = arith.constant 0 : index
    %c0_58 = arith.constant 0 : index
    %78 = vector.load %arg22[%c0_57, %c0_58] : memref<128x128xbf16, #tpu.memory_space<vmem>>, vector<128x128xbf16>
    %c0_59 = arith.constant 0 : index
    %c0_60 = arith.constant 0 : index
    %79 = vector.load %arg23[%c0_59, %c0_60] : memref<1x128xf32, #tpu.memory_space<vmem>>, vector<1x128xf32>
    %80 = arith.truncf %77 : vector<128x128xf32> to vector<128x128xbf16>
    %cst_61 = arith.constant dense<0.000000e+00> : vector<128x128xf32>
    %81 = tpu.matmul %80, %78, %cst_61 {dimension_numbers = #tpu.dot_dimension_numbers<[1], [0], [0], [1], [0, 0, 1, 1], [], []>} : vector<128x128xbf16>, vector<128x128xbf16>, vector<128x128xf32> -> vector<128x128xf32>
    %82 = vector.broadcast %79 : vector<1x128xf32> to vector<128x128xf32>
    %83 = arith.addf %81, %82 : vector<128x128xf32>
    %cst_62 = arith.constant 0.000000e+00 : f32
    %84 = vector.broadcast %cst_62 : f32 to vector<128x128xf32>
    %85 = arith.maximumf %83, %84 : vector<128x128xf32>
    %c0_63 = arith.constant 0 : index
    %c0_64 = arith.constant 0 : index
    %86 = vector.load %arg24[%c0_63, %c0_64] : memref<128x128xbf16, #tpu.memory_space<vmem>>, vector<128x128xbf16>
    %c0_65 = arith.constant 0 : index
    %c0_66 = arith.constant 0 : index
    %87 = vector.load %arg25[%c0_65, %c0_66] : memref<1x128xf32, #tpu.memory_space<vmem>>, vector<1x128xf32>
    %88 = arith.truncf %85 : vector<128x128xf32> to vector<128x128xbf16>
    %cst_67 = arith.constant dense<0.000000e+00> : vector<128x128xf32>
    %89 = tpu.matmul %88, %86, %cst_67 {dimension_numbers = #tpu.dot_dimension_numbers<[1], [0], [0], [1], [0, 0, 1, 1], [], []>} : vector<128x128xbf16>, vector<128x128xbf16>, vector<128x128xf32> -> vector<128x128xf32>
    %90 = vector.broadcast %87 : vector<1x128xf32> to vector<128x128xf32>
    %91 = arith.addf %89, %90 : vector<128x128xf32>
    %cst_68 = arith.constant 0.000000e+00 : f32
    %92 = vector.broadcast %cst_68 : f32 to vector<128x128xf32>
    %93 = arith.maximumf %91, %92 : vector<128x128xf32>
    %c0_69 = arith.constant 0 : index
    %c0_70 = arith.constant 0 : index
    %94 = vector.load %arg26[%c0_69, %c0_70] : memref<128x512xbf16, #tpu.memory_space<vmem>>, vector<128x512xbf16>
    %c0_71 = arith.constant 0 : index
    %c0_72 = arith.constant 0 : index
    %95 = vector.load %arg27[%c0_71, %c0_72] : memref<1x512xf32, #tpu.memory_space<vmem>>, vector<1x512xf32>
    %96 = arith.truncf %93 : vector<128x128xf32> to vector<128x128xbf16>
    %cst_73 = arith.constant dense<0.000000e+00> : vector<128x512xf32>
    %97 = tpu.matmul %96, %94, %cst_73 {dimension_numbers = #tpu.dot_dimension_numbers<[1], [0], [0], [1], [0, 0, 1, 1], [], []>} : vector<128x128xbf16>, vector<128x512xbf16>, vector<128x512xf32> -> vector<128x512xf32>
    %98 = vector.broadcast %95 : vector<1x512xf32> to vector<128x512xf32>
    %99 = arith.addf %97, %98 : vector<128x512xf32>
    %100 = arith.mulf %99, %99 : vector<128x512xf32>
    %cst_74 = arith.constant dense<0.000000e+00> : vector<128xf32>
    %101 = vector.multi_reduction <add>, %100, %cst_74 [1] : vector<128x512xf32> to vector<128xf32>
    %102 = vector.shape_cast %101 : vector<128xf32> to vector<128x1xf32>
    %cst_75 = arith.constant 1.000000e-24 : f32
    %103 = vector.broadcast %cst_75 : f32 to vector<128x1xf32>
    %104 = arith.maximumf %102, %103 : vector<128x1xf32>
    %105 = math.rsqrt %104 : vector<128x1xf32>
    %106 = vector.broadcast %105 : vector<128x1xf32> to vector<128x512xf32>
    %107 = arith.mulf %99, %106 : vector<128x512xf32>
    %108 = vector.shape_cast %107 : vector<128x512xf32> to vector<16x8x512xf32>
    %109 = vector.shape_cast %53 : vector<16x512xf32> to vector<16x1x512xf32>
    %110 = vector.broadcast %109 : vector<16x1x512xf32> to vector<16x8x512xf32>
    %111 = arith.mulf %108, %110 : vector<16x8x512xf32>
    %cst_76 = arith.constant dense<0.000000e+00> : vector<16x8xf32>
    %112 = vector.multi_reduction <add>, %111, %cst_76 [2] : vector<16x8x512xf32> to vector<16x8xf32>
    %113 = vector.shape_cast %112 : vector<16x8xf32> to vector<1x128xf32>
    %c0_77 = arith.constant 0 : index
    %c0_78 = arith.constant 0 : index
    %114 = memref.load %arg1[%c0_77, %c0_78] : memref<1x1xf32, #tpu.memory_space<smem>>
    %115 = vector.broadcast %114 : f32 to vector<1x128xf32>
    %116 = arith.mulf %113, %115 : vector<1x128xf32>
    %c0_79 = arith.constant 0 : index
    %c0_80 = arith.constant 0 : index
    %117 = vector.load %arg28[%c0_79, %c0_80] : memref<1x128xf32, #tpu.memory_space<vmem>>, vector<1x128xf32>
    tpu.vector_store %arg28[%c0_79, %c0_80], %116 {strides = array<i32>} : memref<1x128xf32, #tpu.memory_space<vmem>>, vector<1x128xf32>,
    return
  }
  func.func @transform_0(%arg0: i32) -> (i32, i32) {
    %c0_i32 = arith.constant 0 : i32
    %c0_i32_0 = arith.constant 0 : i32
    %c0_i32_1 = arith.constant 0 : i32
    return %c0_i32, %c0_i32_0 : i32, i32
  }
  func.func @transform_1(%arg0: i32) -> (i32, i32) {
    %c0_i32 = arith.constant 0 : i32
    %c0_i32_0 = arith.constant 0 : i32
    return %arg0, %c0_i32 : i32, i32
  }
  func.func @transform_2(%arg0: i32) -> (i32, i32) {
    %c0_i32 = arith.constant 0 : i32
    %c0_i32_0 = arith.constant 0 : i32
    return %arg0, %c0_i32 : i32, i32
  }
  func.func @transform_3(%arg0: i32) -> (i32, i32) {
    %c0_i32 = arith.constant 0 : i32
    %c0_i32_0 = arith.constant 0 : i32
    %c0_i32_1 = arith.constant 0 : i32
    return %c0_i32, %c0_i32_0 : i32, i32
  }
  func.func @transform_4(%arg0: i32) -> (i32, i32) {
    %c0_i32 = arith.constant 0 : i32
    %c0_i32_0 = arith.constant 0 : i32
    %c0_i32_1 = arith.constant 0 : i32
    return %c0_i32, %c0_i32_0 : i32, i32
  }
  func.func @transform_5(%arg0: i32) -> (i32, i32) {
    %c0_i32 = arith.constant 0 : i32
    %c0_i32_0 = arith.constant 0 : i32
    %c0_i32_1 = arith.constant 0 : i32
    return %c0_i32, %c0_i32_0 : i32, i32
  }
  func.func @transform_6(%arg0: i32) -> (i32, i32) {
    %c0_i32 = arith.constant 0 : i32
    %c0_i32_0 = arith.constant 0 : i32
    %c0_i32_1 = arith.constant 0 : i32
    return %c0_i32, %c0_i32_0 : i32, i32
  }
  func.func @transform_7(%arg0: i32) -> (i32, i32) {
    %c0_i32 = arith.constant 0 : i32
    %c0_i32_0 = arith.constant 0 : i32
    %c0_i32_1 = arith.constant 0 : i32
    return %c0_i32, %c0_i32_0 : i32, i32
  }
  func.func @transform_8(%arg0: i32) -> (i32, i32) {
    %c0_i32 = arith.constant 0 : i32
    %c0_i32_0 = arith.constant 0 : i32
    %c0_i32_1 = arith.constant 0 : i32
    return %c0_i32, %c0_i32_0 : i32, i32
  }
  func.func @transform_9(%arg0: i32) -> (i32, i32) {
    %c0_i32 = arith.constant 0 : i32
    %c0_i32_0 = arith.constant 0 : i32
    %c0_i32_1 = arith.constant 0 : i32
    return %c0_i32, %c0_i32_0 : i32, i32
  }
  func.func @transform_10(%arg0: i32) -> (i32, i32) {
    %c0_i32 = arith.constant 0 : i32
    %c0_i32_0 = arith.constant 0 : i32
    %c0_i32_1 = arith.constant 0 : i32
    return %c0_i32, %c0_i32_0 : i32, i32
  }
  func.func @transform_11(%arg0: i32) -> (i32, i32) {
    %c0_i32 = arith.constant 0 : i32
    %c0_i32_0 = arith.constant 0 : i32
    %c0_i32_1 = arith.constant 0 : i32
    return %c0_i32, %c0_i32_0 : i32, i32
  }
  func.func @transform_12(%arg0: i32) -> (i32, i32) {
    %c0_i32 = arith.constant 0 : i32
    %c0_i32_0 = arith.constant 0 : i32
    %c0_i32_1 = arith.constant 0 : i32
    return %c0_i32, %c0_i32_0 : i32, i32
  }
  func.func @transform_13(%arg0: i32) -> (i32, i32) {
    %c0_i32 = arith.constant 0 : i32
    %c0_i32_0 = arith.constant 0 : i32
    %c0_i32_1 = arith.constant 0 : i32
    return %c0_i32, %c0_i32_0 : i32, i32
  }
  func.func @transform_14(%arg0: i32) -> (i32, i32) {
    %c0_i32 = arith.constant 0 : i32
    %c0_i32_0 = arith.constant 0 : i32
    %c0_i32_1 = arith.constant 0 : i32
    return %c0_i32, %c0_i32_0 : i32, i32
  }
  func.func @transform_15(%arg0: i32) -> (i32, i32) {
    %c0_i32 = arith.constant 0 : i32
    %c0_i32_0 = arith.constant 0 : i32
    %c0_i32_1 = arith.constant 0 : i32
    return %c0_i32, %c0_i32_0 : i32, i32
  }
  func.func @transform_16(%arg0: i32) -> (i32, i32) {
    %c0_i32 = arith.constant 0 : i32
    %c0_i32_0 = arith.constant 0 : i32
    %c0_i32_1 = arith.constant 0 : i32
    return %c0_i32, %c0_i32_0 : i32, i32
  }
  func.func @transform_17(%arg0: i32) -> (i32, i32) {
    %c0_i32 = arith.constant 0 : i32
    %c0_i32_0 = arith.constant 0 : i32
    %c0_i32_1 = arith.constant 0 : i32
    return %c0_i32, %c0_i32_0 : i32, i32
  }
  func.func @transform_18(%arg0: i32) -> (i32, i32) {
    %c0_i32 = arith.constant 0 : i32
    %c0_i32_0 = arith.constant 0 : i32
    %c0_i32_1 = arith.constant 0 : i32
    return %c0_i32, %c0_i32_0 : i32, i32
  }
  func.func @transform_19(%arg0: i32) -> (i32, i32) {
    %c0_i32 = arith.constant 0 : i32
    %c0_i32_0 = arith.constant 0 : i32
    %c0_i32_1 = arith.constant 0 : i32
    return %c0_i32, %c0_i32_0 : i32, i32
  }
  func.func @transform_20(%arg0: i32) -> (i32, i32) {
    %c0_i32 = arith.constant 0 : i32
    %c0_i32_0 = arith.constant 0 : i32
    %c0_i32_1 = arith.constant 0 : i32
    return %c0_i32, %c0_i32_0 : i32, i32
  }
  func.func @transform_21(%arg0: i32) -> (i32, i32) {
    %c0_i32 = arith.constant 0 : i32
    %c0_i32_0 = arith.constant 0 : i32
    %c0_i32_1 = arith.constant 0 : i32
    return %c0_i32, %c0_i32_0 : i32, i32
  }
  func.func @transform_22(%arg0: i32) -> (i32, i32) {
    %c0_i32 = arith.constant 0 : i32
    %c0_i32_0 = arith.constant 0 : i32
    %c0_i32_1 = arith.constant 0 : i32
    return %c0_i32, %c0_i32_0 : i32, i32
  }
  func.func @transform_23(%arg0: i32) -> (i32, i32) {
    %c0_i32 = arith.constant 0 : i32
    %c0_i32_0 = arith.constant 0 : i32
    %c0_i32_1 = arith.constant 0 : i32
    return %c0_i32, %c0_i32_0 : i32, i32
  }
  func.func @transform_24(%arg0: i32) -> (i32, i32) {
    %c0_i32 = arith.constant 0 : i32
    %c0_i32_0 = arith.constant 0 : i32
    %c0_i32_1 = arith.constant 0 : i32
    return %c0_i32, %c0_i32_0 : i32, i32
  }
  func.func @transform_25(%arg0: i32) -> (i32, i32) {
    %c0_i32 = arith.constant 0 : i32
    %c0_i32_0 = arith.constant 0 : i32
    %c0_i32_1 = arith.constant 0 : i32
    return %c0_i32, %c0_i32_0 : i32, i32
  }
  func.func @transform_26(%arg0: i32) -> (i32, i32) {
    %c0_i32 = arith.constant 0 : i32
    %c0_i32_0 = arith.constant 0 : i32
    %c0_i32_1 = arith.constant 0 : i32
    return %c0_i32, %c0_i32_0 : i32, i32
  }
  func.func @transform_27(%arg0: i32) -> (i32, i32) {
    %c0_i32 = arith.constant 0 : i32
    %c0_i32_0 = arith.constant 0 : i32
    return %c0_i32, %arg0 : i32, i32
  }
}

</mosaic_0001>

<llo_original>
// kernel: _lambda_.1
$region0: #{_lambda_.1}
  #allocation0 [shape = 'u32[]', space=smem, size = 0x4, offset = 0x4, fixed_abs, tag = 'smem constant byte address 0x4 - core index']
  #allocation1 [shape = 'u32[144,128]{1,0:T(1,128)}', space=vmem, size = 0x12000, scoped, tag = 'internal scratch']
  #allocation2 [shape = 'f32[1,1]{1,0:T(1,128)S(6)}', space=smem, size = 0x200, scoped, tag = 'scoped memory for _lambda_.1']
  %s0 = inlined_call_operand.<no memory space> [shape: f32[1,1], index: 0, kind: input, shape index: {}]
  %s1 = inlined_call_operand.vmem [shape: bf16[16,128], index: 1, kind: input, shape index: {}]
  %s2 = inlined_call_operand.vmem [shape: bf16[128,128], index: 2, kind: input, shape index: {}]
  %s3 = inlined_call_operand.vmem [shape: bf16[128,128], index: 3, kind: input, shape index: {}]
  %s4 = inlined_call_operand.vmem [shape: f32[1,128], index: 4, kind: input, shape index: {}]
  %s5 = inlined_call_operand.vmem [shape: bf16[128,128], index: 5, kind: input, shape index: {}]
  %s6 = inlined_call_operand.vmem [shape: f32[1,128], index: 6, kind: input, shape index: {}]
  %s7 = inlined_call_operand.vmem [shape: bf16[128,128], index: 7, kind: input, shape index: {}]
  %s8 = inlined_call_operand.vmem [shape: f32[1,128], index: 8, kind: input, shape index: {}]
  %s9 = inlined_call_operand.vmem [shape: bf16[128,128], index: 9, kind: input, shape index: {}]
  %s10 = inlined_call_operand.vmem [shape: f32[1,128], index: 10, kind: input, shape index: {}]
  %s11 = inlined_call_operand.vmem [shape: bf16[128,128], index: 11, kind: input, shape index: {}]
  %s12 = inlined_call_operand.vmem [shape: f32[1,128], index: 12, kind: input, shape index: {}]
  %s13 = inlined_call_operand.vmem [shape: bf16[128,512], index: 13, kind: input, shape index: {}]
  %s14 = inlined_call_operand.vmem [shape: f32[1,512], index: 14, kind: input, shape index: {}]
  %s15 = inlined_call_operand.vmem [shape: bf16[128,128], index: 15, kind: input, shape index: {}]
  %s16 = inlined_call_operand.vmem [shape: f32[1,128], index: 16, kind: input, shape index: {}]
  %s17 = inlined_call_operand.vmem [shape: bf16[128,128], index: 17, kind: input, shape index: {}]
  %s18 = inlined_call_operand.vmem [shape: f32[1,128], index: 18, kind: input, shape index: {}]
  %s19 = inlined_call_operand.vmem [shape: bf16[128,128], index: 19, kind: input, shape index: {}]
  %s20 = inlined_call_operand.vmem [shape: f32[1,128], index: 20, kind: input, shape index: {}]
  %s21 = inlined_call_operand.vmem [shape: bf16[128,128], index: 21, kind: input, shape index: {}]
  %s22 = inlined_call_operand.vmem [shape: f32[1,128], index: 22, kind: input, shape index: {}]
  %s23 = inlined_call_operand.vmem [shape: bf16[128,128], index: 23, kind: input, shape index: {}]
  %s24 = inlined_call_operand.vmem [shape: f32[1,128], index: 24, kind: input, shape index: {}]
  %s25 = inlined_call_operand.vmem [shape: bf16[128,512], index: 25, kind: input, shape index: {}]
  %s26 = inlined_call_operand.vmem [shape: f32[1,512], index: 26, kind: input, shape index: {}]
  %s27 = inlined_call_operand.vmem [shape: f32[1,128], index: 27, kind: output, shape index: {}]
  %s28 = sld [smem:[#allocation0]]
  $region118: #{_lambda_.1} parent=0
    _
  %s30 = ssub.s32 1, %s28
  %s31 = scalar_select 0, %s30, %s28
  %32 = sst [smem:[#allocation2]] %s0
  // Predicated region
  $region2: #{_lambda_.1} parent=0 // pred_check
    _
  $region3: #{_lambda_.1} parent=0 // pred_check_branch
    %34 = sbr.rel (0) target = $region5
  $region4: #{_lambda_.1} parent=0 // pred_region
    _
  $region5: #{_lambda_.1} parent=0 // pred_fallthru
    _
  // Predicated region
  $region6: #{_lambda_.1} parent=0 // pred_check
    _
  $region7: #{_lambda_.1} parent=0 // pred_check_branch
    %36 = sbr.rel (0) target = $region9
  $region8: #{_lambda_.1} parent=0 // pred_region
    _
  $region9: #{_lambda_.1} parent=0 // pred_fallthru
    _
  // Predicated region
  $region10: #{_lambda_.1} parent=0 // pred_check
    _
  $region11: #{_lambda_.1} parent=0 // pred_check_branch
    %38 = sbr.rel (0) target = $region13
  $region12: #{_lambda_.1} parent=0 // pred_region
    _
  $region13: #{_lambda_.1} parent=0 // pred_fallthru
    _
  // Predicated region
  $region14: #{_lambda_.1} parent=0 // pred_check
    _
  $region15: #{_lambda_.1} parent=0 // pred_check_branch
    %40 = sbr.rel (0) target = $region17
  $region16: #{_lambda_.1} parent=0 // pred_region
    _
  $region17: #{_lambda_.1} parent=0 // pred_fallthru
    _
  // Predicated region
  $region18: #{_lambda_.1} parent=0 // pred_check
    _
  $region19: #{_lambda_.1} parent=0 // pred_check_branch
    %42 = sbr.rel (0) target = $region21
  $region20: #{_lambda_.1} parent=0 // pred_region
    _
  $region21: #{_lambda_.1} parent=0 // pred_fallthru
    _
  // Predicated region
  $region22: #{_lambda_.1} parent=0 // pred_check
    _
  $region23: #{_lambda_.1} parent=0 // pred_check_branch
    %44 = sbr.rel (0) target = $region25
  $region24: #{_lambda_.1} parent=0 // pred_region
    _
  $region25: #{_lambda_.1} parent=0 // pred_fallthru
    _
  // Predicated region
  $region26: #{_lambda_.1} parent=0 // pred_check
    _
  $region27: #{_lambda_.1} parent=0 // pred_check_branch
    %46 = sbr.rel (0) target = $region29
  $region28: #{_lambda_.1} parent=0 // pred_region
    _
  $region29: #{_lambda_.1} parent=0 // pred_fallthru
    _
  // Predicated region
  $region30: #{_lambda_.1} parent=0 // pred_check
    _
  $region31: #{_lambda_.1} parent=0 // pred_check_branch
    %48 = sbr.rel (0) target = $region33
  $region32: #{_lambda_.1} parent=0 // pred_region
    _
  $region33: #{_lambda_.1} parent=0 // pred_fallthru
    _
  // Predicated region
  $region34: #{_lambda_.1} parent=0 // pred_check
    _
  $region35: #{_lambda_.1} parent=0 // pred_check_branch
    %50 = sbr.rel (0) target = $region37
  $region36: #{_lambda_.1} parent=0 // pred_region
    _
  $region37: #{_lambda_.1} parent=0 // pred_fallthru
    _
  // Predicated region
  $region38: #{_lambda_.1} parent=0 // pred_check
    _
  $region39: #{_lambda_.1} parent=0 // pred_check_branch
    %52 = sbr.rel (0) target = $region41
  $region40: #{_lambda_.1} parent=0 // pred_region
    _
  $region41: #{_lambda_.1} parent=0 // pred_fallthru
    _
  // Predicated region
  $region42: #{_lambda_.1} parent=0 // pred_check
    _
  $region43: #{_lambda_.1} parent=0 // pred_check_branch
    %54 = sbr.rel (0) target = $region45
  $region44: #{_lambda_.1} parent=0 // pred_region
    _
  $region45: #{_lambda_.1} parent=0 // pred_fallthru
    _
  // Predicated region
  $region46: #{_lambda_.1} parent=0 // pred_check
    _
  $region47: #{_lambda_.1} parent=0 // pred_check_branch
    %56 = sbr.rel (0) target = $region49
  $region48: #{_lambda_.1} parent=0 // pred_region
    _
  $region49: #{_lambda_.1} parent=0 // pred_fallthru
    _
  // Predicated region
  $region50: #{_lambda_.1} parent=0 // pred_check
    _
  $region51: #{_lambda_.1} parent=0 // pred_check_branch
    %58 = sbr.rel (0) target = $region53
  $region52: #{_lambda_.1} parent=0 // pred_region
    _
  $region53: #{_lambda_.1} parent=0 // pred_fallthru
    _
  // Predicated region
  $region54: #{_lambda_.1} parent=0 // pred_check
    _
  $region55: #{_lambda_.1} parent=0 // pred_check_branch
    %60 = sbr.rel (0) target = $region57
  $region56: #{_lambda_.1} parent=0 // pred_region
    _
  $region57: #{_lambda_.1} parent=0 // pred_fallthru
    _
  // Predicated region
  $region58: #{_lambda_.1} parent=0 // pred_check
    _
  $region59: #{_lambda_.1} parent=0 // pred_check_branch
    %62 = sbr.rel (0) target = $region61
  $region60: #{_lambda_.1} parent=0 // pred_region
    _
  $region61: #{_lambda_.1} parent=0 // pred_fallthru
    _
  // Predicated region
  $region62: #{_lambda_.1} parent=0 // pred_check
    _
  $region63: #{_lambda_.1} parent=0 // pred_check_branch
    %64 = sbr.rel (0) target = $region65
  $region64: #{_lambda_.1} parent=0 // pred_region
    _
  $region65: #{_lambda_.1} parent=0 // pred_fallthru
    _
  // Predicated region
  $region66: #{_lambda_.1} parent=0 // pred_check
    _
  $region67: #{_lambda_.1} parent=0 // pred_check_branch
    %66 = sbr.rel (0) target = $region69
  $region68: #{_lambda_.1} parent=0 // pred_region
    _
  $region69: #{_lambda_.1} parent=0 // pred_fallthru
    _
  // Predicated region
  $region70: #{_lambda_.1} parent=0 // pred_check
    _
  $region71: #{_lambda_.1} parent=0 // pred_check_branch
    %68 = sbr.rel (0) target = $region73
  $region72: #{_lambda_.1} parent=0 // pred_region
    _
  $region73: #{_lambda_.1} parent=0 // pred_fallthru
    _
  // Predicated region
  $region74: #{_lambda_.1} parent=0 // pred_check
    _
  $region75: #{_lambda_.1} parent=0 // pred_check_branch
    %70 = sbr.rel (0) target = $region77
  $region76: #{_lambda_.1} parent=0 // pred_region
    _
  $region77: #{_lambda_.1} parent=0 // pred_fallthru
    _
  // Predicated region
  $region78: #{_lambda_.1} parent=0 // pred_check
    _
  $region79: #{_lambda_.1} parent=0 // pred_check_branch
    %72 = sbr.rel (0) target = $region81
  $region80: #{_lambda_.1} parent=0 // pred_region
    _
  $region81: #{_lambda_.1} parent=0 // pred_fallthru
    _
  // Predicated region
  $region82: #{_lambda_.1} parent=0 // pred_check
    _
  $region83: #{_lambda_.1} parent=0 // pred_check_branch
    %74 = sbr.rel (0) target = $region85
  $region84: #{_lambda_.1} parent=0 // pred_region
    _
  $region85: #{_lambda_.1} parent=0 // pred_fallthru
    _
  // Predicated region
  $region86: #{_lambda_.1} parent=0 // pred_check
    _
  $region87: #{_lambda_.1} parent=0 // pred_check_branch
    %76 = sbr.rel (0) target = $region89
  $region88: #{_lambda_.1} parent=0 // pred_region
    _
  $region89: #{_lambda_.1} parent=0 // pred_fallthru
    _
  // Predicated region
  $region90: #{_lambda_.1} parent=0 // pred_check
    _
  $region91: #{_lambda_.1} parent=0 // pred_check_branch
    %78 = sbr.rel (0) target = $region93
  $region92: #{_lambda_.1} parent=0 // pred_region
    _
  $region93: #{_lambda_.1} parent=0 // pred_fallthru
    _
  // Predicated region
  $region94: #{_lambda_.1} parent=0 // pred_check
    _
  $region95: #{_lambda_.1} parent=0 // pred_check_branch
    %80 = sbr.rel (0) target = $region97
  $region96: #{_lambda_.1} parent=0 // pred_region
    _
  $region97: #{_lambda_.1} parent=0 // pred_fallthru
    _
  // Predicated region
  $region98: #{_lambda_.1} parent=0 // pred_check
    _
  $region99: #{_lambda_.1} parent=0 // pred_check_branch
    %82 = sbr.rel (0) target = $region101
  $region100: #{_lambda_.1} parent=0 // pred_region
    _
  $region101: #{_lambda_.1} parent=0 // pred_fallthru
    _
  // Predicated region
  $region102: #{_lambda_.1} parent=0 // pred_check
    _
  $region103: #{_lambda_.1} parent=0 // pred_check_branch
    %84 = sbr.rel (0) target = $region105
  $region104: #{_lambda_.1} parent=0 // pred_region
    _
  $region105: #{_lambda_.1} parent=0 // pred_fallthru
    _
  // Predicated region
  $region106: #{_lambda_.1} parent=0 // pred_check
    _
  $region107: #{_lambda_.1} parent=0 // pred_check_branch
    %86 = sbr.rel (0) target = $region109
  $region108: #{_lambda_.1} parent=0 // pred_region
    _
  $region109: #{_lambda_.1} parent=0 // pred_fallthru
    _
  %v88 = vld [vmem:[%s1] sm:$0xf]
  %v89 = vld [vmem:[%s1 + $0x4] sm:$0xf]
  %v90 = vld [vmem:[%s3] sm:$0xf]
  %v91 = vld [vmem:[%s3 + $0x4] sm:$0xf]
  %v92 = vld [vmem:[%s3 + $0x8] sm:$0xf]
  %v93 = vld [vmem:[%s3 + $0xc] sm:$0xf]
  %v94 = vld [vmem:[%s3 + $0x10] sm:$0xf]
  %v95 = vld [vmem:[%s3 + $0x14] sm:$0xf]
  %v96 = vld [vmem:[%s3 + $0x18] sm:$0xf]
  %v97 = vld [vmem:[%s3 + $0x1c] sm:$0xf]
  %v98 = vld [vmem:[%s3 + $0x20] sm:$0xf]
  %v99 = vld [vmem:[%s3 + $0x24] sm:$0xf]
  %v100 = vld [vmem:[%s3 + $0x28] sm:$0xf]
  %v101 = vld [vmem:[%s3 + $0x2c] sm:$0xf]
  %v102 = vld [vmem:[%s3 + $0x30] sm:$0xf]
  %v103 = vld [vmem:[%s3 + $0x34] sm:$0xf]
  %v104 = vld [vmem:[%s3 + $0x38] sm:$0xf]
  %v105 = vld [vmem:[%s3 + $0x3c] sm:$0xf]
  %v106 = vld [vmem:[%s4] sm:$0x1]
  %v108 = vlaneseq
  %v109 = vshrl.u32 %v108, 7
  %v110 = vsub.s32 0, %v109
  %v111 = vrot.slane %v106, %v110
  %v115 = vunpack.c.l.b16 %v88
  %v116 = vunpack.c.l.b16 %v89
  %v117 = vpack.c.b16 %v116, %v115
  %v135 = vunpack.c.l.b16 %v90
  %v136 = vunpack.c.l.b16 %v91
  %v137 = vunpack.c.l.b16 %v92
  %v138 = vunpack.c.l.b16 %v93
  %v139 = vunpack.c.l.b16 %v94
  %v140 = vunpack.c.l.b16 %v95
  %v141 = vunpack.c.l.b16 %v96
  %v142 = vunpack.c.l.b16 %v97
  %v143 = vunpack.c.l.b16 %v98
  %v144 = vunpack.c.l.b16 %v99
  %v145 = vunpack.c.l.b16 %v100
  %v146 = vunpack.c.l.b16 %v101
  %v147 = vunpack.c.l.b16 %v102
  %v148 = vunpack.c.l.b16 %v103
  %v149 = vunpack.c.l.b16 %v104
  %v150 = vunpack.c.l.b16 %v105
  %v151 = vpack.c.b16 %v136, %v135
  %v152 = vpack.c.b16 %v138, %v137
  %v153 = vpack.c.b16 %v140, %v139
  %v154 = vpack.c.b16 %v142, %v141
  %v155 = vpack.c.b16 %v144, %v143
  %v156 = vpack.c.b16 %v146, %v145
  %v157 = vpack.c.b16 %v148, %v147
  %v158 = vpack.c.b16 %v150, %v149
  %167 = vmatprep.subr.bf16.mxu0 0
  %168 = vmatpush1.bf16.msra.mxu0 %v151
  %169 = vmatprep.subr.bf16.mxu0 0
  %170 = vmatpush1.bf16.msra.mxu0 %v152
  %171 = vmatprep.subr.bf16.mxu0 0
  %172 = vmatpush1.bf16.msra.mxu0 %v153
  %173 = vmatprep.subr.bf16.mxu0 0
  %174 = vmatpush1.bf16.msra.mxu0 %v154
  %175 = vmatprep.subr.bf16.mxu0 0
  %176 = vmatpush1.bf16.msra.mxu0 %v155
  %177 = vmatprep.subr.bf16.mxu0 0
  %178 = vmatpush1.bf16.msra.mxu0 %v156
  %179 = vmatprep.subr.bf16.mxu0 0
  %180 = vmatpush1.bf16.msra.mxu0 %v157
  %181 = vmatprep.subr.bf16.mxu0 0
  %182 = vmatpush1.bf16.msra.mxu0 %v158
  %183 = vmatprep.subr.bf16.mxu0 0
  %184 = vmatpush1.bf16.msra.mxu0 0
  %185 = vmatprep.subr.bf16.mxu0 0
  %186 = vmatpush1.bf16.msra.mxu0 0
  %187 = vmatprep.subr.bf16.mxu0 0
  %188 = vmatpush1.bf16.msra.mxu0 0
  %189 = vmatprep.subr.bf16.mxu0 0
  %190 = vmatpush1.bf16.msra.mxu0 0
  %191 = vmatprep.subr.bf16.mxu0 0
  %192 = vmatpush1.bf16.msra.mxu0 0
  %193 = vmatprep.subr.bf16.mxu0 0
  %194 = vmatpush1.bf16.msra.mxu0 0
  %195 = vmatprep.subr.bf16.mxu0 0
  %196 = vmatpush1.bf16.msra.mxu0 0
  %197 = vmatprep.subr.bf16.mxu0 0
  %198 = vmatpush1.bf16.msra.mxu0 0
  %199 = vmatprep.mubr.bf16.mxu0 0
  %200 = vmatmul.mubr.bf16.gmra.mrb[0].mxu0 %v117
  %v201 = vpop.f32.mrb[0].mxu0
  %v202 = vadd.f32 %v111, %v201
  %v203 = vpop.f32.mrb[0].mxu0
  %v204 = vpop.f32.mrb[0].mxu0
  %v205 = vadd.f32 %v111, %v204
  %v206 = vpop.f32.mrb[0].mxu0
  %207 = vdwg.mxu0
  %v208 = vmax.f32 %v202, 0.0
  %v209 = vmax.f32 %v205, 0.0
  %v210 = vld [vmem:[%s5] sm:$0xf]
  %v211 = vld [vmem:[%s5 + $0x4] sm:$0xf]
  %v212 = vld [vmem:[%s5 + $0x8] sm:$0xf]
  %v213 = vld [vmem:[%s5 + $0xc] sm:$0xf]
  %v214 = vld [vmem:[%s5 + $0x10] sm:$0xf]
  %v215 = vld [vmem:[%s5 + $0x14] sm:$0xf]
  %v216 = vld [vmem:[%s5 + $0x18] sm:$0xf]
  %v217 = vld [vmem:[%s5 + $0x1c] sm:$0xf]
  %v218 = vld [vmem:[%s5 + $0x20] sm:$0xf]
  %v219 = vld [vmem:[%s5 + $0x24] sm:$0xf]
  %v220 = vld [vmem:[%s5 + $0x28] sm:$0xf]
  %v221 = vld [vmem:[%s5 + $0x2c] sm:$0xf]
  %v222 = vld [vmem:[%s5 + $0x30] sm:$0xf]
  %v223 = vld [vmem:[%s5 + $0x34] sm:$0xf]
  %v224 = vld [vmem:[%s5 + $0x38] sm:$0xf]
  %v225 = vld [vmem:[%s5 + $0x3c] sm:$0xf]
  %v226 = vld [vmem:[%s6] sm:$0x1]
  %v227 = vpack.c.bf16 %v209, %v208
  %v229 = vlaneseq
  %v230 = vshrl.u32 %v229, 7
  %v231 = vsub.s32 0, %v230
  %v232 = vrot.slane %v226, %v231
  %v250 = vunpack.c.l.b16 %v210
  %v251 = vunpack.c.l.b16 %v211
  %v252 = vunpack.c.l.b16 %v212
  %v253 = vunpack.c.l.b16 %v213
  %v254 = vunpack.c.l.b16 %v214
  %v255 = vunpack.c.l.b16 %v215
  %v256 = vunpack.c.l.b16 %v216
  %v257 = vunpack.c.l.b16 %v217
  %v258 = vunpack.c.l.b16 %v218
  %v259 = vunpack.c.l.b16 %v219
  %v260 = vunpack.c.l.b16 %v220
  %v261 = vunpack.c.l.b16 %v221
  %v262 = vunpack.c.l.b16 %v222
  %v263 = vunpack.c.l.b16 %v223
  %v264 = vunpack.c.l.b16 %v224
  %v265 = vunpack.c.l.b16 %v225
  %v266 = vpack.c.b16 %v251, %v250
  %v267 = vpack.c.b16 %v253, %v252
  %v268 = vpack.c.b16 %v255, %v254
  %v269 = vpack.c.b16 %v257, %v256
  %v270 = vpack.c.b16 %v259, %v258
  %v271 = vpack.c.b16 %v261, %v260
  %v272 = vpack.c.b16 %v263, %v262
  %v273 = vpack.c.b16 %v265, %v264
  %282 = vmatprep.subr.bf16.mxu0 0
  %283 = vmatpush1.bf16.msra.mxu0 %v266
  %284 = vmatprep.subr.bf16.mxu0 0
  %285 = vmatpush1.bf16.msra.mxu0 %v267
  %286 = vmatprep.subr.bf16.mxu0 0
  %287 = vmatpush1.bf16.msra.mxu0 %v268
  %288 = vmatprep.subr.bf16.mxu0 0
  %289 = vmatpush1.bf16.msra.mxu0 %v269
  %290 = vmatprep.subr.bf16.mxu0 0
  %291 = vmatpush1.bf16.msra.mxu0 %v270
  %292 = vmatprep.subr.bf16.mxu0 0
  %293 = vmatpush1.bf16.msra.mxu0 %v271
  %294 = vmatprep.subr.bf16.mxu0 0
  %295 = vmatpush1.bf16.msra.mxu0 %v272
  %296 = vmatprep.subr.bf16.mxu0 0
  %297 = vmatpush1.bf16.msra.mxu0 %v273
  %298 = vmatprep.subr.bf16.mxu0 0
  %299 = vmatpush1.bf16.msra.mxu0 0
  %300 = vmatprep.subr.bf16.mxu0 0
  %301 = vmatpush1.bf16.msra.mxu0 0
  %302 = vmatprep.subr.bf16.mxu0 0
  %303 = vmatpush1.bf16.msra.mxu0 0
  %304 = vmatprep.subr.bf16.mxu0 0
  %305 = vmatpush1.bf16.msra.mxu0 0
  %306 = vmatprep.subr.bf16.mxu0 0
  %307 = vmatpush1.bf16.msra.mxu0 0
  %308 = vmatprep.subr.bf16.mxu0 0
  %309 = vmatpush1.bf16.msra.mxu0 0
  %310 = vmatprep.subr.bf16.mxu0 0
  %311 = vmatpush1.bf16.msra.mxu0 0
  %312 = vmatprep.subr.bf16.mxu0 0
  %313 = vmatpush1.bf16.msra.mxu0 0
  %314 = vmatprep.mubr.bf16.mxu0 0
  %315 = vmatmul.mubr.bf16.gmra.mrb[0].mxu0 %v227
  %v316 = vpop.f32.mrb[0].mxu0
  %v317 = vadd.f32 %v232, %v316
  %v318 = vpop.f32.mrb[0].mxu0
  %v319 = vpop.f32.mrb[0].mxu0
  %v320 = vadd.f32 %v232, %v319
  %v321 = vpop.f32.mrb[0].mxu0
  %322 = vdwg.mxu0
  %v323 = vmax.f32 %v317, 0.0
  %v324 = vmax.f32 %v320, 0.0
  %v325 = vld [vmem:[%s7] sm:$0xf]
  %v326 = vld [vmem:[%s7 + $0x4] sm:$0xf]
  %v327 = vld [vmem:[%s7 + $0x8] sm:$0xf]
  %v328 = vld [vmem:[%s7 + $0xc] sm:$0xf]
  %v329 = vld [vmem:[%s7 + $0x10] sm:$0xf]
  %v330 = vld [vmem:[%s7 + $0x14] sm:$0xf]
  %v331 = vld [vmem:[%s7 + $0x18] sm:$0xf]
  %v332 = vld [vmem:[%s7 + $0x1c] sm:$0xf]
  %v333 = vld [vmem:[%s7 + $0x20] sm:$0xf]
  %v334 = vld [vmem:[%s7 + $0x24] sm:$0xf]
  %v335 = vld [vmem:[%s7 + $0x28] sm:$0xf]
  %v336 = vld [vmem:[%s7 + $0x2c] sm:$0xf]
  %v337 = vld [vmem:[%s7 + $0x30] sm:$0xf]
  %v338 = vld [vmem:[%s7 + $0x34] sm:$0xf]
  %v339 = vld [vmem:[%s7 + $0x38] sm:$0xf]
  %v340 = vld [vmem:[%s7 + $0x3c] sm:$0xf]
  %v341 = vld [vmem:[%s8] sm:$0x1]
  %v342 = vpack.c.bf16 %v324, %v323
  %v344 = vlaneseq
  %v345 = vshrl.u32 %v344, 7
  %v346 = vsub.s32 0, %v345
  %v347 = vrot.slane %v341, %v346
  %v365 = vunpack.c.l.b16 %v325
  %v366 = vunpack.c.l.b16 %v326
  %v367 = vunpack.c.l.b16 %v327
  %v368 = vunpack.c.l.b16 %v328
  %v369 = vunpack.c.l.b16 %v329
  %v370 = vunpack.c.l.b16 %v330
  %v371 = vunpack.c.l.b16 %v331
  %v372 = vunpack.c.l.b16 %v332
  %v373 = vunpack.c.l.b16 %v333
  %v374 = vunpack.c.l.b16 %v334
  %v375 = vunpack.c.l.b16 %v335
  %v376 = vunpack.c.l.b16 %v336
  %v377 = vunpack.c.l.b16 %v337
  %v378 = vunpack.c.l.b16 %v338
  %v379 = vunpack.c.l.b16 %v339
  %v380 = vunpack.c.l.b16 %v340
  %v381 = vpack.c.b16 %v366, %v365
  %v382 = vpack.c.b16 %v368, %v367
  %v383 = vpack.c.b16 %v370, %v369
  %v384 = vpack.c.b16 %v372, %v371
  %v385 = vpack.c.b16 %v374, %v373
  %v386 = vpack.c.b16 %v376, %v375
  %v387 = vpack.c.b16 %v378, %v377
  %v388 = vpack.c.b16 %v380, %v379
  %397 = vmatprep.subr.bf16.mxu0 0
  %398 = vmatpush1.bf16.msra.mxu0 %v381
  %399 = vmatprep.subr.bf16.mxu0 0
  %400 = vmatpush1.bf16.msra.mxu0 %v382
  %401 = vmatprep.subr.bf16.mxu0 0
  %402 = vmatpush1.bf16.msra.mxu0 %v383
  %403 = vmatprep.subr.bf16.mxu0 0
  %404 = vmatpush1.bf16.msra.mxu0 %v384
  %405 = vmatprep.subr.bf16.mxu0 0
  %406 = vmatpush1.bf16.msra.mxu0 %v385
  %407 = vmatprep.subr.bf16.mxu0 0
  %408 = vmatpush1.bf16.msra.mxu0 %v386
  %409 = vmatprep.subr.bf16.mxu0 0
  %410 = vmatpush1.bf16.msra.mxu0 %v387
  %411 = vmatprep.subr.bf16.mxu0 0
  %412 = vmatpush1.bf16.msra.mxu0 %v388
  %413 = vmatprep.subr.bf16.mxu0 0
  %414 = vmatpush1.bf16.msra.mxu0 0
  %415 = vmatprep.subr.bf16.mxu0 0
  %416 = vmatpush1.bf16.msra.mxu0 0
  %417 = vmatprep.subr.bf16.mxu0 0
  %418 = vmatpush1.bf16.msra.mxu0 0
  %419 = vmatprep.subr.bf16.mxu0 0
  %420 = vmatpush1.bf16.msra.mxu0 0
  %421 = vmatprep.subr.bf16.mxu0 0
  %422 = vmatpush1.bf16.msra.mxu0 0
  %423 = vmatprep.subr.bf16.mxu0 0
  %424 = vmatpush1.bf16.msra.mxu0 0
  %425 = vmatprep.subr.bf16.mxu0 0
  %426 = vmatpush1.bf16.msra.mxu0 0
  %427 = vmatprep.subr.bf16.mxu0 0
  %428 = vmatpush1.bf16.msra.mxu0 0
  %429 = vmatprep.mubr.bf16.mxu0 0
  %430 = vmatmul.mubr.bf16.gmra.mrb[0].mxu0 %v342
  %v431 = vpop.f32.mrb[0].mxu0
  %v432 = vadd.f32 %v347, %v431
  %v433 = vpop.f32.mrb[0].mxu0
  %v434 = vpop.f32.mrb[0].mxu0
  %v435 = vadd.f32 %v347, %v434
  %v436 = vpop.f32.mrb[0].mxu0
  %437 = vdwg.mxu0
  %v438 = vmax.f32 %v432, 0.0
  %v439 = vmax.f32 %v435, 0.0
  %v440 = vld [vmem:[%s9] sm:$0xf]
  %v441 = vld [vmem:[%s9 + $0x4] sm:$0xf]
  %v442 = vld [vmem:[%s9 + $0x8] sm:$0xf]
  %v443 = vld [vmem:[%s9 + $0xc] sm:$0xf]
  %v444 = vld [vmem:[%s9 + $0x10] sm:$0xf]
  %v445 = vld [vmem:[%s9 + $0x14] sm:$0xf]
  %v446 = vld [vmem:[%s9 + $0x18] sm:$0xf]
  %v447 = vld [vmem:[%s9 + $0x1c] sm:$0xf]
  %v448 = vld [vmem:[%s9 + $0x20] sm:$0xf]
  %v449 = vld [vmem:[%s9 + $0x24] sm:$0xf]
  %v450 = vld [vmem:[%s9 + $0x28] sm:$0xf]
  %v451 = vld [vmem:[%s9 + $0x2c] sm:$0xf]
  %v452 = vld [vmem:[%s9 + $0x30] sm:$0xf]
  %v453 = vld [vmem:[%s9 + $0x34] sm:$0xf]
  %v454 = vld [vmem:[%s9 + $0x38] sm:$0xf]
  %v455 = vld [vmem:[%s9 + $0x3c] sm:$0xf]
  %v456 = vld [vmem:[%s10] sm:$0x1]
  %v457 = vpack.c.bf16 %v439, %v438
  %v459 = vlaneseq
  %v460 = vshrl.u32 %v459, 7
  %v461 = vsub.s32 0, %v460
  %v462 = vrot.slane %v456, %v461
  %v480 = vunpack.c.l.b16 %v440
  %v481 = vunpack.c.l.b16 %v441
  %v482 = vunpack.c.l.b16 %v442
  %v483 = vunpack.c.l.b16 %v443
  %v484 = vunpack.c.l.b16 %v444
  %v485 = vunpack.c.l.b16 %v445
  %v486 = vunpack.c.l.b16 %v446
  %v487 = vunpack.c.l.b16 %v447
  %v488 = vunpack.c.l.b16 %v448
  %v489 = vunpack.c.l.b16 %v449
  %v490 = vunpack.c.l.b16 %v450
  %v491 = vunpack.c.l.b16 %v451
  %v492 = vunpack.c.l.b16 %v452
  %v493 = vunpack.c.l.b16 %v453
  %v494 = vunpack.c.l.b16 %v454
  %v495 = vunpack.c.l.b16 %v455
  %v496 = vpack.c.b16 %v481, %v480
  %v497 = vpack.c.b16 %v483, %v482
  %v498 = vpack.c.b16 %v485, %v484
  %v499 = vpack.c.b16 %v487, %v486
  %v500 = vpack.c.b16 %v489, %v488
  %v501 = vpack.c.b16 %v491, %v490
  %v502 = vpack.c.b16 %v493, %v492
  %v503 = vpack.c.b16 %v495, %v494
  %512 = vmatprep.subr.bf16.mxu0 0
  %513 = vmatpush1.bf16.msra.mxu0 %v496
  %514 = vmatprep.subr.bf16.mxu0 0
  %515 = vmatpush1.bf16.msra.mxu0 %v497
  %516 = vmatprep.subr.bf16.mxu0 0
  %517 = vmatpush1.bf16.msra.mxu0 %v498
  %518 = vmatprep.subr.bf16.mxu0 0
  %519 = vmatpush1.bf16.msra.mxu0 %v499
  %520 = vmatprep.subr.bf16.mxu0 0
  %521 = vmatpush1.bf16.msra.mxu0 %v500
  %522 = vmatprep.subr.bf16.mxu0 0
  %523 = vmatpush1.bf16.msra.mxu0 %v501
  %524 = vmatprep.subr.bf16.mxu0 0
  %525 = vmatpush1.bf16.msra.mxu0 %v502
  %526 = vmatprep.subr.bf16.mxu0 0
  %527 = vmatpush1.bf16.msra.mxu0 %v503
  %528 = vmatprep.subr.bf16.mxu0 0
  %529 = vmatpush1.bf16.msra.mxu0 0
  %530 = vmatprep.subr.bf16.mxu0 0
  %531 = vmatpush1.bf16.msra.mxu0 0
  %532 = vmatprep.subr.bf16.mxu0 0
  %533 = vmatpush1.bf16.msra.mxu0 0
  %534 = vmatprep.subr.bf16.mxu0 0
  %535 = vmatpush1.bf16.msra.mxu0 0
  %536 = vmatprep.subr.bf16.mxu0 0
  %537 = vmatpush1.bf16.msra.mxu0 0
  %538 = vmatprep.subr.bf16.mxu0 0
  %539 = vmatpush1.bf16.msra.mxu0 0
  %540 = vmatprep.subr.bf16.mxu0 0
  %541 = vmatpush1.bf16.msra.mxu0 0
  %542 = vmatprep.subr.bf16.mxu0 0
  %543 = vmatpush1.bf16.msra.mxu0 0
  %544 = vmatprep.mubr.bf16.mxu0 0
  %545 = vmatmul.mubr.bf16.gmra.mrb[0].mxu0 %v457
  %v546 = vpop.f32.mrb[0].mxu0
  %v547 = vadd.f32 %v462, %v546
  %v548 = vpop.f32.mrb[0].mxu0
  %v549 = vpop.f32.mrb[0].mxu0
  %v550 = vadd.f32 %v462, %v549
  %v551 = vpop.f32.mrb[0].mxu0
  %552 = vdwg.mxu0
  %v553 = vmax.f32 %v547, 0.0
  %v554 = vmax.f32 %v550, 0.0
  %v555 = vld [vmem:[%s11] sm:$0xf]
  %v556 = vld [vmem:[%s11 + $0x4] sm:$0xf]
  %v557 = vld [vmem:[%s11 + $0x8] sm:$0xf]
  %v558 = vld [vmem:[%s11 + $0xc] sm:$0xf]
  %v559 = vld [vmem:[%s11 + $0x10] sm:$0xf]
  %v560 = vld [vmem:[%s11 + $0x14] sm:$0xf]
  %v561 = vld [vmem:[%s11 + $0x18] sm:$0xf]
  %v562 = vld [vmem:[%s11 + $0x1c] sm:$0xf]
  %v563 = vld [vmem:[%s11 + $0x20] sm:$0xf]
  %v564 = vld [vmem:[%s11 + $0x24] sm:$0xf]
  %v565 = vld [vmem:[%s11 + $0x28] sm:$0xf]
  %v566 = vld [vmem:[%s11 + $0x2c] sm:$0xf]
  %v567 = vld [vmem:[%s11 + $0x30] sm:$0xf]
  %v568 = vld [vmem:[%s11 + $0x34] sm:$0xf]
  %v569 = vld [vmem:[%s11 + $0x38] sm:$0xf]
  %v570 = vld [vmem:[%s11 + $0x3c] sm:$0xf]
  %v571 = vld [vmem:[%s12] sm:$0x1]
  %v572 = vpack.c.bf16 %v554, %v553
  %v574 = vlaneseq
  %v575 = vshrl.u32 %v574, 7
  %v576 = vsub.s32 0, %v575
  %v577 = vrot.slane %v571, %v576
  %v595 = vunpack.c.l.b16 %v555
  %v596 = vunpack.c.l.b16 %v556
  %v597 = vunpack.c.l.b16 %v557
  %v598 = vunpack.c.l.b16 %v558
  %v599 = vunpack.c.l.b16 %v559
  %v600 = vunpack.c.l.b16 %v560
  %v601 = vunpack.c.l.b16 %v561
  %v602 = vunpack.c.l.b16 %v562
  %v603 = vunpack.c.l.b16 %v563
  %v604 = vunpack.c.l.b16 %v564
  %v605 = vunpack.c.l.b16 %v565
  %v606 = vunpack.c.l.b16 %v566
  %v607 = vunpack.c.l.b16 %v567
  %v608 = vunpack.c.l.b16 %v568
  %v609 = vunpack.c.l.b16 %v569
  %v610 = vunpack.c.l.b16 %v570
  %v611 = vpack.c.b16 %v596, %v595
  %v612 = vpack.c.b16 %v598, %v597
  %v613 = vpack.c.b16 %v600, %v599
  %v614 = vpack.c.b16 %v602, %v601
  %v615 = vpack.c.b16 %v604, %v603
  %v616 = vpack.c.b16 %v606, %v605
  %v617 = vpack.c.b16 %v608, %v607
  %v618 = vpack.c.b16 %v610, %v609
  %627 = vmatprep.subr.bf16.mxu0 0
  %628 = vmatpush1.bf16.msra.mxu0 %v611
  %629 = vmatprep.subr.bf16.mxu0 0
  %630 = vmatpush1.bf16.msra.mxu0 %v612
  %631 = vmatprep.subr.bf16.mxu0 0
  %632 = vmatpush1.bf16.msra.mxu0 %v613
  %633 = vmatprep.subr.bf16.mxu0 0
  %634 = vmatpush1.bf16.msra.mxu0 %v614
  %635 = vmatprep.subr.bf16.mxu0 0
  %636 = vmatpush1.bf16.msra.mxu0 %v615
  %637 = vmatprep.subr.bf16.mxu0 0
  %638 = vmatpush1.bf16.msra.mxu0 %v616
  %639 = vmatprep.subr.bf16.mxu0 0
  %640 = vmatpush1.bf16.msra.mxu0 %v617
  %641 = vmatprep.subr.bf16.mxu0 0
  %642 = vmatpush1.bf16.msra.mxu0 %v618
  %643 = vmatprep.subr.bf16.mxu0 0
  %644 = vmatpush1.bf16.msra.mxu0 0
  %645 = vmatprep.subr.bf16.mxu0 0
  %646 = vmatpush1.bf16.msra.mxu0 0
  %647 = vmatprep.subr.bf16.mxu0 0
  %648 = vmatpush1.bf16.msra.mxu0 0
  %649 = vmatprep.subr.bf16.mxu0 0
  %650 = vmatpush1.bf16.msra.mxu0 0
  %651 = vmatprep.subr.bf16.mxu0 0
  %652 = vmatpush1.bf16.msra.mxu0 0
  %653 = vmatprep.subr.bf16.mxu0 0
  %654 = vmatpush1.bf16.msra.mxu0 0
  %655 = vmatprep.subr.bf16.mxu0 0
  %656 = vmatpush1.bf16.msra.mxu0 0
  %657 = vmatprep.subr.bf16.mxu0 0
  %658 = vmatpush1.bf16.msra.mxu0 0
  %659 = vmatprep.mubr.bf16.mxu0 0
  %660 = vmatmul.mubr.bf16.gmra.mrb[0].mxu0 %v572
  %v661 = vpop.f32.mrb[0].mxu0
  %v662 = vadd.f32 %v577, %v661
  %v663 = vpop.f32.mrb[0].mxu0
  %v664 = vpop.f32.mrb[0].mxu0
  %v665 = vadd.f32 %v577, %v664
  %v666 = vpop.f32.mrb[0].mxu0
  %667 = vdwg.mxu0
  %v668 = vmax.f32 %v662, 0.0
  %v669 = vmax.f32 %v665, 0.0
  %v670 = vld [vmem:[%s13] sm:$0xff]
  %v671 = vld [vmem:[%s13 + $0x8] sm:$0xff]
  %v672 = vld [vmem:[%s13 + $0x10] sm:$0xff]
  %v673 = vld [vmem:[%s13 + $0x18] sm:$0xff]
  %v674 = vld [vmem:[%s13 + $0x20] sm:$0xff]
  %v675 = vld [vmem:[%s13 + $0x28] sm:$0xff]
  %v676 = vld [vmem:[%s13 + $0x30] sm:$0xff]
  %v677 = vld [vmem:[%s13 + $0x38] sm:$0xff]
  %v678 = vld [vmem:[%s13 + $0x40] sm:$0xff]
  %v679 = vld [vmem:[%s13 + $0x48] sm:$0xff]
  %v680 = vld [vmem:[%s13 + $0x50] sm:$0xff]
  %v681 = vld [vmem:[%s13 + $0x58] sm:$0xff]
  %v682 = vld [vmem:[%s13 + $0x60] sm:$0xff]
  %v683 = vld [vmem:[%s13 + $0x68] sm:$0xff]
  %v684 = vld [vmem:[%s13 + $0x70] sm:$0xff]
  %v685 = vld [vmem:[%s13 + $0x78] sm:$0xff]
  %v686 = vld [vmem:[%s13 + $0x80] sm:$0xff]
  %v687 = vld [vmem:[%s13 + $0x88] sm:$0xff]
  %v688 = vld [vmem:[%s13 + $0x90] sm:$0xff]
  %v689 = vld [vmem:[%s13 + $0x98] sm:$0xff]
  %v690 = vld [vmem:[%s13 + $0xa0] sm:$0xff]
  %v691 = vld [vmem:[%s13 + $0xa8] sm:$0xff]
  %v692 = vld [vmem:[%s13 + $0xb0] sm:$0xff]
  %v693 = vld [vmem:[%s13 + $0xb8] sm:$0xff]
  %v694 = vld [vmem:[%s13 + $0xc0] sm:$0xff]
  %v695 = vld [vmem:[%s13 + $0xc8] sm:$0xff]
  %v696 = vld [vmem:[%s13 + $0xd0] sm:$0xff]
  %v697 = vld [vmem:[%s13 + $0xd8] sm:$0xff]
  %v698 = vld [vmem:[%s13 + $0xe0] sm:$0xff]
  %v699 = vld [vmem:[%s13 + $0xe8] sm:$0xff]
  %v700 = vld [vmem:[%s13 + $0xf0] sm:$0xff]
  %v701 = vld [vmem:[%s13 + $0xf8] sm:$0xff]
  %v702 = vld [vmem:[%s14] sm:$0xf]
  %v703 = vpack.c.bf16 %v669, %v668
  %v705 = vlaneseq
  %v706 = vshrl.u32 %v705, 7
  %v707 = vsub.s32 0, %v706
  %v708 = vrot.slane %v702, %v707
  %v709 = vlaneseq
  %v710 = vshrl.u32 %v709, 7
  %v711 = vsub.s32 1, %v710
  %v712 = vrot.slane %v702, %v711
  %v713 = vlaneseq
  %v714 = vshrl.u32 %v713, 7
  %v715 = vsub.s32 2, %v714
  %v716 = vrot.slane %v702, %v715
  %v717 = vlaneseq
  %v718 = vshrl.u32 %v717, 7
  %v719 = vsub.s32 3, %v718
  %v720 = vrot.slane %v702, %v719
  %v757 = vunpack.c.l.b16 %v670
  %v758 = vunpack.c.h.b16 %v670
  %v759 = vunpack.c.l.b16 %v671
  %v760 = vunpack.c.h.b16 %v671
  %v761 = vunpack.c.l.b16 %v672
  %v762 = vunpack.c.h.b16 %v672
  %v763 = vunpack.c.l.b16 %v673
  %v764 = vunpack.c.h.b16 %v673
  %v765 = vunpack.c.l.b16 %v674
  %v766 = vunpack.c.h.b16 %v674
  %v767 = vunpack.c.l.b16 %v675
  %v768 = vunpack.c.h.b16 %v675
  %v769 = vunpack.c.l.b16 %v676
  %v770 = vunpack.c.h.b16 %v676
  %v771 = vunpack.c.l.b16 %v677
  %v772 = vunpack.c.h.b16 %v677
  %v773 = vunpack.c.l.b16 %v678
  %v774 = vunpack.c.h.b16 %v678
  %v775 = vunpack.c.l.b16 %v679
  %v776 = vunpack.c.h.b16 %v679
  %v777 = vunpack.c.l.b16 %v680
  %v778 = vunpack.c.h.b16 %v680
  %v779 = vunpack.c.l.b16 %v681
  %v780 = vunpack.c.h.b16 %v681
  %v781 = vunpack.c.l.b16 %v682
  %v782 = vunpack.c.h.b16 %v682
  %v783 = vunpack.c.l.b16 %v683
  %v784 = vunpack.c.h.b16 %v683
  %v785 = vunpack.c.l.b16 %v684
  %v786 = vunpack.c.h.b16 %v684
  %v787 = vunpack.c.l.b16 %v685
  %v788 = vunpack.c.h.b16 %v685
  %v789 = vunpack.c.l.b16 %v686
  %v790 = vunpack.c.h.b16 %v686
  %v791 = vunpack.c.l.b16 %v687
  %v792 = vunpack.c.h.b16 %v687
  %v793 = vunpack.c.l.b16 %v688
  %v794 = vunpack.c.h.b16 %v688
  %v795 = vunpack.c.l.b16 %v689
  %v796 = vunpack.c.h.b16 %v689
  %v797 = vunpack.c.l.b16 %v690
  %v798 = vunpack.c.h.b16 %v690
  %v799 = vunpack.c.l.b16 %v691
  %v800 = vunpack.c.h.b16 %v691
  %v801 = vunpack.c.l.b16 %v692
  %v802 = vunpack.c.h.b16 %v692
  %v803 = vunpack.c.l.b16 %v693
  %v804 = vunpack.c.h.b16 %v693
  %v805 = vunpack.c.l.b16 %v694
  %v806 = vunpack.c.h.b16 %v694
  %v807 = vunpack.c.l.b16 %v695
  %v808 = vunpack.c.h.b16 %v695
  %v809 = vunpack.c.l.b16 %v696
  %v810 = vunpack.c.h.b16 %v696
  %v811 = vunpack.c.l.b16 %v697
  %v812 = vunpack.c.h.b16 %v697
  %v813 = vunpack.c.l.b16 %v698
  %v814 = vunpack.c.h.b16 %v698
  %v815 = vunpack.c.l.b16 %v699
  %v816 = vunpack.c.h.b16 %v699
  %v817 = vunpack.c.l.b16 %v700
  %v818 = vunpack.c.h.b16 %v700
  %v819 = vunpack.c.l.b16 %v701
  %v820 = vunpack.c.h.b16 %v701
  %v821 = vpack.c.b16 %v761, %v757
  %v822 = vpack.c.b16 %v762, %v758
  %v823 = vpack.c.b16 %v763, %v759
  %v824 = vpack.c.b16 %v764, %v760
  %v825 = vpack.c.b16 %v769, %v765
  %v826 = vpack.c.b16 %v770, %v766
  %v827 = vpack.c.b16 %v771, %v767
  %v828 = vpack.c.b16 %v772, %v768
  %v829 = vpack.c.b16 %v777, %v773
  %v830 = vpack.c.b16 %v778, %v774
  %v831 = vpack.c.b16 %v779, %v775
  %v832 = vpack.c.b16 %v780, %v776
  %v833 = vpack.c.b16 %v785, %v781
  %v834 = vpack.c.b16 %v786, %v782
  %v835 = vpack.c.b16 %v787, %v783
  %v836 = vpack.c.b16 %v788, %v784
  %v837 = vpack.c.b16 %v793, %v789
  %v838 = vpack.c.b16 %v794, %v790
  %v839 = vpack.c.b16 %v795, %v791
  %v840 = vpack.c.b16 %v796, %v792
  %v841 = vpack.c.b16 %v801, %v797
  %v842 = vpack.c.b16 %v802, %v798
  %v843 = vpack.c.b16 %v803, %v799
  %v844 = vpack.c.b16 %v804, %v800
  %v845 = vpack.c.b16 %v809, %v805
  %v846 = vpack.c.b16 %v810, %v806
  %v847 = vpack.c.b16 %v811, %v807
  %v848 = vpack.c.b16 %v812, %v808
  %v849 = vpack.c.b16 %v817, %v813
  %v850 = vpack.c.b16 %v818, %v814
  %v851 = vpack.c.b16 %v819, %v815
  %v852 = vpack.c.b16 %v820, %v816
  %885 = vmatprep.subr.bf16.mxu0 %v822
  %886 = vmatpush1.bf16.msra.mxu0 %v821
  %887 = vmatprep.subr.bf16.mxu0 %v826
  %888 = vmatpush1.bf16.msra.mxu0 %v825
  %889 = vmatprep.subr.bf16.mxu0 %v830
  %890 = vmatpush1.bf16.msra.mxu0 %v829
  %891 = vmatprep.subr.bf16.mxu0 %v834
  %892 = vmatpush1.bf16.msra.mxu0 %v833
  %893 = vmatprep.subr.bf16.mxu0 %v838
  %894 = vmatpush1.bf16.msra.mxu0 %v837
  %895 = vmatprep.subr.bf16.mxu0 %v842
  %896 = vmatpush1.bf16.msra.mxu0 %v841
  %897 = vmatprep.subr.bf16.mxu0 %v846
  %898 = vmatpush1.bf16.msra.mxu0 %v845
  %899 = vmatprep.subr.bf16.mxu0 %v850
  %900 = vmatpush1.bf16.msra.mxu0 %v849
  %901 = vmatprep.subr.bf16.mxu0 0
  %902 = vmatpush1.bf16.msra.mxu0 0
  %903 = vmatprep.subr.bf16.mxu0 0
  %904 = vmatpush1.bf16.msra.mxu0 0
  %905 = vmatprep.subr.bf16.mxu0 0
  %906 = vmatpush1.bf16.msra.mxu0 0
  %907 = vmatprep.subr.bf16.mxu0 0
  %908 = vmatpush1.bf16.msra.mxu0 0
  %909 = vmatprep.subr.bf16.mxu0 0
  %910 = vmatpush1.bf16.msra.mxu0 0
  %911 = vmatprep.subr.bf16.mxu0 0
  %912 = vmatpush1.bf16.msra.mxu0 0
  %913 = vmatprep.subr.bf16.mxu0 0
  %914 = vmatpush1.bf16.msra.mxu0 0
  %915 = vmatprep.subr.bf16.mxu0 0
  %916 = vmatpush1.bf16.msra.mxu0 0
  %917 = vmatprep.mubr.bf16.mxu0 0
  %918 = vmatmul.mubr.bf16.gmra.mrb[0].mxu0 %v703
  %v919 = vpop.f32.mrb[0].mxu0
  %v920 = vadd.f32 %v708, %v919
  %v921 = vpop.f32.mrb[0].mxu0
  %v922 = vadd.f32 %v712, %v921
  %v923 = vpop.f32.mrb[0].mxu0
  %v924 = vadd.f32 %v708, %v923
  %v925 = vpop.f32.mrb[0].mxu0
  %v926 = vadd.f32 %v712, %v925
  %927 = vdwg.mxu0
  %928 = vmatprep.subr.bf16.mxu0 %v824
  %929 = vmatpush1.bf16.msra.mxu0 %v823
  %930 = vmatprep.subr.bf16.mxu0 %v828
  %931 = vmatpush1.bf16.msra.mxu0 %v827
  %932 = vmatprep.subr.bf16.mxu0 %v832
  %933 = vmatpush1.bf16.msra.mxu0 %v831
  %934 = vmatprep.subr.bf16.mxu0 %v836
  %935 = vmatpush1.bf16.msra.mxu0 %v835
  %936 = vmatprep.subr.bf16.mxu0 %v840
  %937 = vmatpush1.bf16.msra.mxu0 %v839
  %938 = vmatprep.subr.bf16.mxu0 %v844
  %939 = vmatpush1.bf16.msra.mxu0 %v843
  %940 = vmatprep.subr.bf16.mxu0 %v848
  %941 = vmatpush1.bf16.msra.mxu0 %v847
  %942 = vmatprep.subr.bf16.mxu0 %v852
  %943 = vmatpush1.bf16.msra.mxu0 %v851
  %944 = vmatprep.subr.bf16.mxu0 0
  %945 = vmatpush1.bf16.msra.mxu0 0
  %946 = vmatprep.subr.bf16.mxu0 0
  %947 = vmatpush1.bf16.msra.mxu0 0
  %948 = vmatprep.subr.bf16.mxu0 0
  %949 = vmatpush1.bf16.msra.mxu0 0
  %950 = vmatprep.subr.bf16.mxu0 0
  %951 = vmatpush1.bf16.msra.mxu0 0
  %952 = vmatprep.subr.bf16.mxu0 0
  %953 = vmatpush1.bf16.msra.mxu0 0
  %954 = vmatprep.subr.bf16.mxu0 0
  %955 = vmatpush1.bf16.msra.mxu0 0
  %956 = vmatprep.subr.bf16.mxu0 0
  %957 = vmatpush1.bf16.msra.mxu0 0
  %958 = vmatprep.subr.bf16.mxu0 0
  %959 = vmatpush1.bf16.msra.mxu0 0
  %960 = vmatprep.mubr.bf16.mxu0 0
  %961 = vmatmul.mubr.bf16.gmra.mrb[0].mxu0 %v703
  %v962 = vpop.f32.mrb[0].mxu0
  %v963 = vadd.f32 %v716, %v962
  %v964 = vpop.f32.mrb[0].mxu0
  %v965 = vadd.f32 %v720, %v964
  %v966 = vpop.f32.mrb[0].mxu0
  %v967 = vadd.f32 %v716, %v966
  %v968 = vpop.f32.mrb[0].mxu0
  %v969 = vadd.f32 %v720, %v968
  %970 = vdwg.mxu0
  %v971 = vmul.f32 %v920, %v920
  %v972 = vmul.f32 %v922, %v922
  %v973 = vmul.f32 %v963, %v963
  %v974 = vmul.f32 %v965, %v965
  %v975 = vmul.f32 %v924, %v924
  %v976 = vmul.f32 %v926, %v926
  %v977 = vmul.f32 %v967, %v967
  %v978 = vmul.f32 %v969, %v969
  %v979 = vadd.f32 %v971, %v972
  %v980 = vadd.f32 %v979, %v973
  %v981 = vadd.f32 %v980, %v974
  %982 = vadd.xlane.f32.xlu0 %v981
  %v983 = vpop.xlane.xlu0 %982
  %v984 = vadd.f32 %v975, %v976
  %v985 = vadd.f32 %v984, %v977
  %v986 = vadd.f32 %v985, %v978
  %987 = vadd.xlane.f32.xlu0 %v986
  %v988 = vpop.xlane.xlu0 %987
  %v989 = vmax.f32 %v983, 1e-24
  %v990 = vmax.f32 %v988, 1e-24
  %v991 = vrsqrt.pop %v989
  %v992 = vrsqrt.pop %v990
  %v993 = vmul.f32 %v920, %v991
  %v994 = vmul.f32 %v922, %v991
  %v995 = vmul.f32 %v963, %v991
  %v996 = vmul.f32 %v965, %v991
  %v997 = vmul.f32 %v924, %v992
  %v998 = vmul.f32 %v926, %v992
  %v999 = vmul.f32 %v967, %v992
  %v1000 = vmul.f32 %v969, %v992
  %v1001 = vld [vmem:[%s2] sm:$0xf]
  %v1002 = vld [vmem:[%s2 + $0x4] sm:$0xf]
  %v1003 = vld [vmem:[%s2 + $0x8] sm:$0xf]
  %v1004 = vld [vmem:[%s2 + $0xc] sm:$0xf]
  %v1005 = vld [vmem:[%s2 + $0x10] sm:$0xf]
  %v1006 = vld [vmem:[%s2 + $0x14] sm:$0xf]
  %v1007 = vld [vmem:[%s2 + $0x18] sm:$0xf]
  %v1008 = vld [vmem:[%s2 + $0x1c] sm:$0xf]
  %v1009 = vld [vmem:[%s2 + $0x20] sm:$0xf]
  %v1010 = vld [vmem:[%s2 + $0x24] sm:$0xf]
  %v1011 = vld [vmem:[%s2 + $0x28] sm:$0xf]
  %v1012 = vld [vmem:[%s2 + $0x2c] sm:$0xf]
  %v1013 = vld [vmem:[%s2 + $0x30] sm:$0xf]
  %v1014 = vld [vmem:[%s2 + $0x34] sm:$0xf]
  %v1015 = vld [vmem:[%s2 + $0x38] sm:$0xf]
  %v1016 = vld [vmem:[%s2 + $0x3c] sm:$0xf]
  %v1017 = vld [vmem:[%s15] sm:$0xf]
  %v1018 = vld [vmem:[%s15 + $0x4] sm:$0xf]
  %v1019 = vld [vmem:[%s15 + $0x8] sm:$0xf]
  %v1020 = vld [vmem:[%s15 + $0xc] sm:$0xf]
  %v1021 = vld [vmem:[%s15 + $0x10] sm:$0xf]
  %v1022 = vld [vmem:[%s15 + $0x14] sm:$0xf]
  %v1023 = vld [vmem:[%s15 + $0x18] sm:$0xf]
  %v1024 = vld [vmem:[%s15 + $0x1c] sm:$0xf]
  %v1025 = vld [vmem:[%s15 + $0x20] sm:$0xf]
  %v1026 = vld [vmem:[%s15 + $0x24] sm:$0xf]
  %v1027 = vld [vmem:[%s15 + $0x28] sm:$0xf]
  %v1028 = vld [vmem:[%s15 + $0x2c] sm:$0xf]
  %v1029 = vld [vmem:[%s15 + $0x30] sm:$0xf]
  %v1030 = vld [vmem:[%s15 + $0x34] sm:$0xf]
  %v1031 = vld [vmem:[%s15 + $0x38] sm:$0xf]
  %v1032 = vld [vmem:[%s15 + $0x3c] sm:$0xf]
  %v1033 = vld [vmem:[%s16] sm:$0x1]
  %v1035 = vlaneseq
  %v1036 = vshrl.u32 %v1035, 7
  %v1037 = vsub.s32 0, %v1036
  %v1038 = vrot.slane %v1033, %v1037
  %v1056 = vunpack.c.l.b16 %v1001
  %v1057 = vunpack.c.l.b16 %v1002
  %v1058 = vunpack.c.l.b16 %v1003
  %v1059 = vunpack.c.l.b16 %v1004
  %v1060 = vunpack.c.l.b16 %v1005
  %v1061 = vunpack.c.l.b16 %v1006
  %v1062 = vunpack.c.l.b16 %v1007
  %v1063 = vunpack.c.l.b16 %v1008
  %v1064 = vunpack.c.l.b16 %v1009
  %v1065 = vunpack.c.l.b16 %v1010
  %v1066 = vunpack.c.l.b16 %v1011
  %v1067 = vunpack.c.l.b16 %v1012
  %v1068 = vunpack.c.l.b16 %v1013
  %v1069 = vunpack.c.l.b16 %v1014
  %v1070 = vunpack.c.l.b16 %v1015
  %v1071 = vunpack.c.l.b16 %v1016
  %v1072 = vpack.c.b16 %v1057, %v1056
  %v1073 = vpack.c.b16 %v1059, %v1058
  %v1074 = vpack.c.b16 %v1061, %v1060
  %v1075 = vpack.c.b16 %v1063, %v1062
  %v1076 = vpack.c.b16 %v1065, %v1064
  %v1077 = vpack.c.b16 %v1067, %v1066
  %v1078 = vpack.c.b16 %v1069, %v1068
  %v1079 = vpack.c.b16 %v1071, %v1070
  %v1104 = vunpack.c.l.b16 %v1017
  %v1105 = vunpack.c.l.b16 %v1018
  %v1106 = vunpack.c.l.b16 %v1019
  %v1107 = vunpack.c.l.b16 %v1020
  %v1108 = vunpack.c.l.b16 %v1021
  %v1109 = vunpack.c.l.b16 %v1022
  %v1110 = vunpack.c.l.b16 %v1023
  %v1111 = vunpack.c.l.b16 %v1024
  %v1112 = vunpack.c.l.b16 %v1025
  %v1113 = vunpack.c.l.b16 %v1026
  %v1114 = vunpack.c.l.b16 %v1027
  %v1115 = vunpack.c.l.b16 %v1028
  %v1116 = vunpack.c.l.b16 %v1029
  %v1117 = vunpack.c.l.b16 %v1030
  %v1118 = vunpack.c.l.b16 %v1031
  %v1119 = vunpack.c.l.b16 %v1032
  %v1120 = vpack.c.b16 %v1105, %v1104
  %v1121 = vpack.c.b16 %v1107, %v1106
  %v1122 = vpack.c.b16 %v1109, %v1108
  %v1123 = vpack.c.b16 %v1111, %v1110
  %v1124 = vpack.c.b16 %v1113, %v1112
  %v1125 = vpack.c.b16 %v1115, %v1114
  %v1126 = vpack.c.b16 %v1117, %v1116
  %v1127 = vpack.c.b16 %v1119, %v1118
  %1136 = vmatprep.subr.bf16.mxu0 0
  %1137 = vmatpush1.bf16.msra.mxu0 %v1120
  %1138 = vmatprep.subr.bf16.mxu0 0
  %1139 = vmatpush1.bf16.msra.mxu0 %v1121
  %1140 = vmatprep.subr.bf16.mxu0 0
  %1141 = vmatpush1.bf16.msra.mxu0 %v1122
  %1142 = vmatprep.subr.bf16.mxu0 0
  %1143 = vmatpush1.bf16.msra.mxu0 %v1123
  %1144 = vmatprep.subr.bf16.mxu0 0
  %1145 = vmatpush1.bf16.msra.mxu0 %v1124
  %1146 = vmatprep.subr.bf16.mxu0 0
  %1147 = vmatpush1.bf16.msra.mxu0 %v1125
  %1148 = vmatprep.subr.bf16.mxu0 0
  %1149 = vmatpush1.bf16.msra.mxu0 %v1126
  %1150 = vmatprep.subr.bf16.mxu0 0
  %1151 = vmatpush1.bf16.msra.mxu0 %v1127
  %1152 = vmatprep.subr.bf16.mxu0 0
  %1153 = vmatpush1.bf16.msra.mxu0 0
  %1154 = vmatprep.subr.bf16.mxu0 0
  %1155 = vmatpush1.bf16.msra.mxu0 0
  %1156 = vmatprep.subr.bf16.mxu0 0
  %1157 = vmatpush1.bf16.msra.mxu0 0
  %1158 = vmatprep.subr.bf16.mxu0 0
  %1159 = vmatpush1.bf16.msra.mxu0 0
  %1160 = vmatprep.subr.bf16.mxu0 0
  %1161 = vmatpush1.bf16.msra.mxu0 0
  %1162 = vmatprep.subr.bf16.mxu0 0
  %1163 = vmatpush1.bf16.msra.mxu0 0
  %1164 = vmatprep.subr.bf16.mxu0 0
  %1165 = vmatpush1.bf16.msra.mxu0 0
  %1166 = vmatprep.subr.bf16.mxu0 0
  %1167 = vmatpush1.bf16.msra.mxu0 0
  %1168 = vmatprep.mubr.bf16.mxu0 0
  %1169 = vmatmul.mubr.bf16.gmra.mrb[0].mxu0 %v1072
  %v1170 = vpop.f32.mrb[0].mxu0
  %v1171 = vadd.f32 %v1038, %v1170
  %v1172 = vpop.f32.mrb[0].mxu0
  %v1173 = vpop.f32.mrb[0].mxu0
  %v1174 = vadd.f32 %v1038, %v1173
  %v1175 = vpop.f32.mrb[0].mxu0
  %1176 = vmatprep.mubr.bf16.mxu0 0
  %1177 = vmatmul.mubr.bf16.gmra.mrb[0].mxu0 %v1073
  %v1178 = vpop.f32.mrb[0].mxu0
  %v1179 = vadd.f32 %v1038, %v1178
  %v1180 = vpop.f32.mrb[0].mxu0
  %v1181 = vpop.f32.mrb[0].mxu0
  %v1182 = vadd.f32 %v1038, %v1181
  %v1183 = vpop.f32.mrb[0].mxu0
  %1184 = vmatprep.mubr.bf16.mxu0 0
  %1185 = vmatmul.mubr.bf16.gmra.mrb[0].mxu0 %v1074
  %v1186 = vpop.f32.mrb[0].mxu0
  %v1187 = vadd.f32 %v1038, %v1186
  %v1188 = vpop.f32.mrb[0].mxu0
  %v1189 = vpop.f32.mrb[0].mxu0
  %v1190 = vadd.f32 %v1038, %v1189
  %v1191 = vpop.f32.mrb[0].mxu0
  %1192 = vmatprep.mubr.bf16.mxu0 0
  %1193 = vmatmul.mubr.bf16.gmra.mrb[0].mxu0 %v1075
  %v1194 = vpop.f32.mrb[0].mxu0
  %v1195 = vadd.f32 %v1038, %v1194
  %v1196 = vpop.f32.mrb[0].mxu0
  %v1197 = vpop.f32.mrb[0].mxu0
  %v1198 = vadd.f32 %v1038, %v1197
  %v1199 = vpop.f32.mrb[0].mxu0
  %1200 = vmatprep.mubr.bf16.mxu0 0
  %1201 = vmatmul.mubr.bf16.gmra.mrb[0].mxu0 %v1076
  %v1202 = vpop.f32.mrb[0].mxu0
  %v1203 = vadd.f32 %v1038, %v1202
  %v1204 = vpop.f32.mrb[0].mxu0
  %v1205 = vpop.f32.mrb[0].mxu0
  %v1206 = vadd.f32 %v1038, %v1205
  %v1207 = vpop.f32.mrb[0].mxu0
  %1208 = vmatprep.mubr.bf16.mxu0 0
  %1209 = vmatmul.mubr.bf16.gmra.mrb[0].mxu0 %v1077
  %v1210 = vpop.f32.mrb[0].mxu0
  %v1211 = vadd.f32 %v1038, %v1210
  %v1212 = vpop.f32.mrb[0].mxu0
  %v1213 = vpop.f32.mrb[0].mxu0
  %v1214 = vadd.f32 %v1038, %v1213
  %v1215 = vpop.f32.mrb[0].mxu0
  %1216 = vmatprep.mubr.bf16.mxu0 0
  %1217 = vmatmul.mubr.bf16.gmra.mrb[0].mxu0 %v1078
  %v1218 = vpop.f32.mrb[0].mxu0
  %v1219 = vadd.f32 %v1038, %v1218
  %v1220 = vpop.f32.mrb[0].mxu0
  %v1221 = vpop.f32.mrb[0].mxu0
  %v1222 = vadd.f32 %v1038, %v1221
  %v1223 = vpop.f32.mrb[0].mxu0
  %1224 = vmatprep.mubr.bf16.mxu0 0
  %1225 = vmatmul.mubr.bf16.gmra.mrb[0].mxu0 %v1079
  %v1226 = vpop.f32.mrb[0].mxu0
  %v1227 = vadd.f32 %v1038, %v1226
  %v1228 = vpop.f32.mrb[0].mxu0
  %v1229 = vpop.f32.mrb[0].mxu0
  %v1230 = vadd.f32 %v1038, %v1229
  %v1231 = vpop.f32.mrb[0].mxu0
  %1232 = vdwg.mxu0
  %v1233 = vmax.f32 %v1171, 0.0
  %v1234 = vmax.f32 %v1174, 0.0
  %v1235 = vmax.f32 %v1179, 0.0
  %v1236 = vmax.f32 %v1182, 0.0
  %v1237 = vmax.f32 %v1187, 0.0
  %v1238 = vmax.f32 %v1190, 0.0
  %v1239 = vmax.f32 %v1195, 0.0
  %v1240 = vmax.f32 %v1198, 0.0
  %v1241 = vmax.f32 %v1203, 0.0
  %v1242 = vmax.f32 %v1206, 0.0
  %v1243 = vmax.f32 %v1211, 0.0
  %v1244 = vmax.f32 %v1214, 0.0
  %v1245 = vmax.f32 %v1219, 0.0
  %v1246 = vmax.f32 %v1222, 0.0
  %v1247 = vmax.f32 %v1227, 0.0
  %v1248 = vmax.f32 %v1230, 0.0
  %v1249 = vld [vmem:[%s17] sm:$0xf]
  %v1250 = vld [vmem:[%s17 + $0x4] sm:$0xf]
  %v1251 = vld [vmem:[%s17 + $0x8] sm:$0xf]
  %v1252 = vld [vmem:[%s17 + $0xc] sm:$0xf]
  %v1253 = vld [vmem:[%s17 + $0x10] sm:$0xf]
  %v1254 = vld [vmem:[%s17 + $0x14] sm:$0xf]
  %v1255 = vld [vmem:[%s17 + $0x18] sm:$0xf]
  %v1256 = vld [vmem:[%s17 + $0x1c] sm:$0xf]
  %v1257 = vld [vmem:[%s17 + $0x20] sm:$0xf]
  %v1258 = vld [vmem:[%s17 + $0x24] sm:$0xf]
  %v1259 = vld [vmem:[%s17 + $0x28] sm:$0xf]
  %v1260 = vld [vmem:[%s17 + $0x2c] sm:$0xf]
  %v1261 = vld [vmem:[%s17 + $0x30] sm:$0xf]
  %v1262 = vld [vmem:[%s17 + $0x34] sm:$0xf]
  %v1263 = vld [vmem:[%s17 + $0x38] sm:$0xf]
  %v1264 = vld [vmem:[%s17 + $0x3c] sm:$0xf]
  %v1265 = vld [vmem:[%s18] sm:$0x1]
  %v1266 = vpack.c.bf16 %v1234, %v1233
  %v1267 = vpack.c.bf16 %v1236, %v1235
  %v1268 = vpack.c.bf16 %v1238, %v1237
  %v1269 = vpack.c.bf16 %v1240, %v1239
  %v1270 = vpack.c.bf16 %v1242, %v1241
  %v1271 = vpack.c.bf16 %v1244, %v1243
  %v1272 = vpack.c.bf16 %v1246, %v1245
  %v1273 = vpack.c.bf16 %v1248, %v1247
  %v1275 = vlaneseq
  %v1276 = vshrl.u32 %v1275, 7
  %v1277 = vsub.s32 0, %v1276
  %v1278 = vrot.slane %v1265, %v1277
  %v1296 = vunpack.c.l.b16 %v1249
  %v1297 = vunpack.c.l.b16 %v1250
  %v1298 = vunpack.c.l.b16 %v1251
  %v1299 = vunpack.c.l.b16 %v1252
  %v1300 = vunpack.c.l.b16 %v1253
  %v1301 = vunpack.c.l.b16 %v1254
  %v1302 = vunpack.c.l.b16 %v1255
  %v1303 = vunpack.c.l.b16 %v1256
  %v1304 = vunpack.c.l.b16 %v1257
  %v1305 = vunpack.c.l.b16 %v1258
  %v1306 = vunpack.c.l.b16 %v1259
  %v1307 = vunpack.c.l.b16 %v1260
  %v1308 = vunpack.c.l.b16 %v1261
  %v1309 = vunpack.c.l.b16 %v1262
  %v1310 = vunpack.c.l.b16 %v1263
  %v1311 = vunpack.c.l.b16 %v1264
  %v1312 = vpack.c.b16 %v1297, %v1296
  %v1313 = vpack.c.b16 %v1299, %v1298
  %v1314 = vpack.c.b16 %v1301, %v1300
  %v1315 = vpack.c.b16 %v1303, %v1302
  %v1316 = vpack.c.b16 %v1305, %v1304
  %v1317 = vpack.c.b16 %v1307, %v1306
  %v1318 = vpack.c.b16 %v1309, %v1308
  %v1319 = vpack.c.b16 %v1311, %v1310
  %1328 = vmatprep.subr.bf16.mxu0 0
  %1329 = vmatpush1.bf16.msra.mxu0 %v1312
  %1330 = vmatprep.subr.bf16.mxu0 0
  %1331 = vmatpush1.bf16.msra.mxu0 %v1313
  %1332 = vmatprep.subr.bf16.mxu0 0
  %1333 = vmatpush1.bf16.msra.mxu0 %v1314
  %1334 = vmatprep.subr.bf16.mxu0 0
  %1335 = vmatpush1.bf16.msra.mxu0 %v1315
  %1336 = vmatprep.subr.bf16.mxu0 0
  %1337 = vmatpush1.bf16.msra.mxu0 %v1316
  %1338 = vmatprep.subr.bf16.mxu0 0
  %1339 = vmatpush1.bf16.msra.mxu0 %v1317
  %1340 = vmatprep.subr.bf16.mxu0 0
  %1341 = vmatpush1.bf16.msra.mxu0 %v1318
  %1342 = vmatprep.subr.bf16.mxu0 0
  %1343 = vmatpush1.bf16.msra.mxu0 %v1319
  %1344 = vmatprep.subr.bf16.mxu0 0
  %1345 = vmatpush1.bf16.msra.mxu0 0
  %1346 = vmatprep.subr.bf16.mxu0 0
  %1347 = vmatpush1.bf16.msra.mxu0 0
  %1348 = vmatprep.subr.bf16.mxu0 0
  %1349 = vmatpush1.bf16.msra.mxu0 0
  %1350 = vmatprep.subr.bf16.mxu0 0
  %1351 = vmatpush1.bf16.msra.mxu0 0
  %1352 = vmatprep.subr.bf16.mxu0 0
  %1353 = vmatpush1.bf16.msra.mxu0 0
  %1354 = vmatprep.subr.bf16.mxu0 0
  %1355 = vmatpush1.bf16.msra.mxu0 0
  %1356 = vmatprep.subr.bf16.mxu0 0
  %1357 = vmatpush1.bf16.msra.mxu0 0
  %1358 = vmatprep.subr.bf16.mxu0 0
  %1359 = vmatpush1.bf16.msra.mxu0 0
  %1360 = vmatprep.mubr.bf16.mxu0 0
  %1361 = vmatmul.mubr.bf16.gmra.mrb[0].mxu0 %v1266
  %v1362 = vpop.f32.mrb[0].mxu0
  %v1363 = vadd.f32 %v1278, %v1362
  %v1364 = vpop.f32.mrb[0].mxu0
  %v1365 = vpop.f32.mrb[0].mxu0
  %v1366 = vadd.f32 %v1278, %v1365
  %v1367 = vpop.f32.mrb[0].mxu0
  %1368 = vmatprep.mubr.bf16.mxu0 0
  %1369 = vmatmul.mubr.bf16.gmra.mrb[0].mxu0 %v1267
  %v1370 = vpop.f32.mrb[0].mxu0
  %v1371 = vadd.f32 %v1278, %v1370
  %v1372 = vpop.f32.mrb[0].mxu0
  %v1373 = vpop.f32.mrb[0].mxu0
  %v1374 = vadd.f32 %v1278, %v1373
  %v1375 = vpop.f32.mrb[0].mxu0
  %1376 = vmatprep.mubr.bf16.mxu0 0
  %1377 = vmatmul.mubr.bf16.gmra.mrb[0].mxu0 %v1268
  %v1378 = vpop.f32.mrb[0].mxu0
  %v1379 = vadd.f32 %v1278, %v1378
  %v1380 = vpop.f32.mrb[0].mxu0
  %v1381 = vpop.f32.mrb[0].mxu0
  %v1382 = vadd.f32 %v1278, %v1381
  %v1383 = vpop.f32.mrb[0].mxu0
  %1384 = vmatprep.mubr.bf16.mxu0 0
  %1385 = vmatmul.mubr.bf16.gmra.mrb[0].mxu0 %v1269
  %v1386 = vpop.f32.mrb[0].mxu0
  %v1387 = vadd.f32 %v1278, %v1386
  %v1388 = vpop.f32.mrb[0].mxu0
  %v1389 = vpop.f32.mrb[0].mxu0
  %v1390 = vadd.f32 %v1278, %v1389
  %v1391 = vpop.f32.mrb[0].mxu0
  %1392 = vmatprep.mubr.bf16.mxu0 0
  %1393 = vmatmul.mubr.bf16.gmra.mrb[0].mxu0 %v1270
  %v1394 = vpop.f32.mrb[0].mxu0
  %v1395 = vadd.f32 %v1278, %v1394
  %v1396 = vpop.f32.mrb[0].mxu0
  %v1397 = vpop.f32.mrb[0].mxu0
  %v1398 = vadd.f32 %v1278, %v1397
  %v1399 = vpop.f32.mrb[0].mxu0
  %1400 = vmatprep.mubr.bf16.mxu0 0
  %1401 = vmatmul.mubr.bf16.gmra.mrb[0].mxu0 %v1271
  %v1402 = vpop.f32.mrb[0].mxu0
  %v1403 = vadd.f32 %v1278, %v1402
  %v1404 = vpop.f32.mrb[0].mxu0
  %v1405 = vpop.f32.mrb[0].mxu0
  %v1406 = vadd.f32 %v1278, %v1405
  %v1407 = vpop.f32.mrb[0].mxu0
  %1408 = vmatprep.mubr.bf16.mxu0 0
  %1409 = vmatmul.mubr.bf16.gmra.mrb[0].mxu0 %v1272
  %v1410 = vpop.f32.mrb[0].mxu0
  %v1411 = vadd.f32 %v1278, %v1410
  %v1412 = vpop.f32.mrb[0].mxu0
  %v1413 = vpop.f32.mrb[0].mxu0
  %v1414 = vadd.f32 %v1278, %v1413
  %v1415 = vpop.f32.mrb[0].mxu0
  %1416 = vmatprep.mubr.bf16.mxu0 0
  %1417 = vmatmul.mubr.bf16.gmra.mrb[0].mxu0 %v1273
  %v1418 = vpop.f32.mrb[0].mxu0
  %v1419 = vadd.f32 %v1278, %v1418
  %v1420 = vpop.f32.mrb[0].mxu0
  %v1421 = vpop.f32.mrb[0].mxu0
  %v1422 = vadd.f32 %v1278, %v1421
  %v1423 = vpop.f32.mrb[0].mxu0
  %1424 = vdwg.mxu0
  %v1425 = vmax.f32 %v1363, 0.0
  %v1426 = vmax.f32 %v1366, 0.0
  %v1427 = vmax.f32 %v1371, 0.0
  %v1428 = vmax.f32 %v1374, 0.0
  %v1429 = vmax.f32 %v1379, 0.0
  %v1430 = vmax.f32 %v1382, 0.0
  %v1431 = vmax.f32 %v1387, 0.0
  %v1432 = vmax.f32 %v1390, 0.0
  %v1433 = vmax.f32 %v1395, 0.0
  %v1434 = vmax.f32 %v1398, 0.0
  %v1435 = vmax.f32 %v1403, 0.0
  %v1436 = vmax.f32 %v1406, 0.0
  %v1437 = vmax.f32 %v1411, 0.0
  %v1438 = vmax.f32 %v1414, 0.0
  %v1439 = vmax.f32 %v1419, 0.0
  %v1440 = vmax.f32 %v1422, 0.0
  %v1441 = vld [vmem:[%s19] sm:$0xf]
  %v1442 = vld [vmem:[%s19 + $0x4] sm:$0xf]
  %v1443 = vld [vmem:[%s19 + $0x8] sm:$0xf]
  %v1444 = vld [vmem:[%s19 + $0xc] sm:$0xf]
  %v1445 = vld [vmem:[%s19 + $0x10] sm:$0xf]
  %v1446 = vld [vmem:[%s19 + $0x14] sm:$0xf]
  %v1447 = vld [vmem:[%s19 + $0x18] sm:$0xf]
  %v1448 = vld [vmem:[%s19 + $0x1c] sm:$0xf]
  %v1449 = vld [vmem:[%s19 + $0x20] sm:$0xf]
  %v1450 = vld [vmem:[%s19 + $0x24] sm:$0xf]
  %v1451 = vld [vmem:[%s19 + $0x28] sm:$0xf]
  %v1452 = vld [vmem:[%s19 + $0x2c] sm:$0xf]
  %v1453 = vld [vmem:[%s19 + $0x30] sm:$0xf]
  %v1454 = vld [vmem:[%s19 + $0x34] sm:$0xf]
  %v1455 = vld [vmem:[%s19 + $0x38] sm:$0xf]
  %v1456 = vld [vmem:[%s19 + $0x3c] sm:$0xf]
  %v1457 = vld [vmem:[%s20] sm:$0x1]
  %v1458 = vpack.c.bf16 %v1426, %v1425
  %v1459 = vpack.c.bf16 %v1428, %v1427
  %v1460 = vpack.c.bf16 %v1430, %v1429
  %v1461 = vpack.c.bf16 %v1432, %v1431
  %v1462 = vpack.c.bf16 %v1434, %v1433
  %v1463 = vpack.c.bf16 %v1436, %v1435
  %v1464 = vpack.c.bf16 %v1438, %v1437
  %v1465 = vpack.c.bf16 %v1440, %v1439
  %v1467 = vlaneseq
  %v1468 = vshrl.u32 %v1467, 7
  %v1469 = vsub.s32 0, %v1468
  %v1470 = vrot.slane %v1457, %v1469
  %v1488 = vunpack.c.l.b16 %v1441
  %v1489 = vunpack.c.l.b16 %v1442
  %v1490 = vunpack.c.l.b16 %v1443
  %v1491 = vunpack.c.l.b16 %v1444
  %v1492 = vunpack.c.l.b16 %v1445
  %v1493 = vunpack.c.l.b16 %v1446
  %v1494 = vunpack.c.l.b16 %v1447
  %v1495 = vunpack.c.l.b16 %v1448
  %v1496 = vunpack.c.l.b16 %v1449
  %v1497 = vunpack.c.l.b16 %v1450
  %v1498 = vunpack.c.l.b16 %v1451
  %v1499 = vunpack.c.l.b16 %v1452
  %v1500 = vunpack.c.l.b16 %v1453
  %v1501 = vunpack.c.l.b16 %v1454
  %v1502 = vunpack.c.l.b16 %v1455
  %v1503 = vunpack.c.l.b16 %v1456
  %v1504 = vpack.c.b16 %v1489, %v1488
  %v1505 = vpack.c.b16 %v1491, %v1490
  %v1506 = vpack.c.b16 %v1493, %v1492
  %v1507 = vpack.c.b16 %v1495, %v1494
  %v1508 = vpack.c.b16 %v1497, %v1496
  %v1509 = vpack.c.b16 %v1499, %v1498
  %v1510 = vpack.c.b16 %v1501, %v1500
  %v1511 = vpack.c.b16 %v1503, %v1502
  %1520 = vmatprep.subr.bf16.mxu0 0
  %1521 = vmatpush1.bf16.msra.mxu0 %v1504
  %1522 = vmatprep.subr.bf16.mxu0 0
  %1523 = vmatpush1.bf16.msra.mxu0 %v1505
  %1524 = vmatprep.subr.bf16.mxu0 0
  %1525 = vmatpush1.bf16.msra.mxu0 %v1506
  %1526 = vmatprep.subr.bf16.mxu0 0
  %1527 = vmatpush1.bf16.msra.mxu0 %v1507
  %1528 = vmatprep.subr.bf16.mxu0 0
  %1529 = vmatpush1.bf16.msra.mxu0 %v1508
  %1530 = vmatprep.subr.bf16.mxu0 0
  %1531 = vmatpush1.bf16.msra.mxu0 %v1509
  %1532 = vmatprep.subr.bf16.mxu0 0
  %1533 = vmatpush1.bf16.msra.mxu0 %v1510
  %1534 = vmatprep.subr.bf16.mxu0 0
  %1535 = vmatpush1.bf16.msra.mxu0 %v1511
  %1536 = vmatprep.subr.bf16.mxu0 0
  %1537 = vmatpush1.bf16.msra.mxu0 0
  %1538 = vmatprep.subr.bf16.mxu0 0
  %1539 = vmatpush1.bf16.msra.mxu0 0
  %1540 = vmatprep.subr.bf16.mxu0 0
  %1541 = vmatpush1.bf16.msra.mxu0 0
  %1542 = vmatprep.subr.bf16.mxu0 0
  %1543 = vmatpush1.bf16.msra.mxu0 0
  %1544 = vmatprep.subr.bf16.mxu0 0
  %1545 = vmatpush1.bf16.msra.mxu0 0
  %1546 = vmatprep.subr.bf16.mxu0 0
  %1547 = vmatpush1.bf16.msra.mxu0 0
  %1548 = vmatprep.subr.bf16.mxu0 0
  %1549 = vmatpush1.bf16.msra.mxu0 0
  %1550 = vmatprep.subr.bf16.mxu0 0
  %1551 = vmatpush1.bf16.msra.mxu0 0
  %1552 = vmatprep.mubr.bf16.mxu0 0
  %1553 = vmatmul.mubr.bf16.gmra.mrb[0].mxu0 %v1458
  %v1554 = vpop.f32.mrb[0].mxu0
  %v1555 = vadd.f32 %v1470, %v1554
  %v1556 = vpop.f32.mrb[0].mxu0
  %v1557 = vpop.f32.mrb[0].mxu0
  %v1558 = vadd.f32 %v1470, %v1557
  %v1559 = vpop.f32.mrb[0].mxu0
  %1560 = vmatprep.mubr.bf16.mxu0 0
  %1561 = vmatmul.mubr.bf16.gmra.mrb[0].mxu0 %v1459
  %v1562 = vpop.f32.mrb[0].mxu0
  %v1563 = vadd.f32 %v1470, %v1562
  %v1564 = vpop.f32.mrb[0].mxu0
  %v1565 = vpop.f32.mrb[0].mxu0
  %v1566 = vadd.f32 %v1470, %v1565
  %v1567 = vpop.f32.mrb[0].mxu0
  %1568 = vmatprep.mubr.bf16.mxu0 0
  %1569 = vmatmul.mubr.bf16.gmra.mrb[0].mxu0 %v1460
  %v1570 = vpop.f32.mrb[0].mxu0
  %v1571 = vadd.f32 %v1470, %v1570
  %v1572 = vpop.f32.mrb[0].mxu0
  %v1573 = vpop.f32.mrb[0].mxu0
  %v1574 = vadd.f32 %v1470, %v1573
  %v1575 = vpop.f32.mrb[0].mxu0
  %1576 = vmatprep.mubr.bf16.mxu0 0
  %1577 = vmatmul.mubr.bf16.gmra.mrb[0].mxu0 %v1461
  %v1578 = vpop.f32.mrb[0].mxu0
  %v1579 = vadd.f32 %v1470, %v1578
  %v1580 = vpop.f32.mrb[0].mxu0
  %v1581 = vpop.f32.mrb[0].mxu0
  %v1582 = vadd.f32 %v1470, %v1581
  %v1583 = vpop.f32.mrb[0].mxu0
  %1584 = vmatprep.mubr.bf16.mxu0 0
  %1585 = vmatmul.mubr.bf16.gmra.mrb[0].mxu0 %v1462
  %v1586 = vpop.f32.mrb[0].mxu0
  %v1587 = vadd.f32 %v1470, %v1586
  %v1588 = vpop.f32.mrb[0].mxu0
  %v1589 = vpop.f32.mrb[0].mxu0
  %v1590 = vadd.f32 %v1470, %v1589
  %v1591 = vpop.f32.mrb[0].mxu0
  %1592 = vmatprep.mubr.bf16.mxu0 0
  %1593 = vmatmul.mubr.bf16.gmra.mrb[0].mxu0 %v1463
  %v1594 = vpop.f32.mrb[0].mxu0
  %v1595 = vadd.f32 %v1470, %v1594
  %v1596 = vpop.f32.mrb[0].mxu0
  %v1597 = vpop.f32.mrb[0].mxu0
  %v1598 = vadd.f32 %v1470, %v1597
  %v1599 = vpop.f32.mrb[0].mxu0
  %1600 = vmatprep.mubr.bf16.mxu0 0
  %1601 = vmatmul.mubr.bf16.gmra.mrb[0].mxu0 %v1464
  %v1602 = vpop.f32.mrb[0].mxu0
  %v1603 = vadd.f32 %v1470, %v1602
  %v1604 = vpop.f32.mrb[0].mxu0
  %v1605 = vpop.f32.mrb[0].mxu0
  %v1606 = vadd.f32 %v1470, %v1605
  %v1607 = vpop.f32.mrb[0].mxu0
  %1608 = vmatprep.mubr.bf16.mxu0 0
  %1609 = vmatmul.mubr.bf16.gmra.mrb[0].mxu0 %v1465
  %v1610 = vpop.f32.mrb[0].mxu0
  %v1611 = vadd.f32 %v1470, %v1610
  %v1612 = vpop.f32.mrb[0].mxu0
  %v1613 = vpop.f32.mrb[0].mxu0
  %v1614 = vadd.f32 %v1470, %v1613
  %v1615 = vpop.f32.mrb[0].mxu0
  %1616 = vdwg.mxu0
  %v1617 = vmax.f32 %v1555, 0.0
  %v1618 = vmax.f32 %v1558, 0.0
  %v1619 = vmax.f32 %v1563, 0.0
  %v1620 = vmax.f32 %v1566, 0.0
  %v1621 = vmax.f32 %v1571, 0.0
  %v1622 = vmax.f32 %v1574, 0.0
  %v1623 = vmax.f32 %v1579, 0.0
  %v1624 = vmax.f32 %v1582, 0.0
  %v1625 = vmax.f32 %v1587, 0.0
  %v1626 = vmax.f32 %v1590, 0.0
  %v1627 = vmax.f32 %v1595, 0.0
  %v1628 = vmax.f32 %v1598, 0.0
  %v1629 = vmax.f32 %v1603, 0.0
  %v1630 = vmax.f32 %v1606, 0.0
  %v1631 = vmax.f32 %v1611, 0.0
  %v1632 = vmax.f32 %v1614, 0.0
  %v1633 = vld [vmem:[%s21] sm:$0xf]
  %v1634 = vld [vmem:[%s21 + $0x4] sm:$0xf]
  %v1635 = vld [vmem:[%s21 + $0x8] sm:$0xf]
  %v1636 = vld [vmem:[%s21 + $0xc] sm:$0xf]
  %v1637 = vld [vmem:[%s21 + $0x10] sm:$0xf]
  %v1638 = vld [vmem:[%s21 + $0x14] sm:$0xf]
  %v1639 = vld [vmem:[%s21 + $0x18] sm:$0xf]
  %v1640 = vld [vmem:[%s21 + $0x1c] sm:$0xf]
  %v1641 = vld [vmem:[%s21 + $0x20] sm:$0xf]
  %v1642 = vld [vmem:[%s21 + $0x24] sm:$0xf]
  %v1643 = vld [vmem:[%s21 + $0x28] sm:$0xf]
  %v1644 = vld [vmem:[%s21 + $0x2c] sm:$0xf]
  %v1645 = vld [vmem:[%s21 + $0x30] sm:$0xf]
  %v1646 = vld [vmem:[%s21 + $0x34] sm:$0xf]
  %v1647 = vld [vmem:[%s21 + $0x38] sm:$0xf]
  %v1648 = vld [vmem:[%s21 + $0x3c] sm:$0xf]
  %v1649 = vld [vmem:[%s22] sm:$0x1]
  %v1650 = vpack.c.bf16 %v1618, %v1617
  %v1651 = vpack.c.bf16 %v1620, %v1619
  %v1652 = vpack.c.bf16 %v1622, %v1621
  %v1653 = vpack.c.bf16 %v1624, %v1623
  %v1654 = vpack.c.bf16 %v1626, %v1625
  %v1655 = vpack.c.bf16 %v1628, %v1627
  %v1656 = vpack.c.bf16 %v1630, %v1629
  %v1657 = vpack.c.bf16 %v1632, %v1631
  %v1659 = vlaneseq
  %v1660 = vshrl.u32 %v1659, 7
  %v1661 = vsub.s32 0, %v1660
  %v1662 = vrot.slane %v1649, %v1661
  %v1680 = vunpack.c.l.b16 %v1633
  %v1681 = vunpack.c.l.b16 %v1634
  %v1682 = vunpack.c.l.b16 %v1635
  %v1683 = vunpack.c.l.b16 %v1636
  %v1684 = vunpack.c.l.b16 %v1637
  %v1685 = vunpack.c.l.b16 %v1638
  %v1686 = vunpack.c.l.b16 %v1639
  %v1687 = vunpack.c.l.b16 %v1640
  %v1688 = vunpack.c.l.b16 %v1641
  %v1689 = vunpack.c.l.b16 %v1642
  %v1690 = vunpack.c.l.b16 %v1643
  %v1691 = vunpack.c.l.b16 %v1644
  %v1692 = vunpack.c.l.b16 %v1645
  %v1693 = vunpack.c.l.b16 %v1646
  %v1694 = vunpack.c.l.b16 %v1647
  %v1695 = vunpack.c.l.b16 %v1648
  %v1696 = vpack.c.b16 %v1681, %v1680
  %v1697 = vpack.c.b16 %v1683, %v1682
  %v1698 = vpack.c.b16 %v1685, %v1684
  %v1699 = vpack.c.b16 %v1687, %v1686
  %v1700 = vpack.c.b16 %v1689, %v1688
  %v1701 = vpack.c.b16 %v1691, %v1690
  %v1702 = vpack.c.b16 %v1693, %v1692
  %v1703 = vpack.c.b16 %v1695, %v1694
  %1712 = vmatprep.subr.bf16.mxu0 0
  %1713 = vmatpush1.bf16.msra.mxu0 %v1696
  %1714 = vmatprep.subr.bf16.mxu0 0
  %1715 = vmatpush1.bf16.msra.mxu0 %v1697
  %1716 = vmatprep.subr.bf16.mxu0 0
  %1717 = vmatpush1.bf16.msra.mxu0 %v1698
  %1718 = vmatprep.subr.bf16.mxu0 0
  %1719 = vmatpush1.bf16.msra.mxu0 %v1699
  %1720 = vmatprep.subr.bf16.mxu0 0
  %1721 = vmatpush1.bf16.msra.mxu0 %v1700
  %1722 = vmatprep.subr.bf16.mxu0 0
  %1723 = vmatpush1.bf16.msra.mxu0 %v1701
  %1724 = vmatprep.subr.bf16.mxu0 0
  %1725 = vmatpush1.bf16.msra.mxu0 %v1702
  %1726 = vmatprep.subr.bf16.mxu0 0
  %1727 = vmatpush1.bf16.msra.mxu0 %v1703
  %1728 = vmatprep.subr.bf16.mxu0 0
  %1729 = vmatpush1.bf16.msra.mxu0 0
  %1730 = vmatprep.subr.bf16.mxu0 0
  %1731 = vmatpush1.bf16.msra.mxu0 0
  %1732 = vmatprep.subr.bf16.mxu0 0
  %1733 = vmatpush1.bf16.msra.mxu0 0
  %1734 = vmatprep.subr.bf16.mxu0 0
  %1735 = vmatpush1.bf16.msra.mxu0 0
  %1736 = vmatprep.subr.bf16.mxu0 0
  %1737 = vmatpush1.bf16.msra.mxu0 0
  %1738 = vmatprep.subr.bf16.mxu0 0
  %1739 = vmatpush1.bf16.msra.mxu0 0
  %1740 = vmatprep.subr.bf16.mxu0 0
  %1741 = vmatpush1.bf16.msra.mxu0 0
  %1742 = vmatprep.subr.bf16.mxu0 0
  %1743 = vmatpush1.bf16.msra.mxu0 0
  %1744 = vmatprep.mubr.bf16.mxu0 0
  %1745 = vmatmul.mubr.bf16.gmra.mrb[0].mxu0 %v1650
  %v1746 = vpop.f32.mrb[0].mxu0
  %v1747 = vadd.f32 %v1662, %v1746
  %v1748 = vpop.f32.mrb[0].mxu0
  %v1749 = vpop.f32.mrb[0].mxu0
  %v1750 = vadd.f32 %v1662, %v1749
  %v1751 = vpop.f32.mrb[0].mxu0
  %1752 = vmatprep.mubr.bf16.mxu0 0
  %1753 = vmatmul.mubr.bf16.gmra.mrb[0].mxu0 %v1651
  %v1754 = vpop.f32.mrb[0].mxu0
  %v1755 = vadd.f32 %v1662, %v1754
  %v1756 = vpop.f32.mrb[0].mxu0
  %v1757 = vpop.f32.mrb[0].mxu0
  %v1758 = vadd.f32 %v1662, %v1757
  %v1759 = vpop.f32.mrb[0].mxu0
  %1760 = vmatprep.mubr.bf16.mxu0 0
  %1761 = vmatmul.mubr.bf16.gmra.mrb[0].mxu0 %v1652
  %v1762 = vpop.f32.mrb[0].mxu0
  %v1763 = vadd.f32 %v1662, %v1762
  %v1764 = vpop.f32.mrb[0].mxu0
  %v1765 = vpop.f32.mrb[0].mxu0
  %v1766 = vadd.f32 %v1662, %v1765
  %v1767 = vpop.f32.mrb[0].mxu0
  %1768 = vmatprep.mubr.bf16.mxu0 0
  %1769 = vmatmul.mubr.bf16.gmra.mrb[0].mxu0 %v1653
  %v1770 = vpop.f32.mrb[0].mxu0
  %v1771 = vadd.f32 %v1662, %v1770
  %v1772 = vpop.f32.mrb[0].mxu0
  %v1773 = vpop.f32.mrb[0].mxu0
  %v1774 = vadd.f32 %v1662, %v1773
  %v1775 = vpop.f32.mrb[0].mxu0
  %1776 = vmatprep.mubr.bf16.mxu0 0
  %1777 = vmatmul.mubr.bf16.gmra.mrb[0].mxu0 %v1654
  %v1778 = vpop.f32.mrb[0].mxu0
  %v1779 = vadd.f32 %v1662, %v1778
  %v1780 = vpop.f32.mrb[0].mxu0
  %v1781 = vpop.f32.mrb[0].mxu0
  %v1782 = vadd.f32 %v1662, %v1781
  %v1783 = vpop.f32.mrb[0].mxu0
  %1784 = vmatprep.mubr.bf16.mxu0 0
  %1785 = vmatmul.mubr.bf16.gmra.mrb[0].mxu0 %v1655
  %v1786 = vpop.f32.mrb[0].mxu0
  %v1787 = vadd.f32 %v1662, %v1786
  %v1788 = vpop.f32.mrb[0].mxu0
  %v1789 = vpop.f32.mrb[0].mxu0
  %v1790 = vadd.f32 %v1662, %v1789
  %v1791 = vpop.f32.mrb[0].mxu0
  %1792 = vmatprep.mubr.bf16.mxu0 0
  %1793 = vmatmul.mubr.bf16.gmra.mrb[0].mxu0 %v1656
  %v1794 = vpop.f32.mrb[0].mxu0
  %v1795 = vadd.f32 %v1662, %v1794
  %v1796 = vpop.f32.mrb[0].mxu0
  %v1797 = vpop.f32.mrb[0].mxu0
  %v1798 = vadd.f32 %v1662, %v1797
  %v1799 = vpop.f32.mrb[0].mxu0
  %1800 = vmatprep.mubr.bf16.mxu0 0
  %1801 = vmatmul.mubr.bf16.gmra.mrb[0].mxu0 %v1657
  %v1802 = vpop.f32.mrb[0].mxu0
  %v1803 = vadd.f32 %v1662, %v1802
  %v1804 = vpop.f32.mrb[0].mxu0
  %v1805 = vpop.f32.mrb[0].mxu0
  %v1806 = vadd.f32 %v1662, %v1805
  %v1807 = vpop.f32.mrb[0].mxu0
  %1808 = vdwg.mxu0
  %v1809 = vmax.f32 %v1747, 0.0
  %v1810 = vmax.f32 %v1750, 0.0
  %v1811 = vmax.f32 %v1755, 0.0
  %v1812 = vmax.f32 %v1758, 0.0
  %v1813 = vmax.f32 %v1763, 0.0
  %v1814 = vmax.f32 %v1766, 0.0
  %v1815 = vmax.f32 %v1771, 0.0
  %v1816 = vmax.f32 %v1774, 0.0
  %v1817 = vmax.f32 %v1779, 0.0
  %v1818 = vmax.f32 %v1782, 0.0
  %v1819 = vmax.f32 %v1787, 0.0
  %v1820 = vmax.f32 %v1790, 0.0
  %v1821 = vmax.f32 %v1795, 0.0
  %v1822 = vmax.f32 %v1798, 0.0
  %v1823 = vmax.f32 %v1803, 0.0
  %v1824 = vmax.f32 %v1806, 0.0
  %v1825 = vld [vmem:[%s23] sm:$0xf]
  %v1826 = vld [vmem:[%s23 + $0x4] sm:$0xf]
  %v1827 = vld [vmem:[%s23 + $0x8] sm:$0xf]
  %v1828 = vld [vmem:[%s23 + $0xc] sm:$0xf]
  %v1829 = vld [vmem:[%s23 + $0x10] sm:$0xf]
  %v1830 = vld [vmem:[%s23 + $0x14] sm:$0xf]
  %v1831 = vld [vmem:[%s23 + $0x18] sm:$0xf]
  %v1832 = vld [vmem:[%s23 + $0x1c] sm:$0xf]
  %v1833 = vld [vmem:[%s23 + $0x20] sm:$0xf]
  %v1834 = vld [vmem:[%s23 + $0x24] sm:$0xf]
  %v1835 = vld [vmem:[%s23 + $0x28] sm:$0xf]
  %v1836 = vld [vmem:[%s23 + $0x2c] sm:$0xf]
  %v1837 = vld [vmem:[%s23 + $0x30] sm:$0xf]
  %v1838 = vld [vmem:[%s23 + $0x34] sm:$0xf]
  %v1839 = vld [vmem:[%s23 + $0x38] sm:$0xf]
  %v1840 = vld [vmem:[%s23 + $0x3c] sm:$0xf]
  %v1841 = vld [vmem:[%s24] sm:$0x1]
  %v1842 = vpack.c.bf16 %v1810, %v1809
  %v1843 = vpack.c.bf16 %v1812, %v1811
  %v1844 = vpack.c.bf16 %v1814, %v1813
  %v1845 = vpack.c.bf16 %v1816, %v1815
  %v1846 = vpack.c.bf16 %v1818, %v1817
  %v1847 = vpack.c.bf16 %v1820, %v1819
  %v1848 = vpack.c.bf16 %v1822, %v1821
  %v1849 = vpack.c.bf16 %v1824, %v1823
  %v1851 = vlaneseq
  %v1852 = vshrl.u32 %v1851, 7
  %v1853 = vsub.s32 0, %v1852
  %v1854 = vrot.slane %v1841, %v1853
  %v1872 = vunpack.c.l.b16 %v1825
  %v1873 = vunpack.c.l.b16 %v1826
  %v1874 = vunpack.c.l.b16 %v1827
  %v1875 = vunpack.c.l.b16 %v1828
  %v1876 = vunpack.c.l.b16 %v1829
  %v1877 = vunpack.c.l.b16 %v1830
  %v1878 = vunpack.c.l.b16 %v1831
  %v1879 = vunpack.c.l.b16 %v1832
  %v1880 = vunpack.c.l.b16 %v1833
  %v1881 = vunpack.c.l.b16 %v1834
  %v1882 = vunpack.c.l.b16 %v1835
  %v1883 = vunpack.c.l.b16 %v1836
  %v1884 = vunpack.c.l.b16 %v1837
  %v1885 = vunpack.c.l.b16 %v1838
  %v1886 = vunpack.c.l.b16 %v1839
  %v1887 = vunpack.c.l.b16 %v1840
  %v1888 = vpack.c.b16 %v1873, %v1872
  %v1889 = vpack.c.b16 %v1875, %v1874
  %v1890 = vpack.c.b16 %v1877, %v1876
  %v1891 = vpack.c.b16 %v1879, %v1878
  %v1892 = vpack.c.b16 %v1881, %v1880
  %v1893 = vpack.c.b16 %v1883, %v1882
  %v1894 = vpack.c.b16 %v1885, %v1884
  %v1895 = vpack.c.b16 %v1887, %v1886
  %1904 = vmatprep.subr.bf16.mxu0 0
  %1905 = vmatpush1.bf16.msra.mxu0 %v1888
  %1906 = vmatprep.subr.bf16.mxu0 0
  %1907 = vmatpush1.bf16.msra.mxu0 %v1889
  %1908 = vmatprep.subr.bf16.mxu0 0
  %1909 = vmatpush1.bf16.msra.mxu0 %v1890
  %1910 = vmatprep.subr.bf16.mxu0 0
  %1911 = vmatpush1.bf16.msra.mxu0 %v1891
  %1912 = vmatprep.subr.bf16.mxu0 0
  %1913 = vmatpush1.bf16.msra.mxu0 %v1892
  %1914 = vmatprep.subr.bf16.mxu0 0
  %1915 = vmatpush1.bf16.msra.mxu0 %v1893
  %1916 = vmatprep.subr.bf16.mxu0 0
  %1917 = vmatpush1.bf16.msra.mxu0 %v1894
  %1918 = vmatprep.subr.bf16.mxu0 0
  %1919 = vmatpush1.bf16.msra.mxu0 %v1895
  %1920 = vmatprep.subr.bf16.mxu0 0
  %1921 = vmatpush1.bf16.msra.mxu0 0
  %1922 = vmatprep.subr.bf16.mxu0 0
  %1923 = vmatpush1.bf16.msra.mxu0 0
  %1924 = vmatprep.subr.bf16.mxu0 0
  %1925 = vmatpush1.bf16.msra.mxu0 0
  %1926 = vmatprep.subr.bf16.mxu0 0
  %1927 = vmatpush1.bf16.msra.mxu0 0
  %1928 = vmatprep.subr.bf16.mxu0 0
  %1929 = vmatpush1.bf16.msra.mxu0 0
  %1930 = vmatprep.subr.bf16.mxu0 0
  %1931 = vmatpush1.bf16.msra.mxu0 0
  %1932 = vmatprep.subr.bf16.mxu0 0
  %1933 = vmatpush1.bf16.msra.mxu0 0
  %1934 = vmatprep.subr.bf16.mxu0 0
  %1935 = vmatpush1.bf16.msra.mxu0 0
  %1936 = vmatprep.mubr.bf16.mxu0 0
  %1937 = vmatmul.mubr.bf16.gmra.mrb[0].mxu0 %v1842
  %v1938 = vpop.f32.mrb[0].mxu0
  %v1939 = vadd.f32 %v1854, %v1938
  %v1940 = vpop.f32.mrb[0].mxu0
  %v1941 = vpop.f32.mrb[0].mxu0
  %v1942 = vadd.f32 %v1854, %v1941
  %v1943 = vpop.f32.mrb[0].mxu0
  %1944 = vmatprep.mubr.bf16.mxu0 0
  %1945 = vmatmul.mubr.bf16.gmra.mrb[0].mxu0 %v1843
  %v1946 = vpop.f32.mrb[0].mxu0
  %v1947 = vadd.f32 %v1854, %v1946
  %v1948 = vpop.f32.mrb[0].mxu0
  %v1949 = vpop.f32.mrb[0].mxu0
  %v1950 = vadd.f32 %v1854, %v1949
  %v1951 = vpop.f32.mrb[0].mxu0
  %1952 = vmatprep.mubr.bf16.mxu0 0
  %1953 = vmatmul.mubr.bf16.gmra.mrb[0].mxu0 %v1844
  %v1954 = vpop.f32.mrb[0].mxu0
  %v1955 = vadd.f32 %v1854, %v1954
  %v1956 = vpop.f32.mrb[0].mxu0
  %v1957 = vpop.f32.mrb[0].mxu0
  %v1958 = vadd.f32 %v1854, %v1957
  %v1959 = vpop.f32.mrb[0].mxu0
  %1960 = vmatprep.mubr.bf16.mxu0 0
  %1961 = vmatmul.mubr.bf16.gmra.mrb[0].mxu0 %v1845
  %v1962 = vpop.f32.mrb[0].mxu0
  %v1963 = vadd.f32 %v1854, %v1962
  %v1964 = vpop.f32.mrb[0].mxu0
  %v1965 = vpop.f32.mrb[0].mxu0
  %v1966 = vadd.f32 %v1854, %v1965
  %v1967 = vpop.f32.mrb[0].mxu0
  %1968 = vmatprep.mubr.bf16.mxu0 0
  %1969 = vmatmul.mubr.bf16.gmra.mrb[0].mxu0 %v1846
  %v1970 = vpop.f32.mrb[0].mxu0
  %v1971 = vadd.f32 %v1854, %v1970
  %v1972 = vpop.f32.mrb[0].mxu0
  %v1973 = vpop.f32.mrb[0].mxu0
  %v1974 = vadd.f32 %v1854, %v1973
  %v1975 = vpop.f32.mrb[0].mxu0
  %1976 = vmatprep.mubr.bf16.mxu0 0
  %1977 = vmatmul.mubr.bf16.gmra.mrb[0].mxu0 %v1847
  %v1978 = vpop.f32.mrb[0].mxu0
  %v1979 = vadd.f32 %v1854, %v1978
  %v1980 = vpop.f32.mrb[0].mxu0
  %v1981 = vpop.f32.mrb[0].mxu0
  %v1982 = vadd.f32 %v1854, %v1981
  %v1983 = vpop.f32.mrb[0].mxu0
  %1984 = vmatprep.mubr.bf16.mxu0 0
  %1985 = vmatmul.mubr.bf16.gmra.mrb[0].mxu0 %v1848
  %v1986 = vpop.f32.mrb[0].mxu0
  %v1987 = vadd.f32 %v1854, %v1986
  %v1988 = vpop.f32.mrb[0].mxu0
  %v1989 = vpop.f32.mrb[0].mxu0
  %v1990 = vadd.f32 %v1854, %v1989
  %v1991 = vpop.f32.mrb[0].mxu0
  %1992 = vmatprep.mubr.bf16.mxu0 0
  %1993 = vmatmul.mubr.bf16.gmra.mrb[0].mxu0 %v1849
  %v1994 = vpop.f32.mrb[0].mxu0
  %v1995 = vadd.f32 %v1854, %v1994
  %v1996 = vpop.f32.mrb[0].mxu0
  %v1997 = vpop.f32.mrb[0].mxu0
  %v1998 = vadd.f32 %v1854, %v1997
  %v1999 = vpop.f32.mrb[0].mxu0
  %2000 = vdwg.mxu0
  %v2001 = vmax.f32 %v1939, 0.0
  %v2002 = vmax.f32 %v1942, 0.0
  %v2003 = vmax.f32 %v1947, 0.0
  %v2004 = vmax.f32 %v1950, 0.0
  %v2005 = vmax.f32 %v1955, 0.0
  %v2006 = vmax.f32 %v1958, 0.0
  %v2007 = vmax.f32 %v1963, 0.0
  %v2008 = vmax.f32 %v1966, 0.0
  %v2009 = vmax.f32 %v1971, 0.0
  %v2010 = vmax.f32 %v1974, 0.0
  %v2011 = vmax.f32 %v1979, 0.0
  %v2012 = vmax.f32 %v1982, 0.0
  %v2013 = vmax.f32 %v1987, 0.0
  %v2014 = vmax.f32 %v1990, 0.0
  %v2015 = vmax.f32 %v1995, 0.0
  %v2016 = vmax.f32 %v1998, 0.0
  %v2017 = vld [vmem:[%s25] sm:$0xff]
  %v2018 = vld [vmem:[%s25 + $0x8] sm:$0xff]
  %v2019 = vld [vmem:[%s25 + $0x10] sm:$0xff]
  %v2020 = vld [vmem:[%s25 + $0x18] sm:$0xff]
  %v2021 = vld [vmem:[%s25 + $0x20] sm:$0xff]
  %v2022 = vld [vmem:[%s25 + $0x28] sm:$0xff]
  %v2023 = vld [vmem:[%s25 + $0x30] sm:$0xff]
  %v2024 = vld [vmem:[%s25 + $0x38] sm:$0xff]
  %v2025 = vld [vmem:[%s25 + $0x40] sm:$0xff]
  %v2026 = vld [vmem:[%s25 + $0x48] sm:$0xff]
  %v2027 = vld [vmem:[%s25 + $0x50] sm:$0xff]
  %v2028 = vld [vmem:[%s25 + $0x58] sm:$0xff]
  %v2029 = vld [vmem:[%s25 + $0x60] sm:$0xff]
  %v2030 = vld [vmem:[%s25 + $0x68] sm:$0xff]
  %v2031 = vld [vmem:[%s25 + $0x70] sm:$0xff]
  %v2032 = vld [vmem:[%s25 + $0x78] sm:$0xff]
  %v2033 = vld [vmem:[%s25 + $0x80] sm:$0xff]
  %v2034 = vld [vmem:[%s25 + $0x88] sm:$0xff]
  %v2035 = vld [vmem:[%s25 + $0x90] sm:$0xff]
  %v2036 = vld [vmem:[%s25 + $0x98] sm:$0xff]
  %v2037 = vld [vmem:[%s25 + $0xa0] sm:$0xff]
  %v2038 = vld [vmem:[%s25 + $0xa8] sm:$0xff]
  %v2039 = vld [vmem:[%s25 + $0xb0] sm:$0xff]
  %v2040 = vld [vmem:[%s25 + $0xb8] sm:$0xff]
  %v2041 = vld [vmem:[%s25 + $0xc0] sm:$0xff]
  %v2042 = vld [vmem:[%s25 + $0xc8] sm:$0xff]
  %v2043 = vld [vmem:[%s25 + $0xd0] sm:$0xff]
  %v2044 = vld [vmem:[%s25 + $0xd8] sm:$0xff]
  %v2045 = vld [vmem:[%s25 + $0xe0] sm:$0xff]
  %v2046 = vld [vmem:[%s25 + $0xe8] sm:$0xff]
  %v2047 = vld [vmem:[%s25 + $0xf0] sm:$0xff]
  %v2048 = vld [vmem:[%s25 + $0xf8] sm:$0xff]
  %v2049 = vld [vmem:[%s26] sm:$0xf]
  %v2050 = vpack.c.bf16 %v2002, %v2001
  %v2051 = vpack.c.bf16 %v2004, %v2003
  %v2052 = vpack.c.bf16 %v2006, %v2005
  %v2053 = vpack.c.bf16 %v2008, %v2007
  %v2054 = vpack.c.bf16 %v2010, %v2009
  %v2055 = vpack.c.bf16 %v2012, %v2011
  %v2056 = vpack.c.bf16 %v2014, %v2013
  %v2057 = vpack.c.bf16 %v2016, %v2015
  %v2059 = vlaneseq
  %v2060 = vshrl.u32 %v2059, 7
  %v2061 = vsub.s32 0, %v2060
  %v2062 = vrot.slane %v2049, %v2061
  %v2063 = vlaneseq
  %v2064 = vshrl.u32 %v2063, 7
  %v2065 = vsub.s32 1, %v2064
  %v2066 = vrot.slane %v2049, %v2065
  %v2067 = vlaneseq
  %v2068 = vshrl.u32 %v2067, 7
  %v2069 = vsub.s32 2, %v2068
  %v2070 = vrot.slane %v2049, %v2069
  %v2071 = vlaneseq
  %v2072 = vshrl.u32 %v2071, 7
  %v2073 = vsub.s32 3, %v2072
  %v2074 = vrot.slane %v2049, %v2073
  %v2111 = vunpack.c.l.b16 %v2017
  %v2112 = vunpack.c.h.b16 %v2017
  %v2113 = vunpack.c.l.b16 %v2018
  %v2114 = vunpack.c.h.b16 %v2018
  %v2115 = vunpack.c.l.b16 %v2019
  %v2116 = vunpack.c.h.b16 %v2019
  %v2117 = vunpack.c.l.b16 %v2020
  %v2118 = vunpack.c.h.b16 %v2020
  %v2119 = vunpack.c.l.b16 %v2021
  %v2120 = vunpack.c.h.b16 %v2021
  %v2121 = vunpack.c.l.b16 %v2022
  %v2122 = vunpack.c.h.b16 %v2022
  %v2123 = vunpack.c.l.b16 %v2023
  %v2124 = vunpack.c.h.b16 %v2023
  %v2125 = vunpack.c.l.b16 %v2024
  %v2126 = vunpack.c.h.b16 %v2024
  %v2127 = vunpack.c.l.b16 %v2025
  %v2128 = vunpack.c.h.b16 %v2025
  %v2129 = vunpack.c.l.b16 %v2026
  %v2130 = vunpack.c.h.b16 %v2026
  %v2131 = vunpack.c.l.b16 %v2027
  %v2132 = vunpack.c.h.b16 %v2027
  %v2133 = vunpack.c.l.b16 %v2028
  %v2134 = vunpack.c.h.b16 %v2028
  %v2135 = vunpack.c.l.b16 %v2029
  %v2136 = vunpack.c.h.b16 %v2029
  %v2137 = vunpack.c.l.b16 %v2030
  %v2138 = vunpack.c.h.b16 %v2030
  %v2139 = vunpack.c.l.b16 %v2031
  %v2140 = vunpack.c.h.b16 %v2031
  %v2141 = vunpack.c.l.b16 %v2032
  %v2142 = vunpack.c.h.b16 %v2032
  %v2143 = vunpack.c.l.b16 %v2033
  %v2144 = vunpack.c.h.b16 %v2033
  %v2145 = vunpack.c.l.b16 %v2034
  %v2146 = vunpack.c.h.b16 %v2034
  %v2147 = vunpack.c.l.b16 %v2035
  %v2148 = vunpack.c.h.b16 %v2035
  %v2149 = vunpack.c.l.b16 %v2036
  %v2150 = vunpack.c.h.b16 %v2036
  %v2151 = vunpack.c.l.b16 %v2037
  %v2152 = vunpack.c.h.b16 %v2037
  %v2153 = vunpack.c.l.b16 %v2038
  %v2154 = vunpack.c.h.b16 %v2038
  %v2155 = vunpack.c.l.b16 %v2039
  %v2156 = vunpack.c.h.b16 %v2039
  %v2157 = vunpack.c.l.b16 %v2040
  %v2158 = vunpack.c.h.b16 %v2040
  %v2159 = vunpack.c.l.b16 %v2041
  %v2160 = vunpack.c.h.b16 %v2041
  %v2161 = vunpack.c.l.b16 %v2042
  %v2162 = vunpack.c.h.b16 %v2042
  %v2163 = vunpack.c.l.b16 %v2043
  %v2164 = vunpack.c.h.b16 %v2043
  %v2165 = vunpack.c.l.b16 %v2044
  %v2166 = vunpack.c.h.b16 %v2044
  %v2167 = vunpack.c.l.b16 %v2045
  %v2168 = vunpack.c.h.b16 %v2045
  %v2169 = vunpack.c.l.b16 %v2046
  %v2170 = vunpack.c.h.b16 %v2046
  %v2171 = vunpack.c.l.b16 %v2047
  %v2172 = vunpack.c.h.b16 %v2047
  %v2173 = vunpack.c.l.b16 %v2048
  %v2174 = vunpack.c.h.b16 %v2048
  %v2175 = vpack.c.b16 %v2115, %v2111
  %v2176 = vpack.c.b16 %v2116, %v2112
  %v2177 = vpack.c.b16 %v2117, %v2113
  %v2178 = vpack.c.b16 %v2118, %v2114
  %v2179 = vpack.c.b16 %v2123, %v2119
  %v2180 = vpack.c.b16 %v2124, %v2120
  %v2181 = vpack.c.b16 %v2125, %v2121
  %v2182 = vpack.c.b16 %v2126, %v2122
  %v2183 = vpack.c.b16 %v2131, %v2127
  %v2184 = vpack.c.b16 %v2132, %v2128
  %v2185 = vpack.c.b16 %v2133, %v2129
  %v2186 = vpack.c.b16 %v2134, %v2130
  %v2187 = vpack.c.b16 %v2139, %v2135
  %v2188 = vpack.c.b16 %v2140, %v2136
  %v2189 = vpack.c.b16 %v2141, %v2137
  %v2190 = vpack.c.b16 %v2142, %v2138
  %v2191 = vpack.c.b16 %v2147, %v2143
  %v2192 = vpack.c.b16 %v2148, %v2144
  %v2193 = vpack.c.b16 %v2149, %v2145
  %v2194 = vpack.c.b16 %v2150, %v2146
  %v2195 = vpack.c.b16 %v2155, %v2151
  %v2196 = vpack.c.b16 %v2156, %v2152
  %v2197 = vpack.c.b16 %v2157, %v2153
  %v2198 = vpack.c.b16 %v2158, %v2154
  %v2199 = vpack.c.b16 %v2163, %v2159
  %v2200 = vpack.c.b16 %v2164, %v2160
  %v2201 = vpack.c.b16 %v2165, %v2161
  %v2202 = vpack.c.b16 %v2166, %v2162
  %v2203 = vpack.c.b16 %v2171, %v2167
  %v2204 = vpack.c.b16 %v2172, %v2168
  %v2205 = vpack.c.b16 %v2173, %v2169
  %v2206 = vpack.c.b16 %v2174, %v2170
  %2239 = vmatprep.subr.bf16.mxu0 %v2176
  %2240 = vmatpush1.bf16.msra.mxu0 %v2175
  %2241 = vmatprep.subr.bf16.mxu0 %v2180
  %2242 = vmatpush1.bf16.msra.mxu0 %v2179
  %2243 = vmatprep.subr.bf16.mxu0 %v2184
  %2244 = vmatpush1.bf16.msra.mxu0 %v2183
  %2245 = vmatprep.subr.bf16.mxu0 %v2188
  %2246 = vmatpush1.bf16.msra.mxu0 %v2187
  %2247 = vmatprep.subr.bf16.mxu0 %v2192
  %2248 = vmatpush1.bf16.msra.mxu0 %v2191
  %2249 = vmatprep.subr.bf16.mxu0 %v2196
  %2250 = vmatpush1.bf16.msra.mxu0 %v2195
  %2251 = vmatprep.subr.bf16.mxu0 %v2200
  %2252 = vmatpush1.bf16.msra.mxu0 %v2199
  %2253 = vmatprep.subr.bf16.mxu0 %v2204
  %2254 = vmatpush1.bf16.msra.mxu0 %v2203
  %2255 = vmatprep.subr.bf16.mxu0 0
  %2256 = vmatpush1.bf16.msra.mxu0 0
  %2257 = vmatprep.subr.bf16.mxu0 0
  %2258 = vmatpush1.bf16.msra.mxu0 0
  %2259 = vmatprep.subr.bf16.mxu0 0
  %2260 = vmatpush1.bf16.msra.mxu0 0
  %2261 = vmatprep.subr.bf16.mxu0 0
  %2262 = vmatpush1.bf16.msra.mxu0 0
  %2263 = vmatprep.subr.bf16.mxu0 0
  %2264 = vmatpush1.bf16.msra.mxu0 0
  %2265 = vmatprep.subr.bf16.mxu0 0
  %2266 = vmatpush1.bf16.msra.mxu0 0
  %2267 = vmatprep.subr.bf16.mxu0 0
  %2268 = vmatpush1.bf16.msra.mxu0 0
  %2269 = vmatprep.subr.bf16.mxu0 0
  %2270 = vmatpush1.bf16.msra.mxu0 0
  %2271 = vmatprep.mubr.bf16.mxu0 0
  %2272 = vmatmul.mubr.bf16.gmra.mrb[0].mxu0 %v2050
  %v2273 = vpop.f32.mrb[0].mxu0
  %v2274 = vadd.f32 %v2062, %v2273
  %v2275 = vpop.f32.mrb[0].mxu0
  %v2276 = vadd.f32 %v2066, %v2275
  %v2277 = vpop.f32.mrb[0].mxu0
  %v2278 = vadd.f32 %v2062, %v2277
  %v2279 = vpop.f32.mrb[0].mxu0
  %v2280 = vadd.f32 %v2066, %v2279
  %2281 = vmatprep.mubr.bf16.mxu0 0
  %2282 = vmatmul.mubr.bf16.gmra.mrb[0].mxu0 %v2051
  %v2283 = vpop.f32.mrb[0].mxu0
  %v2284 = vadd.f32 %v2062, %v2283
  %v2285 = vpop.f32.mrb[0].mxu0
  %v2286 = vadd.f32 %v2066, %v2285
  %v2287 = vpop.f32.mrb[0].mxu0
  %v2288 = vadd.f32 %v2062, %v2287
  %v2289 = vpop.f32.mrb[0].mxu0
  %v2290 = vadd.f32 %v2066, %v2289
  %2291 = vmatprep.mubr.bf16.mxu0 0
  %2292 = vmatmul.mubr.bf16.gmra.mrb[0].mxu0 %v2052
  %v2293 = vpop.f32.mrb[0].mxu0
  %v2294 = vadd.f32 %v2062, %v2293
  %v2295 = vpop.f32.mrb[0].mxu0
  %v2296 = vadd.f32 %v2066, %v2295
  %v2297 = vpop.f32.mrb[0].mxu0
  %v2298 = vadd.f32 %v2062, %v2297
  %v2299 = vpop.f32.mrb[0].mxu0
  %v2300 = vadd.f32 %v2066, %v2299
  %2301 = vmatprep.mubr.bf16.mxu0 0
  %2302 = vmatmul.mubr.bf16.gmra.mrb[0].mxu0 %v2053
  %v2303 = vpop.f32.mrb[0].mxu0
  %v2304 = vadd.f32 %v2062, %v2303
  %v2305 = vpop.f32.mrb[0].mxu0
  %v2306 = vadd.f32 %v2066, %v2305
  %v2307 = vpop.f32.mrb[0].mxu0
  %v2308 = vadd.f32 %v2062, %v2307
  %v2309 = vpop.f32.mrb[0].mxu0
  %v2310 = vadd.f32 %v2066, %v2309
  %2311 = vmatprep.mubr.bf16.mxu0 0
  %2312 = vmatmul.mubr.bf16.gmra.mrb[0].mxu0 %v2054
  %v2313 = vpop.f32.mrb[0].mxu0
  %v2314 = vadd.f32 %v2062, %v2313
  %v2315 = vpop.f32.mrb[0].mxu0
  %v2316 = vadd.f32 %v2066, %v2315
  %v2317 = vpop.f32.mrb[0].mxu0
  %v2318 = vadd.f32 %v2062, %v2317
  %v2319 = vpop.f32.mrb[0].mxu0
  %v2320 = vadd.f32 %v2066, %v2319
  %2321 = vmatprep.mubr.bf16.mxu0 0
  %2322 = vmatmul.mubr.bf16.gmra.mrb[0].mxu0 %v2055
  %v2323 = vpop.f32.mrb[0].mxu0
  %v2324 = vadd.f32 %v2062, %v2323
  %v2325 = vpop.f32.mrb[0].mxu0
  %v2326 = vadd.f32 %v2066, %v2325
  %v2327 = vpop.f32.mrb[0].mxu0
  %v2328 = vadd.f32 %v2062, %v2327
  %v2329 = vpop.f32.mrb[0].mxu0
  %v2330 = vadd.f32 %v2066, %v2329
  %2331 = vmatprep.mubr.bf16.mxu0 0
  %2332 = vmatmul.mubr.bf16.gmra.mrb[0].mxu0 %v2056
  %v2333 = vpop.f32.mrb[0].mxu0
  %v2334 = vadd.f32 %v2062, %v2333
  %v2335 = vpop.f32.mrb[0].mxu0
  %v2336 = vadd.f32 %v2066, %v2335
  %v2337 = vpop.f32.mrb[0].mxu0
  %v2338 = vadd.f32 %v2062, %v2337
  %v2339 = vpop.f32.mrb[0].mxu0
  %v2340 = vadd.f32 %v2066, %v2339
  %2341 = vmatprep.mubr.bf16.mxu0 0
  %2342 = vmatmul.mubr.bf16.gmra.mrb[0].mxu0 %v2057
  %v2343 = vpop.f32.mrb[0].mxu0
  %v2344 = vadd.f32 %v2062, %v2343
  %v2345 = vpop.f32.mrb[0].mxu0
  %v2346 = vadd.f32 %v2066, %v2345
  %v2347 = vpop.f32.mrb[0].mxu0
  %v2348 = vadd.f32 %v2062, %v2347
  %v2349 = vpop.f32.mrb[0].mxu0
  %v2350 = vadd.f32 %v2066, %v2349
  %2351 = vdwg.mxu0
  %2352 = vmatprep.subr.bf16.mxu0 %v2178
  %2353 = vmatpush1.bf16.msra.mxu0 %v2177
  %2354 = vmatprep.subr.bf16.mxu0 %v2182
  %2355 = vmatpush1.bf16.msra.mxu0 %v2181
  %2356 = vmatprep.subr.bf16.mxu0 %v2186
  %2357 = vmatpush1.bf16.msra.mxu0 %v2185
  %2358 = vmatprep.subr.bf16.mxu0 %v2190
  %2359 = vmatpush1.bf16.msra.mxu0 %v2189
  %2360 = vmatprep.subr.bf16.mxu0 %v2194
  %2361 = vmatpush1.bf16.msra.mxu0 %v2193
  %2362 = vmatprep.subr.bf16.mxu0 %v2198
  %2363 = vmatpush1.bf16.msra.mxu0 %v2197
  %2364 = vmatprep.subr.bf16.mxu0 %v2202
  %2365 = vmatpush1.bf16.msra.mxu0 %v2201
  %2366 = vmatprep.subr.bf16.mxu0 %v2206
  %2367 = vmatpush1.bf16.msra.mxu0 %v2205
  %2368 = vmatprep.subr.bf16.mxu0 0
  %2369 = vmatpush1.bf16.msra.mxu0 0
  %2370 = vmatprep.subr.bf16.mxu0 0
  %2371 = vmatpush1.bf16.msra.mxu0 0
  %2372 = vmatprep.subr.bf16.mxu0 0
  %2373 = vmatpush1.bf16.msra.mxu0 0
  %2374 = vmatprep.subr.bf16.mxu0 0
  %2375 = vmatpush1.bf16.msra.mxu0 0
  %2376 = vmatprep.subr.bf16.mxu0 0
  %2377 = vmatpush1.bf16.msra.mxu0 0
  %2378 = vmatprep.subr.bf16.mxu0 0
  %2379 = vmatpush1.bf16.msra.mxu0 0
  %2380 = vmatprep.subr.bf16.mxu0 0
  %2381 = vmatpush1.bf16.msra.mxu0 0
  %2382 = vmatprep.subr.bf16.mxu0 0
  %2383 = vmatpush1.bf16.msra.mxu0 0
  %2384 = vmatprep.mubr.bf16.mxu0 0
  %2385 = vmatmul.mubr.bf16.gmra.mrb[0].mxu0 %v2050
  %v2386 = vpop.f32.mrb[0].mxu0
  %v2387 = vadd.f32 %v2070, %v2386
  %v2388 = vpop.f32.mrb[0].mxu0
  %v2389 = vadd.f32 %v2074, %v2388
  %v2390 = vpop.f32.mrb[0].mxu0
  %v2391 = vadd.f32 %v2070, %v2390
  %v2392 = vpop.f32.mrb[0].mxu0
  %v2393 = vadd.f32 %v2074, %v2392
  %2394 = vmatprep.mubr.bf16.mxu0 0
  %2395 = vmatmul.mubr.bf16.gmra.mrb[0].mxu0 %v2051
  %v2396 = vpop.f32.mrb[0].mxu0
  %v2397 = vadd.f32 %v2070, %v2396
  %v2398 = vpop.f32.mrb[0].mxu0
  %v2399 = vadd.f32 %v2074, %v2398
  %v2400 = vpop.f32.mrb[0].mxu0
  %v2401 = vadd.f32 %v2070, %v2400
  %v2402 = vpop.f32.mrb[0].mxu0
  %v2403 = vadd.f32 %v2074, %v2402
  %2404 = vmatprep.mubr.bf16.mxu0 0
  %2405 = vmatmul.mubr.bf16.gmra.mrb[0].mxu0 %v2052
  %v2406 = vpop.f32.mrb[0].mxu0
  %v2407 = vadd.f32 %v2070, %v2406
  %v2408 = vpop.f32.mrb[0].mxu0
  %v2409 = vadd.f32 %v2074, %v2408
  %v2410 = vpop.f32.mrb[0].mxu0
  %v2411 = vadd.f32 %v2070, %v2410
  %v2412 = vpop.f32.mrb[0].mxu0
  %v2413 = vadd.f32 %v2074, %v2412
  %2414 = vmatprep.mubr.bf16.mxu0 0
  %2415 = vmatmul.mubr.bf16.gmra.mrb[0].mxu0 %v2053
  %v2416 = vpop.f32.mrb[0].mxu0
  %v2417 = vadd.f32 %v2070, %v2416
  %v2418 = vpop.f32.mrb[0].mxu0
  %v2419 = vadd.f32 %v2074, %v2418
  %v2420 = vpop.f32.mrb[0].mxu0
  %v2421 = vadd.f32 %v2070, %v2420
  %v2422 = vpop.f32.mrb[0].mxu0
  %v2423 = vadd.f32 %v2074, %v2422
  %2424 = vmatprep.mubr.bf16.mxu0 0
  %2425 = vmatmul.mubr.bf16.gmra.mrb[0].mxu0 %v2054
  %v2426 = vpop.f32.mrb[0].mxu0
  %v2427 = vadd.f32 %v2070, %v2426
  %v2428 = vpop.f32.mrb[0].mxu0
  %v2429 = vadd.f32 %v2074, %v2428
  %v2430 = vpop.f32.mrb[0].mxu0
  %v2431 = vadd.f32 %v2070, %v2430
  %v2432 = vpop.f32.mrb[0].mxu0
  %v2433 = vadd.f32 %v2074, %v2432
  %2434 = vmatprep.mubr.bf16.mxu0 0
  %2435 = vmatmul.mubr.bf16.gmra.mrb[0].mxu0 %v2055
  %v2436 = vpop.f32.mrb[0].mxu0
  %v2437 = vadd.f32 %v2070, %v2436
  %v2438 = vpop.f32.mrb[0].mxu0
  %v2439 = vadd.f32 %v2074, %v2438
  %v2440 = vpop.f32.mrb[0].mxu0
  %v2441 = vadd.f32 %v2070, %v2440
  %v2442 = vpop.f32.mrb[0].mxu0
  %v2443 = vadd.f32 %v2074, %v2442
  %2444 = vmatprep.mubr.bf16.mxu0 0
  %2445 = vmatmul.mubr.bf16.gmra.mrb[0].mxu0 %v2056
  %v2446 = vpop.f32.mrb[0].mxu0
  %v2447 = vadd.f32 %v2070, %v2446
  %v2448 = vpop.f32.mrb[0].mxu0
  %v2449 = vadd.f32 %v2074, %v2448
  %v2450 = vpop.f32.mrb[0].mxu0
  %v2451 = vadd.f32 %v2070, %v2450
  %v2452 = vpop.f32.mrb[0].mxu0
  %v2453 = vadd.f32 %v2074, %v2452
  %2454 = vmatprep.mubr.bf16.mxu0 0
  %2455 = vmatmul.mubr.bf16.gmra.mrb[0].mxu0 %v2057
  %v2456 = vpop.f32.mrb[0].mxu0
  %v2457 = vadd.f32 %v2070, %v2456
  %v2458 = vpop.f32.mrb[0].mxu0
  %v2459 = vadd.f32 %v2074, %v2458
  %v2460 = vpop.f32.mrb[0].mxu0
  %v2461 = vadd.f32 %v2070, %v2460
  %v2462 = vpop.f32.mrb[0].mxu0
  %v2463 = vadd.f32 %v2074, %v2462
  %2464 = vdwg.mxu0
  %v2465 = vmul.f32 %v2274, %v2274
  %v2466 = vmul.f32 %v2276, %v2276
  %v2467 = vmul.f32 %v2387, %v2387
  %v2468 = vmul.f32 %v2389, %v2389
  %v2469 = vmul.f32 %v2278, %v2278
  %v2470 = vmul.f32 %v2280, %v2280
  %v2471 = vmul.f32 %v2391, %v2391
  %v2472 = vmul.f32 %v2393, %v2393
  %v2473 = vmul.f32 %v2284, %v2284
  %v2474 = vmul.f32 %v2286, %v2286
  %v2475 = vmul.f32 %v2397, %v2397
  %v2476 = vmul.f32 %v2399, %v2399
  %v2477 = vmul.f32 %v2288, %v2288
  %v2478 = vmul.f32 %v2290, %v2290
  %v2479 = vmul.f32 %v2401, %v2401
  %v2480 = vmul.f32 %v2403, %v2403
  %v2481 = vmul.f32 %v2294, %v2294
  %v2482 = vmul.f32 %v2296, %v2296
  %v2483 = vmul.f32 %v2407, %v2407
  %v2484 = vmul.f32 %v2409, %v2409
  %v2485 = vmul.f32 %v2298, %v2298
  %v2486 = vmul.f32 %v2300, %v2300
  %v2487 = vmul.f32 %v2411, %v2411
  %v2488 = vmul.f32 %v2413, %v2413
  %v2489 = vmul.f32 %v2304, %v2304
  %v2490 = vmul.f32 %v2306, %v2306
  %v2491 = vmul.f32 %v2417, %v2417
  %v2492 = vmul.f32 %v2419, %v2419
  %v2493 = vmul.f32 %v2308, %v2308
  %v2494 = vmul.f32 %v2310, %v2310
  %v2495 = vmul.f32 %v2421, %v2421
  %v2496 = vmul.f32 %v2423, %v2423
  %v2497 = vmul.f32 %v2314, %v2314
  %v2498 = vmul.f32 %v2316, %v2316
  %v2499 = vmul.f32 %v2427, %v2427
  %v2500 = vmul.f32 %v2429, %v2429
  %v2501 = vmul.f32 %v2318, %v2318
  %v2502 = vmul.f32 %v2320, %v2320
  %v2503 = vmul.f32 %v2431, %v2431
  %v2504 = vmul.f32 %v2433, %v2433
  %v2505 = vmul.f32 %v2324, %v2324
  %v2506 = vmul.f32 %v2326, %v2326
  %v2507 = vmul.f32 %v2437, %v2437
  %v2508 = vmul.f32 %v2439, %v2439
  %v2509 = vmul.f32 %v2328, %v2328
  %v2510 = vmul.f32 %v2330, %v2330
  %v2511 = vmul.f32 %v2441, %v2441
  %v2512 = vmul.f32 %v2443, %v2443
  %v2513 = vmul.f32 %v2334, %v2334
  %v2514 = vmul.f32 %v2336, %v2336
  %v2515 = vmul.f32 %v2447, %v2447
  %v2516 = vmul.f32 %v2449, %v2449
  %v2517 = vmul.f32 %v2338, %v2338
  %v2518 = vmul.f32 %v2340, %v2340
  %v2519 = vmul.f32 %v2451, %v2451
  %v2520 = vmul.f32 %v2453, %v2453
  %v2521 = vmul.f32 %v2344, %v2344
  %v2522 = vmul.f32 %v2346, %v2346
  %v2523 = vmul.f32 %v2457, %v2457
  %v2524 = vmul.f32 %v2459, %v2459
  %v2525 = vmul.f32 %v2348, %v2348
  %v2526 = vmul.f32 %v2350, %v2350
  %v2527 = vmul.f32 %v2461, %v2461
  %v2528 = vmul.f32 %v2463, %v2463
  %v2529 = vadd.f32 %v2465, %v2466
  %v2530 = vadd.f32 %v2529, %v2467
  %v2531 = vadd.f32 %v2530, %v2468
  %2532 = vadd.xlane.f32.xlu0 %v2531
  %v2533 = vpop.xlane.xlu0 %2532
  %v2534 = vadd.f32 %v2469, %v2470
  %v2535 = vadd.f32 %v2534, %v2471
  %v2536 = vadd.f32 %v2535, %v2472
  %2537 = vadd.xlane.f32.xlu0 %v2536
  %v2538 = vpop.xlane.xlu0 %2537
  %v2539 = vadd.f32 %v2473, %v2474
  %v2540 = vadd.f32 %v2539, %v2475
  %v2541 = vadd.f32 %v2540, %v2476
  %2542 = vadd.xlane.f32.xlu0 %v2541
  %v2543 = vpop.xlane.xlu0 %2542
  %v2544 = vadd.f32 %v2477, %v2478
  %v2545 = vadd.f32 %v2544, %v2479
  %v2546 = vadd.f32 %v2545, %v2480
  %2547 = vadd.xlane.f32.xlu0 %v2546
  %v2548 = vpop.xlane.xlu0 %2547
  %v2549 = vadd.f32 %v2481, %v2482
  %v2550 = vadd.f32 %v2549, %v2483
  %v2551 = vadd.f32 %v2550, %v2484
  %2552 = vadd.xlane.f32.xlu0 %v2551
  %v2553 = vpop.xlane.xlu0 %2552
  %v2554 = vadd.f32 %v2485, %v2486
  %v2555 = vadd.f32 %v2554, %v2487
  %v2556 = vadd.f32 %v2555, %v2488
  %2557 = vadd.xlane.f32.xlu0 %v2556
  %v2558 = vpop.xlane.xlu0 %2557
  %v2559 = vadd.f32 %v2489, %v2490
  %v2560 = vadd.f32 %v2559, %v2491
  %v2561 = vadd.f32 %v2560, %v2492
  %2562 = vadd.xlane.f32.xlu0 %v2561
  %v2563 = vpop.xlane.xlu0 %2562
  %v2564 = vadd.f32 %v2493, %v2494
  %v2565 = vadd.f32 %v2564, %v2495
  %v2566 = vadd.f32 %v2565, %v2496
  %2567 = vadd.xlane.f32.xlu0 %v2566
  %v2568 = vpop.xlane.xlu0 %2567
  %v2569 = vadd.f32 %v2497, %v2498
  %v2570 = vadd.f32 %v2569, %v2499
  %v2571 = vadd.f32 %v2570, %v2500
  %2572 = vadd.xlane.f32.xlu0 %v2571
  %v2573 = vpop.xlane.xlu0 %2572
  %v2574 = vadd.f32 %v2501, %v2502
  %v2575 = vadd.f32 %v2574, %v2503
  %v2576 = vadd.f32 %v2575, %v2504
  %2577 = vadd.xlane.f32.xlu0 %v2576
  %v2578 = vpop.xlane.xlu0 %2577
  %v2579 = vadd.f32 %v2505, %v2506
  %v2580 = vadd.f32 %v2579, %v2507
  %v2581 = vadd.f32 %v2580, %v2508
  %2582 = vadd.xlane.f32.xlu0 %v2581
  %v2583 = vpop.xlane.xlu0 %2582
  %v2584 = vadd.f32 %v2509, %v2510
  %v2585 = vadd.f32 %v2584, %v2511
  %v2586 = vadd.f32 %v2585, %v2512
  %2587 = vadd.xlane.f32.xlu0 %v2586
  %v2588 = vpop.xlane.xlu0 %2587
  %v2589 = vadd.f32 %v2513, %v2514
  %v2590 = vadd.f32 %v2589, %v2515
  %v2591 = vadd.f32 %v2590, %v2516
  %2592 = vadd.xlane.f32.xlu0 %v2591
  %v2593 = vpop.xlane.xlu0 %2592
  %v2594 = vadd.f32 %v2517, %v2518
  %v2595 = vadd.f32 %v2594, %v2519
  %v2596 = vadd.f32 %v2595, %v2520
  %2597 = vadd.xlane.f32.xlu0 %v2596
  %v2598 = vpop.xlane.xlu0 %2597
  %v2599 = vadd.f32 %v2521, %v2522
  %v2600 = vadd.f32 %v2599, %v2523
  %v2601 = vadd.f32 %v2600, %v2524
  %2602 = vadd.xlane.f32.xlu0 %v2601
  %v2603 = vpop.xlane.xlu0 %2602
  %v2604 = vadd.f32 %v2525, %v2526
  %v2605 = vadd.f32 %v2604, %v2527
  %v2606 = vadd.f32 %v2605, %v2528
  %2607 = vadd.xlane.f32.xlu0 %v2606
  %v2608 = vpop.xlane.xlu0 %2607
  %v2609 = vmax.f32 %v2533, 1e-24
  %v2610 = vmax.f32 %v2538, 1e-24
  %v2611 = vmax.f32 %v2543, 1e-24
  %v2612 = vmax.f32 %v2548, 1e-24
  %v2613 = vmax.f32 %v2553, 1e-24
  %v2614 = vmax.f32 %v2558, 1e-24
  %v2615 = vmax.f32 %v2563, 1e-24
  %v2616 = vmax.f32 %v2568, 1e-24
  %v2617 = vmax.f32 %v2573, 1e-24
  %v2618 = vmax.f32 %v2578, 1e-24
  %v2619 = vmax.f32 %v2583, 1e-24
  %v2620 = vmax.f32 %v2588, 1e-24
  %v2621 = vmax.f32 %v2593, 1e-24
  %v2622 = vmax.f32 %v2598, 1e-24
  %v2623 = vmax.f32 %v2603, 1e-24
  %v2624 = vmax.f32 %v2608, 1e-24
  %v2625 = vrsqrt.pop %v2609
  %v2626 = vrsqrt.pop %v2610
  %v2627 = vrsqrt.pop %v2611
  %v2628 = vrsqrt.pop %v2612
  %v2629 = vrsqrt.pop %v2613
  %v2630 = vrsqrt.pop %v2614
  %v2631 = vrsqrt.pop %v2615
  %v2632 = vrsqrt.pop %v2616
  %v2633 = vrsqrt.pop %v2617
  %v2634 = vrsqrt.pop %v2618
  %v2635 = vrsqrt.pop %v2619
  %v2636 = vrsqrt.pop %v2620
  %v2637 = vrsqrt.pop %v2621
  %v2638 = vrsqrt.pop %v2622
  %v2639 = vrsqrt.pop %v2623
  %v2640 = vrsqrt.pop %v2624
  %v2641 = vmul.f32 %v2274, %v2625
  %v2642 = vmul.f32 %v2276, %v2625
  %v2643 = vmul.f32 %v2387, %v2625
  %v2644 = vmul.f32 %v2389, %v2625
  %v2645 = vmul.f32 %v2278, %v2626
  %v2646 = vmul.f32 %v2280, %v2626
  %v2647 = vmul.f32 %v2391, %v2626
  %v2648 = vmul.f32 %v2393, %v2626
  %v2649 = vmul.f32 %v2284, %v2627
  %v2650 = vmul.f32 %v2286, %v2627
  %v2651 = vmul.f32 %v2397, %v2627
  %v2652 = vmul.f32 %v2399, %v2627
  %v2653 = vmul.f32 %v2288, %v2628
  %v2654 = vmul.f32 %v2290, %v2628
  %v2655 = vmul.f32 %v2401, %v2628
  %v2656 = vmul.f32 %v2403, %v2628
  %v2657 = vmul.f32 %v2294, %v2629
  %v2658 = vmul.f32 %v2296, %v2629
  %v2659 = vmul.f32 %v2407, %v2629
  %v2660 = vmul.f32 %v2409, %v2629
  %v2661 = vmul.f32 %v2298, %v2630
  %v2662 = vmul.f32 %v2300, %v2630
  %v2663 = vmul.f32 %v2411, %v2630
  %v2664 = vmul.f32 %v2413, %v2630
  %v2665 = vmul.f32 %v2304, %v2631
  %v2666 = vmul.f32 %v2306, %v2631
  %v2667 = vmul.f32 %v2417, %v2631
  %v2668 = vmul.f32 %v2419, %v2631
  %v2669 = vmul.f32 %v2308, %v2632
  %v2670 = vmul.f32 %v2310, %v2632
  %v2671 = vmul.f32 %v2421, %v2632
  %v2672 = vmul.f32 %v2423, %v2632
  %v2673 = vmul.f32 %v2314, %v2633
  %v2674 = vmul.f32 %v2316, %v2633
  %v2675 = vmul.f32 %v2427, %v2633
  %v2676 = vmul.f32 %v2429, %v2633
  %v2677 = vmul.f32 %v2318, %v2634
  %v2678 = vmul.f32 %v2320, %v2634
  %v2679 = vmul.f32 %v2431, %v2634
  %v2680 = vmul.f32 %v2433, %v2634
  %v2681 = vmul.f32 %v2324, %v2635
  %v2682 = vmul.f32 %v2326, %v2635
  %v2683 = vmul.f32 %v2437, %v2635
  %v2684 = vmul.f32 %v2439, %v2635
  %v2685 = vmul.f32 %v2328, %v2636
  %v2686 = vmul.f32 %v2330, %v2636
  %v2687 = vmul.f32 %v2441, %v2636
  %v2688 = vmul.f32 %v2443, %v2636
  %v2689 = vmul.f32 %v2334, %v2637
  %v2690 = vmul.f32 %v2336, %v2637
  %v2691 = vmul.f32 %v2447, %v2637
  %v2692 = vmul.f32 %v2449, %v2637
  %v2693 = vmul.f32 %v2338, %v2638
  %v2694 = vmul.f32 %v2340, %v2638
  %v2695 = vmul.f32 %v2451, %v2638
  %v2696 = vmul.f32 %v2453, %v2638
  %v2697 = vmul.f32 %v2344, %v2639
  %v2698 = vmul.f32 %v2346, %v2639
  %v2699 = vmul.f32 %v2457, %v2639
  %v2700 = vmul.f32 %v2459, %v2639
  %v2701 = vmul.f32 %v2348, %v2640
  %v2702 = vmul.f32 %v2350, %v2640
  %v2703 = vmul.f32 %v2461, %v2640
  %v2704 = vmul.f32 %v2463, %v2640
  %v2713 = vcombine.low %v993, %v994
  %v2714 = vcombine.high %v993, %v994
  %v2715 = vcombine.low %v995, %v996
  %v2716 = vcombine.high %v995, %v996
  %v2718 = vunpack.c.l.s4 1966171168
  %v2719 = vunpack.c.0.s8 %v2718
  %v2720 = vlaneseq
  %v2721 = vshrl.u32 %v2720, 7
  %v2722 = vsub.s32 %v2719, %v2721
  %v2723 = vrot.slane %v2713, %v2722
  %v2725 = vunpack.c.l.s4 1966171168
  %v2726 = vunpack.c.0.s8 %v2725
  %v2727 = vlaneseq
  %v2728 = vshrl.u32 %v2727, 7
  %v2729 = vsub.s32 %v2726, %v2728
  %v2730 = vrot.slane %v2714, %v2729
  %v2732 = vunpack.c.l.s4 1966171168
  %v2733 = vunpack.c.0.s8 %v2732
  %v2734 = vlaneseq
  %v2735 = vshrl.u32 %v2734, 7
  %v2736 = vsub.s32 %v2733, %v2735
  %v2737 = vrot.slane %v2715, %v2736
  %v2739 = vunpack.c.l.s4 1966171168
  %v2740 = vunpack.c.0.s8 %v2739
  %v2741 = vlaneseq
  %v2742 = vshrl.u32 %v2741, 7
  %v2743 = vsub.s32 %v2740, %v2742
  %v2744 = vrot.slane %v2716, %v2743
  %v2745 = vcombine.low %v2723, %v2737
  %v2746 = vcombine.high %v2723, %v2737
  %v2747 = vcombine.low %v2730, %v2744
  %v2748 = vcombine.high %v2730, %v2744
  %v2750 = vunpack.c.l.s4 1966171168
  %v2751 = vunpack.c.0.s8 %v2750
  %v2752 = vlaneseq
  %v2753 = vshrl.u32 %v2752, 7
  %v2754 = vsub.s32 %v2751, %v2753
  %v2755 = vrot.slane %v2745, %v2754
  %v2757 = vunpack.c.l.s4 1966171168
  %v2758 = vunpack.c.0.s8 %v2757
  %v2759 = vlaneseq
  %v2760 = vshrl.u32 %v2759, 7
  %v2761 = vsub.s32 %v2758, %v2760
  %v2762 = vrot.slane %v2747, %v2761
  %v2764 = vunpack.c.l.s4 1966171168
  %v2765 = vunpack.c.0.s8 %v2764
  %v2766 = vlaneseq
  %v2767 = vshrl.u32 %v2766, 7
  %v2768 = vsub.s32 %v2765, %v2767
  %v2769 = vrot.slane %v2746, %v2768
  %v2771 = vunpack.c.l.s4 1966171168
  %v2772 = vunpack.c.0.s8 %v2771
  %v2773 = vlaneseq
  %v2774 = vshrl.u32 %v2773, 7
  %v2775 = vsub.s32 %v2772, %v2774
  %v2776 = vrot.slane %v2748, %v2775
  %v2777 = vcombine.high %v2755, %v2755
  %v2778 = vcombine.high %v2762, %v2762
  %v2779 = vcombine.high %v2769, %v2769
  %v2780 = vcombine.high %v2776, %v2776
  %v2781 = vcombine.low %v997, %v998
  %v2782 = vcombine.high %v997, %v998
  %v2783 = vcombine.low %v999, %v1000
  %v2784 = vcombine.high %v999, %v1000
  %v2786 = vunpack.c.l.s4 1966171168
  %v2787 = vunpack.c.0.s8 %v2786
  %v2788 = vlaneseq
  %v2789 = vshrl.u32 %v2788, 7
  %v2790 = vsub.s32 %v2787, %v2789
  %v2791 = vrot.slane %v2781, %v2790
  %v2793 = vunpack.c.l.s4 1966171168
  %v2794 = vunpack.c.0.s8 %v2793
  %v2795 = vlaneseq
  %v2796 = vshrl.u32 %v2795, 7
  %v2797 = vsub.s32 %v2794, %v2796
  %v2798 = vrot.slane %v2782, %v2797
  %v2800 = vunpack.c.l.s4 1966171168
  %v2801 = vunpack.c.0.s8 %v2800
  %v2802 = vlaneseq
  %v2803 = vshrl.u32 %v2802, 7
  %v2804 = vsub.s32 %v2801, %v2803
  %v2805 = vrot.slane %v2783, %v2804
  %v2807 = vunpack.c.l.s4 1966171168
  %v2808 = vunpack.c.0.s8 %v2807
  %v2809 = vlaneseq
  %v2810 = vshrl.u32 %v2809, 7
  %v2811 = vsub.s32 %v2808, %v2810
  %v2812 = vrot.slane %v2784, %v2811
  %v2813 = vcombine.low %v2791, %v2805
  %v2814 = vcombine.high %v2791, %v2805
  %v2815 = vcombine.low %v2798, %v2812
  %v2816 = vcombine.high %v2798, %v2812
  %v2818 = vunpack.c.l.s4 1966171168
  %v2819 = vunpack.c.0.s8 %v2818
  %v2820 = vlaneseq
  %v2821 = vshrl.u32 %v2820, 7
  %v2822 = vsub.s32 %v2819, %v2821
  %v2823 = vrot.slane %v2813, %v2822
  %v2825 = vunpack.c.l.s4 1966171168
  %v2826 = vunpack.c.0.s8 %v2825
  %v2827 = vlaneseq
  %v2828 = vshrl.u32 %v2827, 7
  %v2829 = vsub.s32 %v2826, %v2828
  %v2830 = vrot.slane %v2815, %v2829
  %v2832 = vunpack.c.l.s4 1966171168
  %v2833 = vunpack.c.0.s8 %v2832
  %v2834 = vlaneseq
  %v2835 = vshrl.u32 %v2834, 7
  %v2836 = vsub.s32 %v2833, %v2835
  %v2837 = vrot.slane %v2814, %v2836
  %v2839 = vunpack.c.l.s4 1966171168
  %v2840 = vunpack.c.0.s8 %v2839
  %v2841 = vlaneseq
  %v2842 = vshrl.u32 %v2841, 7
  %v2843 = vsub.s32 %v2840, %v2842
  %v2844 = vrot.slane %v2816, %v2843
  %v2845 = vcombine.high %v2823, %v2823
  %v2846 = vcombine.high %v2830, %v2830
  %v2847 = vcombine.high %v2837, %v2837
  %v2848 = vcombine.high %v2844, %v2844
  %v2849 = vlaneseq
  %v2850 = vshrl.u32 %v2849, 7
  %v2851 = vsub.s32 0, %v2850
  %v2852 = vrot.slane %v2755, %v2851
  %v2853 = vlaneseq
  %v2854 = vshrl.u32 %v2853, 7
  %v2855 = vsub.s32 1, %v2854
  %v2856 = vrot.slane %v2755, %v2855
  %v2857 = vlaneseq
  %v2858 = vshrl.u32 %v2857, 7
  %v2859 = vsub.s32 2, %v2858
  %v2860 = vrot.slane %v2755, %v2859
  %v2861 = vlaneseq
  %v2862 = vshrl.u32 %v2861, 7
  %v2863 = vsub.s32 3, %v2862
  %v2864 = vrot.slane %v2755, %v2863
  %v2865 = vlaneseq
  %v2866 = vshrl.u32 %v2865, 7
  %v2867 = vsub.s32 0, %v2866
  %v2868 = vrot.slane %v2769, %v2867
  %v2869 = vlaneseq
  %v2870 = vshrl.u32 %v2869, 7
  %v2871 = vsub.s32 1, %v2870
  %v2872 = vrot.slane %v2769, %v2871
  %v2873 = vlaneseq
  %v2874 = vshrl.u32 %v2873, 7
  %v2875 = vsub.s32 2, %v2874
  %v2876 = vrot.slane %v2769, %v2875
  %v2877 = vlaneseq
  %v2878 = vshrl.u32 %v2877, 7
  %v2879 = vsub.s32 3, %v2878
  %v2880 = vrot.slane %v2769, %v2879
  %v2881 = vlaneseq
  %v2882 = vshrl.u32 %v2881, 7
  %v2883 = vsub.s32 0, %v2882
  %v2884 = vrot.slane %v2777, %v2883
  %v2885 = vlaneseq
  %v2886 = vshrl.u32 %v2885, 7
  %v2887 = vsub.s32 1, %v2886
  %v2888 = vrot.slane %v2777, %v2887
  %v2889 = vlaneseq
  %v2890 = vshrl.u32 %v2889, 7
  %v2891 = vsub.s32 2, %v2890
  %v2892 = vrot.slane %v2777, %v2891
  %v2893 = vlaneseq
  %v2894 = vshrl.u32 %v2893, 7
  %v2895 = vsub.s32 3, %v2894
  %v2896 = vrot.slane %v2777, %v2895
  %v2897 = vlaneseq
  %v2898 = vshrl.u32 %v2897, 7
  %v2899 = vsub.s32 0, %v2898
  %v2900 = vrot.slane %v2779, %v2899
  %v2901 = vlaneseq
  %v2902 = vshrl.u32 %v2901, 7
  %v2903 = vsub.s32 1, %v2902
  %v2904 = vrot.slane %v2779, %v2903
  %v2905 = vlaneseq
  %v2906 = vshrl.u32 %v2905, 7
  %v2907 = vsub.s32 2, %v2906
  %v2908 = vrot.slane %v2779, %v2907
  %v2909 = vlaneseq
  %v2910 = vshrl.u32 %v2909, 7
  %v2911 = vsub.s32 3, %v2910
  %v2912 = vrot.slane %v2779, %v2911
  %v2913 = vlaneseq
  %v2914 = vshrl.u32 %v2913, 7
  %v2915 = vsub.s32 0, %v2914
  %v2916 = vrot.slane %v2762, %v2915
  %v2917 = vlaneseq
  %v2918 = vshrl.u32 %v2917, 7
  %v2919 = vsub.s32 1, %v2918
  %v2920 = vrot.slane %v2762, %v2919
  %v2921 = vlaneseq
  %v2922 = vshrl.u32 %v2921, 7
  %v2923 = vsub.s32 2, %v2922
  %v2924 = vrot.slane %v2762, %v2923
  %v2925 = vlaneseq
  %v2926 = vshrl.u32 %v2925, 7
  %v2927 = vsub.s32 3, %v2926
  %v2928 = vrot.slane %v2762, %v2927
  %v2929 = vlaneseq
  %v2930 = vshrl.u32 %v2929, 7
  %v2931 = vsub.s32 0, %v2930
  %v2932 = vrot.slane %v2776, %v2931
  %v2933 = vlaneseq
  %v2934 = vshrl.u32 %v2933, 7
  %v2935 = vsub.s32 1, %v2934
  %v2936 = vrot.slane %v2776, %v2935
  %v2937 = vlaneseq
  %v2938 = vshrl.u32 %v2937, 7
  %v2939 = vsub.s32 2, %v2938
  %v2940 = vrot.slane %v2776, %v2939
  %v2941 = vlaneseq
  %v2942 = vshrl.u32 %v2941, 7
  %v2943 = vsub.s32 3, %v2942
  %v2944 = vrot.slane %v2776, %v2943
  %v2945 = vlaneseq
  %v2946 = vshrl.u32 %v2945, 7
  %v2947 = vsub.s32 0, %v2946
  %v2948 = vrot.slane %v2778, %v2947
  %v2949 = vlaneseq
  %v2950 = vshrl.u32 %v2949, 7
  %v2951 = vsub.s32 1, %v2950
  %v2952 = vrot.slane %v2778, %v2951
  %v2953 = vlaneseq
  %v2954 = vshrl.u32 %v2953, 7
  %v2955 = vsub.s32 2, %v2954
  %v2956 = vrot.slane %v2778, %v2955
  %v2957 = vlaneseq
  %v2958 = vshrl.u32 %v2957, 7
  %v2959 = vsub.s32 3, %v2958
  %v2960 = vrot.slane %v2778, %v2959
  %v2961 = vlaneseq
  %v2962 = vshrl.u32 %v2961, 7
  %v2963 = vsub.s32 0, %v2962
  %v2964 = vrot.slane %v2780, %v2963
  %v2965 = vlaneseq
  %v2966 = vshrl.u32 %v2965, 7
  %v2967 = vsub.s32 1, %v2966
  %v2968 = vrot.slane %v2780, %v2967
  %v2969 = vlaneseq
  %v2970 = vshrl.u32 %v2969, 7
  %v2971 = vsub.s32 2, %v2970
  %v2972 = vrot.slane %v2780, %v2971
  %v2973 = vlaneseq
  %v2974 = vshrl.u32 %v2973, 7
  %v2975 = vsub.s32 3, %v2974
  %v2976 = vrot.slane %v2780, %v2975
  %v2977 = vlaneseq
  %v2978 = vshrl.u32 %v2977, 7
  %v2979 = vsub.s32 0, %v2978
  %v2980 = vrot.slane %v2823, %v2979
  %v2981 = vlaneseq
  %v2982 = vshrl.u32 %v2981, 7
  %v2983 = vsub.s32 1, %v2982
  %v2984 = vrot.slane %v2823, %v2983
  %v2985 = vlaneseq
  %v2986 = vshrl.u32 %v2985, 7
  %v2987 = vsub.s32 2, %v2986
  %v2988 = vrot.slane %v2823, %v2987
  %v2989 = vlaneseq
  %v2990 = vshrl.u32 %v2989, 7
  %v2991 = vsub.s32 3, %v2990
  %v2992 = vrot.slane %v2823, %v2991
  %v2993 = vlaneseq
  %v2994 = vshrl.u32 %v2993, 7
  %v2995 = vsub.s32 0, %v2994
  %v2996 = vrot.slane %v2837, %v2995
  %v2997 = vlaneseq
  %v2998 = vshrl.u32 %v2997, 7
  %v2999 = vsub.s32 1, %v2998
  %v3000 = vrot.slane %v2837, %v2999
  %v3001 = vlaneseq
  %v3002 = vshrl.u32 %v3001, 7
  %v3003 = vsub.s32 2, %v3002
  %v3004 = vrot.slane %v2837, %v3003
  %v3005 = vlaneseq
  %v3006 = vshrl.u32 %v3005, 7
  %v3007 = vsub.s32 3, %v3006
  %v3008 = vrot.slane %v2837, %v3007
  %v3009 = vlaneseq
  %v3010 = vshrl.u32 %v3009, 7
  %v3011 = vsub.s32 0, %v3010
  %v3012 = vrot.slane %v2845, %v3011
  %v3013 = vlaneseq
  %v3014 = vshrl.u32 %v3013, 7
  %v3015 = vsub.s32 1, %v3014
  %v3016 = vrot.slane %v2845, %v3015
  %v3017 = vlaneseq
  %v3018 = vshrl.u32 %v3017, 7
  %v3019 = vsub.s32 2, %v3018
  %v3020 = vrot.slane %v2845, %v3019
  %v3021 = vlaneseq
  %v3022 = vshrl.u32 %v3021, 7
  %v3023 = vsub.s32 3, %v3022
  %v3024 = vrot.slane %v2845, %v3023
  %v3025 = vlaneseq
  %v3026 = vshrl.u32 %v3025, 7
  %v3027 = vsub.s32 0, %v3026
  %v3028 = vrot.slane %v2847, %v3027
  %v3029 = vlaneseq
  %v3030 = vshrl.u32 %v3029, 7
  %v3031 = vsub.s32 1, %v3030
  %v3032 = vrot.slane %v2847, %v3031
  %v3033 = vlaneseq
  %v3034 = vshrl.u32 %v3033, 7
  %v3035 = vsub.s32 2, %v3034
  %v3036 = vrot.slane %v2847, %v3035
  %v3037 = vlaneseq
  %v3038 = vshrl.u32 %v3037, 7
  %v3039 = vsub.s32 3, %v3038
  %v3040 = vrot.slane %v2847, %v3039
  %v3041 = vlaneseq
  %v3042 = vshrl.u32 %v3041, 7
  %v3043 = vsub.s32 0, %v3042
  %v3044 = vrot.slane %v2830, %v3043
  %v3045 = vlaneseq
  %v3046 = vshrl.u32 %v3045, 7
  %v3047 = vsub.s32 1, %v3046
  %v3048 = vrot.slane %v2830, %v3047
  %v3049 = vlaneseq
  %v3050 = vshrl.u32 %v3049, 7
  %v3051 = vsub.s32 2, %v3050
  %v3052 = vrot.slane %v2830, %v3051
  %v3053 = vlaneseq
  %v3054 = vshrl.u32 %v3053, 7
  %v3055 = vsub.s32 3, %v3054
  %v3056 = vrot.slane %v2830, %v3055
  %v3057 = vlaneseq
  %v3058 = vshrl.u32 %v3057, 7
  %v3059 = vsub.s32 0, %v3058
  %v3060 = vrot.slane %v2844, %v3059
  %v3061 = vlaneseq
  %v3062 = vshrl.u32 %v3061, 7
  %v3063 = vsub.s32 1, %v3062
  %v3064 = vrot.slane %v2844, %v3063
  %v3065 = vlaneseq
  %v3066 = vshrl.u32 %v3065, 7
  %v3067 = vsub.s32 2, %v3066
  %v3068 = vrot.slane %v2844, %v3067
  %v3069 = vlaneseq
  %v3070 = vshrl.u32 %v3069, 7
  %v3071 = vsub.s32 3, %v3070
  %v3072 = vrot.slane %v2844, %v3071
  %v3073 = vlaneseq
  %v3074 = vshrl.u32 %v3073, 7
  %v3075 = vsub.s32 0, %v3074
  %v3076 = vrot.slane %v2846, %v3075
  %v3077 = vlaneseq
  %v3078 = vshrl.u32 %v3077, 7
  %v3079 = vsub.s32 1, %v3078
  %v3080 = vrot.slane %v2846, %v3079
  %v3081 = vlaneseq
  %v3082 = vshrl.u32 %v3081, 7
  %v3083 = vsub.s32 2, %v3082
  %v3084 = vrot.slane %v2846, %v3083
  %v3085 = vlaneseq
  %v3086 = vshrl.u32 %v3085, 7
  %v3087 = vsub.s32 3, %v3086
  %v3088 = vrot.slane %v2846, %v3087
  %v3089 = vlaneseq
  %v3090 = vshrl.u32 %v3089, 7
  %v3091 = vsub.s32 0, %v3090
  %v3092 = vrot.slane %v2848, %v3091
  %v3093 = vlaneseq
  %v3094 = vshrl.u32 %v3093, 7
  %v3095 = vsub.s32 1, %v3094
  %v3096 = vrot.slane %v2848, %v3095
  %v3097 = vlaneseq
  %v3098 = vshrl.u32 %v3097, 7
  %v3099 = vsub.s32 2, %v3098
  %v3100 = vrot.slane %v2848, %v3099
  %v3101 = vlaneseq
  %v3102 = vshrl.u32 %v3101, 7
  %v3103 = vsub.s32 3, %v3102
  %v3104 = vrot.slane %v2848, %v3103
  %v3169 = vmul.f32 %v2641, %v2852
  %v3170 = vmul.f32 %v2642, %v2856
  %v3171 = vmul.f32 %v2643, %v2860
  %v3172 = vmul.f32 %v2644, %v2864
  %v3173 = vmul.f32 %v2645, %v2868
  %v3174 = vmul.f32 %v2646, %v2872
  %v3175 = vmul.f32 %v2647, %v2876
  %v3176 = vmul.f32 %v2648, %v2880
  %v3177 = vmul.f32 %v2649, %v2884
  %v3178 = vmul.f32 %v2650, %v2888
  %v3179 = vmul.f32 %v2651, %v2892
  %v3180 = vmul.f32 %v2652, %v2896
  %v3181 = vmul.f32 %v2653, %v2900
  %v3182 = vmul.f32 %v2654, %v2904
  %v3183 = vmul.f32 %v2655, %v2908
  %v3184 = vmul.f32 %v2656, %v2912
  %v3185 = vmul.f32 %v2657, %v2916
  %v3186 = vmul.f32 %v2658, %v2920
  %v3187 = vmul.f32 %v2659, %v2924
  %v3188 = vmul.f32 %v2660, %v2928
  %v3189 = vmul.f32 %v2661, %v2932
  %v3190 = vmul.f32 %v2662, %v2936
  %v3191 = vmul.f32 %v2663, %v2940
  %v3192 = vmul.f32 %v2664, %v2944
  %v3193 = vmul.f32 %v2665, %v2948
  %v3194 = vmul.f32 %v2666, %v2952
  %v3195 = vmul.f32 %v2667, %v2956
  %v3196 = vmul.f32 %v2668, %v2960
  %v3197 = vmul.f32 %v2669, %v2964
  %v3198 = vmul.f32 %v2670, %v2968
  %v3199 = vmul.f32 %v2671, %v2972
  %v3200 = vmul.f32 %v2672, %v2976
  %v3201 = vmul.f32 %v2673, %v2980
  %v3202 = vmul.f32 %v2674, %v2984
  %v3203 = vmul.f32 %v2675, %v2988
  %v3204 = vmul.f32 %v2676, %v2992
  %v3205 = vmul.f32 %v2677, %v2996
  %v3206 = vmul.f32 %v2678, %v3000
  %v3207 = vmul.f32 %v2679, %v3004
  %v3208 = vmul.f32 %v2680, %v3008
  %v3209 = vmul.f32 %v2681, %v3012
  %v3210 = vmul.f32 %v2682, %v3016
  %v3211 = vmul.f32 %v2683, %v3020
  %v3212 = vmul.f32 %v2684, %v3024
  %v3213 = vmul.f32 %v2685, %v3028
  %v3214 = vmul.f32 %v2686, %v3032
  %v3215 = vmul.f32 %v2687, %v3036
  %v3216 = vmul.f32 %v2688, %v3040
  %v3217 = vmul.f32 %v2689, %v3044
  %v3218 = vmul.f32 %v2690, %v3048
  %v3219 = vmul.f32 %v2691, %v3052
  %v3220 = vmul.f32 %v2692, %v3056
  %v3221 = vmul.f32 %v2693, %v3060
  %v3222 = vmul.f32 %v2694, %v3064
  %v3223 = vmul.f32 %v2695, %v3068
  %v3224 = vmul.f32 %v2696, %v3072
  %v3225 = vmul.f32 %v2697, %v3076
  %v3226 = vmul.f32 %v2698, %v3080
  %v3227 = vmul.f32 %v2699, %v3084
  %v3228 = vmul.f32 %v2700, %v3088
  %v3229 = vmul.f32 %v2701, %v3092
  %v3230 = vmul.f32 %v2702, %v3096
  %v3231 = vmul.f32 %v2703, %v3100
  %v3232 = vmul.f32 %v2704, %v3104
  %v3233 = vadd.f32 %v3169, %v3170
  %v3234 = vadd.f32 %v3233, %v3171
  %v3235 = vadd.f32 %v3234, %v3172
  %3236 = vadd.xlane.f32.xlu0 %v3235
  %v3237 = vpop.xlane.xlu0 %3236
  %v3238 = vadd.f32 %v3173, %v3174
  %v3239 = vadd.f32 %v3238, %v3175
  %v3240 = vadd.f32 %v3239, %v3176
  %3241 = vadd.xlane.f32.xlu0 %v3240
  %v3242 = vpop.xlane.xlu0 %3241
  %v3243 = vadd.f32 %v3177, %v3178
  %v3244 = vadd.f32 %v3243, %v3179
  %v3245 = vadd.f32 %v3244, %v3180
  %3246 = vadd.xlane.f32.xlu0 %v3245
  %v3247 = vpop.xlane.xlu0 %3246
  %v3248 = vadd.f32 %v3181, %v3182
  %v3249 = vadd.f32 %v3248, %v3183
  %v3250 = vadd.f32 %v3249, %v3184
  %3251 = vadd.xlane.f32.xlu0 %v3250
  %v3252 = vpop.xlane.xlu0 %3251
  %v3253 = vadd.f32 %v3185, %v3186
  %v3254 = vadd.f32 %v3253, %v3187
  %v3255 = vadd.f32 %v3254, %v3188
  %3256 = vadd.xlane.f32.xlu0 %v3255
  %v3257 = vpop.xlane.xlu0 %3256
  %v3258 = vadd.f32 %v3189, %v3190
  %v3259 = vadd.f32 %v3258, %v3191
  %v3260 = vadd.f32 %v3259, %v3192
  %3261 = vadd.xlane.f32.xlu0 %v3260
  %v3262 = vpop.xlane.xlu0 %3261
  %v3263 = vadd.f32 %v3193, %v3194
  %v3264 = vadd.f32 %v3263, %v3195
  %v3265 = vadd.f32 %v3264, %v3196
  %3266 = vadd.xlane.f32.xlu0 %v3265
  %v3267 = vpop.xlane.xlu0 %3266
  %v3268 = vadd.f32 %v3197, %v3198
  %v3269 = vadd.f32 %v3268, %v3199
  %v3270 = vadd.f32 %v3269, %v3200
  %3271 = vadd.xlane.f32.xlu0 %v3270
  %v3272 = vpop.xlane.xlu0 %3271
  %v3273 = vadd.f32 %v3201, %v3202
  %v3274 = vadd.f32 %v3273, %v3203
  %v3275 = vadd.f32 %v3274, %v3204
  %3276 = vadd.xlane.f32.xlu0 %v3275
  %v3277 = vpop.xlane.xlu0 %3276
  %v3278 = vadd.f32 %v3205, %v3206
  %v3279 = vadd.f32 %v3278, %v3207
  %v3280 = vadd.f32 %v3279, %v3208
  %3281 = vadd.xlane.f32.xlu0 %v3280
  %v3282 = vpop.xlane.xlu0 %3281
  %v3283 = vadd.f32 %v3209, %v3210
  %v3284 = vadd.f32 %v3283, %v3211
  %v3285 = vadd.f32 %v3284, %v3212
  %3286 = vadd.xlane.f32.xlu0 %v3285
  %v3287 = vpop.xlane.xlu0 %3286
  %v3288 = vadd.f32 %v3213, %v3214
  %v3289 = vadd.f32 %v3288, %v3215
  %v3290 = vadd.f32 %v3289, %v3216
  %3291 = vadd.xlane.f32.xlu0 %v3290
  %v3292 = vpop.xlane.xlu0 %3291
  %v3293 = vadd.f32 %v3217, %v3218
  %v3294 = vadd.f32 %v3293, %v3219
  %v3295 = vadd.f32 %v3294, %v3220
  %3296 = vadd.xlane.f32.xlu0 %v3295
  %v3297 = vpop.xlane.xlu0 %3296
  %v3298 = vadd.f32 %v3221, %v3222
  %v3299 = vadd.f32 %v3298, %v3223
  %v3300 = vadd.f32 %v3299, %v3224
  %3301 = vadd.xlane.f32.xlu0 %v3300
  %v3302 = vpop.xlane.xlu0 %3301
  %v3303 = vadd.f32 %v3225, %v3226
  %v3304 = vadd.f32 %v3303, %v3227
  %v3305 = vadd.f32 %v3304, %v3228
  %3306 = vadd.xlane.f32.xlu0 %v3305
  %v3307 = vpop.xlane.xlu0 %3306
  %v3308 = vadd.f32 %v3229, %v3230
  %v3309 = vadd.f32 %v3308, %v3231
  %v3310 = vadd.f32 %v3309, %v3232
  %3311 = vadd.xlane.f32.xlu0 %v3310
  %v3312 = vpop.xlane.xlu0 %3311
  %s3313 = sld [smem:[#allocation2]]
  %v3314 = vstv %s3313
  %v3315 = vmul.f32 %v3237, %v3314
  %v3316 = vmul.f32 %v3242, %v3314
  %v3317 = vmul.f32 %v3247, %v3314
  %v3318 = vmul.f32 %v3252, %v3314
  %v3319 = vmul.f32 %v3257, %v3314
  %v3320 = vmul.f32 %v3262, %v3314
  %v3321 = vmul.f32 %v3267, %v3314
  %v3322 = vmul.f32 %v3272, %v3314
  %v3323 = vmul.f32 %v3277, %v3314
  %v3324 = vmul.f32 %v3282, %v3314
  %v3325 = vmul.f32 %v3287, %v3314
  %v3326 = vmul.f32 %v3292, %v3314
  %v3327 = vmul.f32 %v3297, %v3314
  %v3328 = vmul.f32 %v3302, %v3314
  %v3329 = vmul.f32 %v3307, %v3314
  %v3330 = vmul.f32 %v3312, %v3314
  %v3347 = vlaneseq
  %v3348 = vand.u32 %v3347, 127
  %v3349 = vlaneseq
  %v3350 = vshrl.u32 %v3349, 7
  %v3351 = vsub.s32 %v3348, %v3350
  %v3352 = vrot.slane %v3315, %v3351
  %v3353 = vadd.s32 %v3348, 4294967288
  %v3354 = vlaneseq
  %v3355 = vshrl.u32 %v3354, 7
  %v3356 = vsub.s32 %v3353, %v3355
  %v3357 = vrot.slane %v3316, %v3356
  %vm3358 = vcmask 130112
  %v3359 = vsel %vm3358, %v3357, %v3352
  %v3360 = vadd.s32 %v3348, 4294967280
  %v3361 = vlaneseq
  %v3362 = vshrl.u32 %v3361, 7
  %v3363 = vsub.s32 %v3360, %v3362
  %v3364 = vrot.slane %v3317, %v3363
  %vm3365 = vcmask 195712
  %v3366 = vsel %vm3365, %v3364, %v3359
  %v3367 = vadd.s32 %v3348, 4294967272
  %v3368 = vlaneseq
  %v3369 = vshrl.u32 %v3368, 7
  %v3370 = vsub.s32 %v3367, %v3369
  %v3371 = vrot.slane %v3318, %v3370
  %vm3372 = vcmask 261312
  %v3373 = vsel %vm3372, %v3371, %v3366
  %v3374 = vadd.s32 %v3348, 4294967264
  %v3375 = vlaneseq
  %v3376 = vshrl.u32 %v3375, 7
  %v3377 = vsub.s32 %v3374, %v3376
  %v3378 = vrot.slane %v3319, %v3377
  %vm3379 = vcmask 326912
  %v3380 = vsel %vm3379, %v3378, %v3373
  %v3381 = vadd.s32 %v3348, 4294967256
  %v3382 = vlaneseq
  %v3383 = vshrl.u32 %v3382, 7
  %v3384 = vsub.s32 %v3381, %v3383
  %v3385 = vrot.slane %v3320, %v3384
  %vm3386 = vcmask 392512
  %v3387 = vsel %vm3386, %v3385, %v3380
  %v3388 = vadd.s32 %v3348, 4294967248
  %v3389 = vlaneseq
  %v3390 = vshrl.u32 %v3389, 7
  %v3391 = vsub.s32 %v3388, %v3390
  %v3392 = vrot.slane %v3321, %v3391
  %vm3393 = vcmask 458112
  %v3394 = vsel %vm3393, %v3392, %v3387
  %v3395 = vadd.s32 %v3348, 4294967240
  %v3396 = vlaneseq
  %v3397 = vshrl.u32 %v3396, 7
  %v3398 = vsub.s32 %v3395, %v3397
  %v3399 = vrot.slane %v3322, %v3398
  %vm3400 = vcmask 523712
  %v3401 = vsel %vm3400, %v3399, %v3394
  %v3402 = vadd.s32 %v3348, 4294967232
  %v3403 = vlaneseq
  %v3404 = vshrl.u32 %v3403, 7
  %v3405 = vsub.s32 %v3402, %v3404
  %v3406 = vrot.slane %v3323, %v3405
  %vm3407 = vcmask 589312
  %v3408 = vsel %vm3407, %v3406, %v3401
  %v3409 = vadd.s32 %v3348, 4294967224
  %v3410 = vlaneseq
  %v3411 = vshrl.u32 %v3410, 7
  %v3412 = vsub.s32 %v3409, %v3411
  %v3413 = vrot.slane %v3324, %v3412
  %vm3414 = vcmask 654912
  %v3415 = vsel %vm3414, %v3413, %v3408
  %v3416 = vadd.s32 %v3348, 4294967216
  %v3417 = vlaneseq
  %v3418 = vshrl.u32 %v3417, 7
  %v3419 = vsub.s32 %v3416, %v3418
  %v3420 = vrot.slane %v3325, %v3419
  %vm3421 = vcmask 720512
  %v3422 = vsel %vm3421, %v3420, %v3415
  %v3423 = vadd.s32 %v3348, 4294967208
  %v3424 = vlaneseq
  %v3425 = vshrl.u32 %v3424, 7
  %v3426 = vsub.s32 %v3423, %v3425
  %v3427 = vrot.slane %v3326, %v3426
  %vm3428 = vcmask 786112
  %v3429 = vsel %vm3428, %v3427, %v3422
  %v3430 = vadd.s32 %v3348, 4294967200
  %v3431 = vlaneseq
  %v3432 = vshrl.u32 %v3431, 7
  %v3433 = vsub.s32 %v3430, %v3432
  %v3434 = vrot.slane %v3327, %v3433
  %vm3435 = vcmask 851712
  %v3436 = vsel %vm3435, %v3434, %v3429
  %v3437 = vadd.s32 %v3348, 4294967192
  %v3438 = vlaneseq
  %v3439 = vshrl.u32 %v3438, 7
  %v3440 = vsub.s32 %v3437, %v3439
  %v3441 = vrot.slane %v3328, %v3440
  %vm3442 = vcmask 917312
  %v3443 = vsel %vm3442, %v3441, %v3436
  %v3444 = vadd.s32 %v3348, 4294967184
  %v3445 = vlaneseq
  %v3446 = vshrl.u32 %v3445, 7
  %v3447 = vsub.s32 %v3444, %v3446
  %v3448 = vrot.slane %v3329, %v3447
  %vm3449 = vcmask 982912
  %v3450 = vsel %vm3449, %v3448, %v3443
  %v3451 = vadd.s32 %v3348, 4294967176
  %v3452 = vlaneseq
  %v3453 = vshrl.u32 %v3452, 7
  %v3454 = vsub.s32 %v3451, %v3453
  %v3455 = vrot.slane %v3330, %v3454
  %vm3456 = vcmask 1048512
  %v3457 = vsel %vm3456, %v3455, %v3450
  %3459 = vst [vmem:[%s27] sm:$0x1] %v3457
  // Predicated region
  $region110: #{_lambda_.1} parent=0 // pred_check
    _
  $region111: #{_lambda_.1} parent=0 // pred_check_branch
    %3461 = sbr.rel (0) target = $region113
  $region112: #{_lambda_.1} parent=0 // pred_region
    _
  $region113: #{_lambda_.1} parent=0 // pred_fallthru
    _
  // Predicated region
  $region114: #{_lambda_.1} parent=0 // pred_check
    _
  $region115: #{_lambda_.1} parent=0 // pred_check_branch
    %3463 = sbr.rel (0) target = $region117
  $region116: #{_lambda_.1} parent=0 // pred_region
    _
  $region117: #{_lambda_.1} parent=0 // pred_fallthru
    _

</llo_original>
